<compile_context>
chip_gen: v5e
topology: v5e:2x2
jax: 0.10.0
libtpu: 0.0.40
codegen_flags: <defaults>
</compile_context>

<pallas_src>
import functools

import numpy as np
import jax
import jax.numpy as jnp
from jax import lax
from jax.experimental import pallas as pl
from jax.experimental.pallas import tpu as pltpu

# ----------------- deterministic hardware / module configuration -------------
INPUT_BITS = 8
OUTPUT_PRECISION_BITS = 8
OUTPUT_RANGE_BITS = 4
HW_INPUT_VMAX = 0.6
HW_OUTPUT_CURRENT_SCALING = 10000.0

DAC_SCALE = 1.0 / 2 ** (INPUT_BITS - 1)
DAC_MAX = float(2 ** (INPUT_BITS - 1))
DAC_MIN = -DAC_MAX
ADC_SCALE = 1.0 / 2 ** OUTPUT_PRECISION_BITS
ADC_INV_SCALE = float(2 ** OUTPUT_PRECISION_BITS)
ADC_MAX = float(2 ** (OUTPUT_PRECISION_BITS + OUTPUT_RANGE_BITS - 1))
ADC_MIN = -ADC_MAX

KBT = 1.380649e-23 * 300.0       # self.kBT
BW = 1e-8                        # self.BW
NOISE_MIN_V = 1e-12              # self.noise_minimum_voltage
E_CONST = float(np.exp(1))       # module uses np.exp(1)
JOHNSON_COEF = 4.0 * KBT * BW
SHOT_COEF = 2.0 * E_CONST * BW

# Polynomial coefficients (ascending degree), shared by all memristor arrays,
# as init_resistance_states would set them from CellArrayCPU LLRS / HHRS.
POLY_LOW = (0.0, 2.0e-4, 0.0, 1.0e-5, 0.0, 1.0e-6, 0.0)   # low_degree = 7
POLY_HIGH = (0.0, 2.0e-6, 0.0, 1.0e-7, 0.0, 1.0e-8)       # high_degree = 6

INPUT_FACTOR = 1.0
OUTPUT_FACTOR = 0.01

DAC_IN_MULT = INPUT_FACTOR / DAC_SCALE              # fold input_factor into DAC
DAC_OUT_MULT = DAC_SCALE * HW_INPUT_VMAX
# 10000 * 256: folding is bit-exact (power-of-two scaling commutes with f32
# rounding); removes one full-block multiply before the ADC round.
ADC_PRE_MULT = HW_OUTPUT_CURRENT_SCALING * ADC_INV_SCALE

NOISE_STORE_DTYPE = jnp.bfloat16   # noise is the dominant HBM stream


def _round_nearest_even(x):
    # Single hardware round-to-nearest-even (matches torch fake_quantize).
    return lax.round(x, lax.RoundingMethod.TO_NEAREST_EVEN)


def _dac(x):
    """DAC: fake_quantize_per_tensor_affine (zero_point=0) then scale to volts."""
    return jnp.clip(_round_nearest_even(x * DAC_IN_MULT),
                    DAC_MIN, DAC_MAX) * DAC_OUT_MULT


def _poly_via_square(coeffs, v, v2):
    """Evaluate ascending-degree poly_mul(coeffs, v).

    All even-degree coefficients of the LLRS/HHRS I/V curves are zero, so use
    Horner in v^2 and share v2 between polynomials; otherwise generic Horner.
    """
    if any(c != 0.0 for c in coeffs[0::2]):
        acc = coeffs[-1]
        for c in coeffs[-2::-1]:
            acc = acc * v + c
        return acc
    odd = coeffs[1::2]                      # coefficients of v^1, v^3, ...
    acc = odd[-1]
    for c in odd[-2::-1]:
        acc = acc * v2 + c
    return v * acc


# --------------------------------- kernel ------------------------------------
def memristor_conv1d_kernel(x_ref, r_ref, noise_ref, bias_ref, out_ref, *,
                            num_arrays, kernel_size, t_out, unfolded):
    # x_ref:     stride==1: [1, tile_c, T'p + K - 1]   else: [1, K, tile_c, T'p]
    # r_ref:     [NB, 2, K, tile_c, 1]    resistance state r in [0, 1]
    # noise_ref: [NB, 2, K, tile_c, T'p]  bf16 gaussian noise (shared over batch)
    # bias_ref:  [tile_c, 1]
    # out_ref:   [1, tile_c, T'p]
    #
    # DAC once per input element (hoisted out of the array / pos-neg loops).
    if unfolded:
        vin = _dac(x_ref[0])                                   # [K, tile_c, T'p]
        tap_v = [vin[k] for k in range(kernel_size)]
    else:
        vin = _dac(x_ref[0])                                   # [tile_c, T'p+K-1]
        tap_v = [vin[:, k:k + t_out] for k in range(kernel_size)]

    # Per-tap precompute shared by every memristor array and both polarities:
    # low/high I/V polynomials, interpolation delta, and the factored noise
    # variance coefficient g = 4*kBT*BW/(|v|+eps) + 2*e*BW, so that
    # johnson + shot == |raw| * g.  Exact division (per-tap only, cheap).
    taps = []
    for vk in tap_v:
        v2 = vk * vk
        lo = _poly_via_square(POLY_LOW, vk, v2)
        hi = _poly_via_square(POLY_HIGH, vk, v2)
        g = JOHNSON_COEF / (jnp.abs(vk) + NOISE_MIN_V) + SHOT_COEF
        taps.append((lo, hi - lo, g))

    acc = None
    for j in range(num_arrays):
        # bit weights: memristors[-1] -> 1, memristors[i] -> 2**(P-2-i)
        weight = float(2 ** (num_arrays - 1 - j))
        # ADC_SCALE (2^-8) and weight (2^w) fold exactly; OUTPUT_FACTOR fold
        # only changes the distribution over the final sum (<= 1 ulp).
        post_mult = float(ADC_SCALE * weight * OUTPUT_FACTOR)
        pair = None
        for s in range(2):                                     # 0: pos, 1: neg
            arr_sum = None
            for k in range(kernel_size):
                lo, diff, g = taps[k]
                rk = r_ref[j, s, k]                            # [tile_c, 1]
                raw = lo + diff * rk                           # [tile_c, T'p]
                sigma = jnp.sqrt(jnp.abs(raw) * g)
                term = raw + noise_ref[j, s, k].astype(jnp.float32) * sigma
                arr_sum = term if arr_sum is None else arr_sum + term
            pair = arr_sum if s == 0 else pair - arr_sum
        # ADC: current scaling + fake quantize (folded constants).
        q = jnp.clip(_round_nearest_even(pair * ADC_PRE_MULT), ADC_MIN, ADC_MAX)
        contrib = q * post_mult
        acc = contrib if acc is None else acc + contrib

    out_ref[0] = acc + bias_ref[...]                           # bias: [tile_c, 1]


# ------------------------------ sizing helpers --------------------------------
def _round_up(x, m):
    return ((x + m - 1) // m) * m


@functools.lru_cache(maxsize=None)
def _vmem_capacity_bytes():
    """Physical VMEM per core (64 MiB on v7x, 128 MiB on v5e/v6e)."""
    try:
        cap = int(pltpu.get_tpu_info().vmem_capacity_bytes)
        if cap > 0:
            return cap
    except Exception:
        pass
    try:
        kind = jax.devices()[0].device_kind.lower()
    except Exception:
        kind = ""
    return (64 << 20) if "v7" in kind else (128 << 20)


@functools.lru_cache(maxsize=None)
def _supports_single_buffering():
    """pipeline_mode=pl.Buffered(1) availability probe (construction only)."""
    if not hasattr(pl, "Buffered"):
        return False
    try:
        pl.BlockSpec((8, 128), lambda i: (i, 0), pipeline_mode=pl.Buffered(1))
        return True
    except Exception:
        return False


def _per_channel_vmem_bytes(num_arrays, kernel_size, t_out_p, t_x, unfolded,
                            noise_bytes):
    """VMEM bytes per channel row: pipeline buffers + kernel temporaries +
    the 128-lane padding of trailing-singleton blocks."""
    f32 = 4
    n_streams = num_arrays * 2 * kernel_size
    x_cols = kernel_size * t_x if unfolded else t_x
    total = 0
    total += 2 * x_cols * f32                        # x (double buffered)
    total += x_cols * f32                            # DAC'd vin temporary
    total += n_streams * t_out_p * noise_bytes       # noise (single buffered)
    total += n_streams * 128 * f32                   # r block, [tile_c,1]->lane 128
    total += 128 * f32                               # bias block, lane-padded
    total += 2 * t_out_p * f32                       # output (double buffered)
    total += (3 * kernel_size + 8) * t_out_p * f32   # lo/diff/g taps + working blocks
    return total


def _pick_tile_c(c, per_channel_bytes, budget_bytes):
    """Largest channel tile (multiple of 8) fitting the budget; C is padded up
    to a multiple of the tile afterwards, so the tile need not divide C."""
    max_c = max(8, (budget_bytes // max(per_channel_bytes, 1)) // 8 * 8)
    if max_c >= c:
        return c
    for d in range(max_c, 7, -8):        # prefer a divisor (no channel padding)
        if c % d == 0:
            return d
    return max_c


# --------------------------------- wrapper ------------------------------------
def memristor_conv1d(x, r, noise, bias, *, kernel_size, stride,
                     padding_amount, num_arrays):
    """x: [B, C, T] -> [B, C, T'] (groups == in_channels == out_channels).

    r:     [NB, 2, K, C]       resistance states in [0, 1] (pos/neg arrays)
    noise: [NB, 2, K, C, T']   gaussian noise, broadcast over the batch dim
    bias:  [C]
    """
    b, c, t = x.shape
    xp = x.astype(jnp.float32)
    if padding_amount > 0:                                     # padding_mode='zeros'
        xp = jnp.pad(xp, ((0, 0), (0, 0), (padding_amount, padding_amount)))
    t_pad = t + 2 * padding_amount
    t_out = (t_pad - kernel_size) // stride + 1
    t_out_p = _round_up(t_out, 128)        # lane-dense noise / output blocks

    unfolded = stride != 1
    t_x = t_out_p if unfolded else t_out_p + (kernel_size - 1)

    cap = _vmem_capacity_bytes()
    noise_bytes = jnp.dtype(NOISE_STORE_DTYPE).itemsize
    per_channel = _per_channel_vmem_bytes(num_arrays, kernel_size, t_out_p,
                                          t_x, unfolded, noise_bytes)
    c8 = _round_up(c, 8)
    tile_c = _pick_tile_c(c8, per_channel, budget_bytes=cap // 2)
    c_pad = _round_up(c8, tile_c)
    num_ct = c_pad // tile_c

    r5 = jnp.pad(r.astype(jnp.float32),
                 ((0, 0), (0, 0), (0, 0), (0, c_pad - c))
                 ).reshape(num_arrays, 2, kernel_size, c_pad, 1)
    noise_p = jnp.pad(noise.astype(NOISE_STORE_DTYPE),
                      ((0, 0), (0, 0), (0, 0),
                       (0, c_pad - c), (0, t_out_p - t_out)))
    bias2 = jnp.pad(bias.astype(jnp.float32), (0, c_pad - c)).reshape(c_pad, 1)

    if unfolded:
        # TODO(synk): stride>1 still materializes the K-x unfolded input; a
        # per-phase deinterleaved layout would restore stride-1 efficiency.
        gather = (jnp.arange(t_out)[None, :] * stride
                  + jnp.arange(kernel_size)[:, None])          # [K, T']
        xw = jnp.transpose(xp[:, :, gather], (0, 2, 1, 3))     # [B, K, C, T']
        xin = jnp.pad(xw, ((0, 0), (0, 0),
                           (0, c_pad - c), (0, t_out_p - t_out)))
        x_block = (1, kernel_size, tile_c, t_out_p)
        x_index = lambda ci, bi: (bi, 0, ci, 0)
    else:
        xin = jnp.pad(xp, ((0, 0), (0, c_pad - c), (0, t_x - t_pad)))
        x_block = (1, tile_c, t_x)
        x_index = lambda ci, bi: (bi, ci, 0)

    # Generation-aware VMEM limit (never exceeds physical; ~51 MiB v7x, ~102 MiB v6e).
    vmem_limit = int(cap * 0.8)
    # With >=2 channel tiles, shard the channel-tile axis across v7x cores and
    # keep batch "arbitrary" so both cores don't DMA the same noise block.
    dim_sems = ("parallel", "arbitrary") if num_ct >= 2 else ("parallel", "parallel")

    kernel_fn = functools.partial(memristor_conv1d_kernel,
                                  num_arrays=num_arrays,
                                  kernel_size=kernel_size,
                                  t_out=t_out_p,
                                  unfolded=unfolded)

    def run(single_buffer):
        def inv_spec(shape, index_map):
            # Batch-invariant blocks: constant block index on the inner batch
            # axis => double buffering buys no overlap, only VMEM.
            if single_buffer:
                return pl.BlockSpec(shape, index_map, pipeline_mode=pl.Buffered(1))
            return pl.BlockSpec(shape, index_map)

        return pl.pallas_call(
            kernel_fn,
            out_shape=jax.ShapeDtypeStruct((b, c_pad, t_out_p), jnp.float32),
            grid=(num_ct, b),        # batch innermost: noise/r/bias not re-DMA'd
            in_specs=[
                pl.BlockSpec(x_block, x_index),
                inv_spec((num_arrays, 2, kernel_size, tile_c, 1),
                         lambda ci, bi: (0, 0, 0, ci, 0)),
                inv_spec((num_arrays, 2, kernel_size, tile_c, t_out_p),
                         lambda ci, bi: (0, 0, 0, ci, 0)),
                inv_spec((tile_c, 1), lambda ci, bi: (ci, 0)),
            ],
            out_specs=pl.BlockSpec((1, tile_c, t_out_p),
                                   lambda ci, bi: (bi, ci, 0)),
            compiler_params=pltpu.CompilerParams(
                dimension_semantics=dim_sems,
                vmem_limit_bytes=vmem_limit),
        )(xin, r5, noise_p, bias2)

    if _supports_single_buffering():
        try:
            out = run(True)
        except Exception:
            out = run(False)     # fall back to default double buffering
    else:
        out = run(False)

    return out[:, :c, :t_out]


# ----------------------------- pure-JAX reference ------------------------------
def reference_forward(x, r, noise, bias, *, kernel_size, stride,
                      padding_amount, num_arrays):
    b, c, t = x.shape
    xp = x.astype(jnp.float32)
    if padding_amount > 0:
        xp = jnp.pad(xp, ((0, 0), (0, 0), (padding_amount, padding_amount)))
    t_pad = xp.shape[-1]
    t_out = (t_pad - kernel_size) // stride + 1
    vin = _dac(xp)                                              # [B, C, T_pad]

    taps = []
    for k in range(kernel_size):
        vk = vin[:, :, k:k + (t_out - 1) * stride + 1:stride]   # [B, C, T']
        v2 = vk * vk
        lo = _poly_via_square(POLY_LOW, vk, v2)
        hi = _poly_via_square(POLY_HIGH, vk, v2)
        g = JOHNSON_COEF / (jnp.abs(vk) + NOISE_MIN_V) + SHOT_COEF
        taps.append((lo, hi - lo, g))

    acc = jnp.zeros((b, c, t_out), jnp.float32)
    for j in range(num_arrays):
        weight = float(2 ** (num_arrays - 1 - j))
        pair = None
        for s in range(2):
            arr_sum = None
            for k in range(kernel_size):
                lo, diff, g = taps[k]
                rk = r[j, s, k][:, None]                        # [C, 1]
                raw = lo + diff * rk
                sigma = jnp.sqrt(jnp.abs(raw) * g)
                term = raw + noise[j, s, k] * sigma             # broadcast over B
                arr_sum = term if arr_sum is None else arr_sum + term
            pair = arr_sum if s == 0 else pair - arr_sum
        adc_in = pair * HW_OUTPUT_CURRENT_SCALING
        adc_q = jnp.clip(_round_nearest_even(adc_in * ADC_INV_SCALE),
                         ADC_MIN, ADC_MAX) * ADC_SCALE
        acc = acc + adc_q * weight
    return acc * OUTPUT_FACTOR + bias[None, :, None]


# ------------------------------------ main -------------------------------------
if __name__ == "__main__":
    # in_channels == out_channels == groups (only supported configuration)
    B, C, T = 2, 8, 16
    KSIZE = 3
    WEIGHT_PRECISION = 3
    NB = WEIGHT_PRECISION - 1       # number of paired memristor arrays

    key = jax.random.PRNGKey(0)
    kx, kr, kn, kb, kn2 = jax.random.split(key, 5)
    x = jax.random.normal(kx, (B, C, T), dtype=jnp.float32)
    r = jax.random.uniform(kr, (NB, 2, KSIZE, C), dtype=jnp.float32)
    bias = 0.01 * jax.random.normal(kb, (C,), dtype=jnp.float32)

    # Case 1: padding='same', stride=1  (optimized, no-unfold kernel path)
    stride, pad = 1, KSIZE // 2
    t_out = (T + 2 * pad - KSIZE) // stride + 1
    noise = jax.random.normal(kn, (NB, 2, KSIZE, C, t_out), dtype=jnp.float32)
    out = memristor_conv1d(x, r, noise, bias, kernel_size=KSIZE, stride=stride,
                           padding_amount=pad, num_arrays=NB)
    out = jax.block_until_ready(out)
    assert out.shape == (B, C, t_out)
    # Kernel stores noise in bf16; reference gets the identically-rounded values.
    noise_stored = noise.astype(NOISE_STORE_DTYPE).astype(jnp.float32)
    ref = reference_forward(x, r, noise_stored, bias, kernel_size=KSIZE,
                            stride=stride, padding_amount=pad, num_arrays=NB)
    np.testing.assert_allclose(np.asarray(out), np.asarray(ref),
                               rtol=1e-5, atol=1e-5)

    # Case 2: padding='valid', stride=2  (general pre-unfolded kernel path)
    stride2, pad2 = 2, 0
    t_out2 = (T - KSIZE) // stride2 + 1
    noise2 = jax.random.normal(kn2, (NB, 2, KSIZE, C, t_out2), dtype=jnp.float32)
    out2 = memristor_conv1d(x, r, noise2, bias, kernel_size=KSIZE, stride=stride2,
                            padding_amount=pad2, num_arrays=NB)
    out2 = jax.block_until_ready(out2)
    assert out2.shape == (B, C, t_out2)
    noise2_stored = noise2.astype(NOISE_STORE_DTYPE).astype(jnp.float32)
    ref2 = reference_forward(x, r, noise2_stored, bias, kernel_size=KSIZE,
                             stride=stride2, padding_amount=pad2, num_arrays=NB)
    np.testing.assert_allclose(np.asarray(out2), np.asarray(ref2),
                               rtol=1e-5, atol=1e-5)

    print("KERNEL_OK")
</pallas_src>

<mosaic_0001>
module attributes {stable_mosaic.version = 11 : i64} {
  func.func @memristor_conv1d_kernel(%arg0: i32, %arg1: i32, %arg2: memref<1x8x130xf32, #tpu.memory_space<vmem>>, %arg3: memref<2x2x3x8x1xf32, #tpu.memory_space<vmem>>, %arg4: memref<2x2x3x8x128xbf16, #tpu.memory_space<vmem>>, %arg5: memref<8x1xf32, #tpu.memory_space<vmem>>, %arg6: memref<1x8x128xf32, #tpu.memory_space<vmem>>) attributes {dimension_semantics = [#tpu.dimension_semantics<parallel>, #tpu.dimension_semantics<parallel>], iteration_bounds = array<i64: 1, 2>, scalar_prefetch = 0 : i64, scratch_operands = 0 : i64, tpu.core_type = #tpu.core_type<tc>, window_params = [{transform_indices = @transform_0, window_bounds = array<i64: 1, 8, 130>}, {pipeline_mode = #tpu.pipeline_mode<synchronous>, transform_indices = @transform_1, window_bounds = array<i64: 2, 2, 3, 8, 1>}, {pipeline_mode = #tpu.pipeline_mode<synchronous>, transform_indices = @transform_2, window_bounds = array<i64: 2, 2, 3, 8, 128>}, {pipeline_mode = #tpu.pipeline_mode<synchronous>, transform_indices = @transform_3, window_bounds = array<i64: 8, 1>}, {transform_indices = @transform_4, window_bounds = array<i64: 1, 8, 128>}]} {
    %c0 = arith.constant 0 : index
    %c0_0 = arith.constant 0 : index
    %c0_1 = arith.constant 0 : index
    %0 = vector.load %arg2[%c0, %c0_0, %c0_1] : memref<1x8x130xf32, #tpu.memory_space<vmem>>, vector<1x8x130xf32>
    %1 = vector.shape_cast %0 : vector<1x8x130xf32> to vector<8x130xf32>
    %cst = arith.constant 1.280000e+02 : f32
    %2 = vector.broadcast %cst : f32 to vector<8x130xf32>
    %3 = arith.mulf %1, %2 : vector<8x130xf32>
    %4 = math.roundeven %3 : vector<8x130xf32>
    %cst_2 = arith.constant -1.280000e+02 : f32
    %cst_3 = arith.constant 1.280000e+02 : f32
    %5 = vector.broadcast %cst_2 : f32 to vector<8x130xf32>
    %6 = arith.maximumf %5, %4 : vector<8x130xf32>
    %7 = vector.broadcast %cst_3 : f32 to vector<8x130xf32>
    %8 = arith.minimumf %7, %6 : vector<8x130xf32>
    %cst_4 = arith.constant 4.687500e-03 : f32
    %9 = vector.broadcast %cst_4 : f32 to vector<8x130xf32>
    %10 = arith.mulf %8, %9 : vector<8x130xf32>
    %11 = vector.extract_strided_slice %10 {offsets = [0, 0], sizes = [8, 128], strides = [1, 1]} : vector<8x130xf32> to vector<8x128xf32>
    %12 = vector.extract_strided_slice %10 {offsets = [0, 1], sizes = [8, 128], strides = [1, 1]} : vector<8x130xf32> to vector<8x128xf32>
    %13 = vector.extract_strided_slice %10 {offsets = [0, 2], sizes = [8, 128], strides = [1, 1]} : vector<8x130xf32> to vector<8x128xf32>
    %14 = arith.mulf %11, %11 : vector<8x128xf32>
    %cst_5 = arith.constant 9.99999997E-7 : f32
    %15 = vector.broadcast %cst_5 : f32 to vector<8x128xf32>
    %16 = arith.mulf %15, %14 : vector<8x128xf32>
    %cst_6 = arith.constant 9.99999974E-6 : f32
    %17 = vector.broadcast %cst_6 : f32 to vector<8x128xf32>
    %18 = arith.addf %16, %17 : vector<8x128xf32>
    %19 = arith.mulf %18, %14 : vector<8x128xf32>
    %cst_7 = arith.constant 2.000000e-04 : f32
    %20 = vector.broadcast %cst_7 : f32 to vector<8x128xf32>
    %21 = arith.addf %19, %20 : vector<8x128xf32>
    %22 = arith.mulf %11, %21 : vector<8x128xf32>
    %cst_8 = arith.constant 9.99999993E-9 : f32
    %23 = vector.broadcast %cst_8 : f32 to vector<8x128xf32>
    %24 = arith.mulf %23, %14 : vector<8x128xf32>
    %cst_9 = arith.constant 1.000000e-07 : f32
    %25 = vector.broadcast %cst_9 : f32 to vector<8x128xf32>
    %26 = arith.addf %24, %25 : vector<8x128xf32>
    %27 = arith.mulf %26, %14 : vector<8x128xf32>
    %cst_10 = arith.constant 2.000000e-06 : f32
    %28 = vector.broadcast %cst_10 : f32 to vector<8x128xf32>
    %29 = arith.addf %27, %28 : vector<8x128xf32>
    %30 = arith.mulf %11, %29 : vector<8x128xf32>
    %31 = math.absf %11 : vector<8x128xf32>
    %cst_11 = arith.constant 9.99999996E-13 : f32
    %32 = vector.broadcast %cst_11 : f32 to vector<8x128xf32>
    %33 = arith.addf %31, %32 : vector<8x128xf32>
    %cst_12 = arith.constant 1.65677883E-28 : f32
    %34 = vector.broadcast %cst_12 : f32 to vector<8x128xf32>
    %35 = arith.divf %34, %33 : vector<8x128xf32>
    %cst_13 = arith.constant 5.43656355E-8 : f32
    %36 = vector.broadcast %cst_13 : f32 to vector<8x128xf32>
    %37 = arith.addf %35, %36 : vector<8x128xf32>
    %38 = arith.subf %30, %22 : vector<8x128xf32>
    %39 = arith.mulf %12, %12 : vector<8x128xf32>
    %cst_14 = arith.constant 9.99999997E-7 : f32
    %40 = vector.broadcast %cst_14 : f32 to vector<8x128xf32>
    %41 = arith.mulf %40, %39 : vector<8x128xf32>
    %cst_15 = arith.constant 9.99999974E-6 : f32
    %42 = vector.broadcast %cst_15 : f32 to vector<8x128xf32>
    %43 = arith.addf %41, %42 : vector<8x128xf32>
    %44 = arith.mulf %43, %39 : vector<8x128xf32>
    %cst_16 = arith.constant 2.000000e-04 : f32
    %45 = vector.broadcast %cst_16 : f32 to vector<8x128xf32>
    %46 = arith.addf %44, %45 : vector<8x128xf32>
    %47 = arith.mulf %12, %46 : vector<8x128xf32>
    %cst_17 = arith.constant 9.99999993E-9 : f32
    %48 = vector.broadcast %cst_17 : f32 to vector<8x128xf32>
    %49 = arith.mulf %48, %39 : vector<8x128xf32>
    %cst_18 = arith.constant 1.000000e-07 : f32
    %50 = vector.broadcast %cst_18 : f32 to vector<8x128xf32>
    %51 = arith.addf %49, %50 : vector<8x128xf32>
    %52 = arith.mulf %51, %39 : vector<8x128xf32>
    %cst_19 = arith.constant 2.000000e-06 : f32
    %53 = vector.broadcast %cst_19 : f32 to vector<8x128xf32>
    %54 = arith.addf %52, %53 : vector<8x128xf32>
    %55 = arith.mulf %12, %54 : vector<8x128xf32>
    %56 = math.absf %12 : vector<8x128xf32>
    %cst_20 = arith.constant 9.99999996E-13 : f32
    %57 = vector.broadcast %cst_20 : f32 to vector<8x128xf32>
    %58 = arith.addf %56, %57 : vector<8x128xf32>
    %cst_21 = arith.constant 1.65677883E-28 : f32
    %59 = vector.broadcast %cst_21 : f32 to vector<8x128xf32>
    %60 = arith.divf %59, %58 : vector<8x128xf32>
    %cst_22 = arith.constant 5.43656355E-8 : f32
    %61 = vector.broadcast %cst_22 : f32 to vector<8x128xf32>
    %62 = arith.addf %60, %61 : vector<8x128xf32>
    %63 = arith.subf %55, %47 : vector<8x128xf32>
    %64 = arith.mulf %13, %13 : vector<8x128xf32>
    %cst_23 = arith.constant 9.99999997E-7 : f32
    %65 = vector.broadcast %cst_23 : f32 to vector<8x128xf32>
    %66 = arith.mulf %65, %64 : vector<8x128xf32>
    %cst_24 = arith.constant 9.99999974E-6 : f32
    %67 = vector.broadcast %cst_24 : f32 to vector<8x128xf32>
    %68 = arith.addf %66, %67 : vector<8x128xf32>
    %69 = arith.mulf %68, %64 : vector<8x128xf32>
    %cst_25 = arith.constant 2.000000e-04 : f32
    %70 = vector.broadcast %cst_25 : f32 to vector<8x128xf32>
    %71 = arith.addf %69, %70 : vector<8x128xf32>
    %72 = arith.mulf %13, %71 : vector<8x128xf32>
    %cst_26 = arith.constant 9.99999993E-9 : f32
    %73 = vector.broadcast %cst_26 : f32 to vector<8x128xf32>
    %74 = arith.mulf %73, %64 : vector<8x128xf32>
    %cst_27 = arith.constant 1.000000e-07 : f32
    %75 = vector.broadcast %cst_27 : f32 to vector<8x128xf32>
    %76 = arith.addf %74, %75 : vector<8x128xf32>
    %77 = arith.mulf %76, %64 : vector<8x128xf32>
    %cst_28 = arith.constant 2.000000e-06 : f32
    %78 = vector.broadcast %cst_28 : f32 to vector<8x128xf32>
    %79 = arith.addf %77, %78 : vector<8x128xf32>
    %80 = arith.mulf %13, %79 : vector<8x128xf32>
    %81 = math.absf %13 : vector<8x128xf32>
    %cst_29 = arith.constant 9.99999996E-13 : f32
    %82 = vector.broadcast %cst_29 : f32 to vector<8x128xf32>
    %83 = arith.addf %81, %82 : vector<8x128xf32>
    %cst_30 = arith.constant 1.65677883E-28 : f32
    %84 = vector.broadcast %cst_30 : f32 to vector<8x128xf32>
    %85 = arith.divf %84, %83 : vector<8x128xf32>
    %cst_31 = arith.constant 5.43656355E-8 : f32
    %86 = vector.broadcast %cst_31 : f32 to vector<8x128xf32>
    %87 = arith.addf %85, %86 : vector<8x128xf32>
    %88 = arith.subf %80, %72 : vector<8x128xf32>
    %c0_32 = arith.constant 0 : index
    %c0_33 = arith.constant 0 : index
    %c0_34 = arith.constant 0 : index
    %c0_35 = arith.constant 0 : index
    %c0_36 = arith.constant 0 : index
    %89 = vector.load %arg3[%c0_32, %c0_33, %c0_34, %c0_35, %c0_36] : memref<2x2x3x8x1xf32, #tpu.memory_space<vmem>>, vector<1x1x1x8x1xf32>
    %90 = vector.shape_cast %89 : vector<1x1x1x8x1xf32> to vector<8x1xf32>
    %91 = vector.broadcast %90 : vector<8x1xf32> to vector<8x128xf32>
    %92 = arith.mulf %38, %91 : vector<8x128xf32>
    %93 = arith.addf %22, %92 : vector<8x128xf32>
    %94 = math.absf %93 : vector<8x128xf32>
    %95 = arith.mulf %94, %37 : vector<8x128xf32>
    %96 = math.sqrt %95 : vector<8x128xf32>
    %c0_37 = arith.constant 0 : index
    %c0_38 = arith.constant 0 : index
    %c0_39 = arith.constant 0 : index
    %c0_40 = arith.constant 0 : index
    %c0_41 = arith.constant 0 : index
    %97 = vector.load %arg4[%c0_37, %c0_38, %c0_39, %c0_40, %c0_41] : memref<2x2x3x8x128xbf16, #tpu.memory_space<vmem>>, vector<1x1x1x8x128xbf16>
    %98 = vector.shape_cast %97 : vector<1x1x1x8x128xbf16> to vector<8x128xbf16>
    %99 = arith.extf %98 : vector<8x128xbf16> to vector<8x128xf32>
    %100 = arith.mulf %99, %96 : vector<8x128xf32>
    %101 = arith.addf %93, %100 : vector<8x128xf32>
    %c0_42 = arith.constant 0 : index
    %c0_43 = arith.constant 0 : index
    %c1 = arith.constant 1 : index
    %c0_44 = arith.constant 0 : index
    %c0_45 = arith.constant 0 : index
    %102 = vector.load %arg3[%c0_42, %c0_43, %c1, %c0_44, %c0_45] : memref<2x2x3x8x1xf32, #tpu.memory_space<vmem>>, vector<1x1x1x8x1xf32>
    %103 = vector.shape_cast %102 : vector<1x1x1x8x1xf32> to vector<8x1xf32>
    %104 = vector.broadcast %103 : vector<8x1xf32> to vector<8x128xf32>
    %105 = arith.mulf %63, %104 : vector<8x128xf32>
    %106 = arith.addf %47, %105 : vector<8x128xf32>
    %107 = math.absf %106 : vector<8x128xf32>
    %108 = arith.mulf %107, %62 : vector<8x128xf32>
    %109 = math.sqrt %108 : vector<8x128xf32>
    %c0_46 = arith.constant 0 : index
    %c0_47 = arith.constant 0 : index
    %c1_48 = arith.constant 1 : index
    %c0_49 = arith.constant 0 : index
    %c0_50 = arith.constant 0 : index
    %110 = vector.load %arg4[%c0_46, %c0_47, %c1_48, %c0_49, %c0_50] : memref<2x2x3x8x128xbf16, #tpu.memory_space<vmem>>, vector<1x1x1x8x128xbf16>
    %111 = vector.shape_cast %110 : vector<1x1x1x8x128xbf16> to vector<8x128xbf16>
    %112 = arith.extf %111 : vector<8x128xbf16> to vector<8x128xf32>
    %113 = arith.mulf %112, %109 : vector<8x128xf32>
    %114 = arith.addf %106, %113 : vector<8x128xf32>
    %115 = arith.addf %101, %114 : vector<8x128xf32>
    %c0_51 = arith.constant 0 : index
    %c0_52 = arith.constant 0 : index
    %c2 = arith.constant 2 : index
    %c0_53 = arith.constant 0 : index
    %c0_54 = arith.constant 0 : index
    %116 = vector.load %arg3[%c0_51, %c0_52, %c2, %c0_53, %c0_54] : memref<2x2x3x8x1xf32, #tpu.memory_space<vmem>>, vector<1x1x1x8x1xf32>
    %117 = vector.shape_cast %116 : vector<1x1x1x8x1xf32> to vector<8x1xf32>
    %118 = vector.broadcast %117 : vector<8x1xf32> to vector<8x128xf32>
    %119 = arith.mulf %88, %118 : vector<8x128xf32>
    %120 = arith.addf %72, %119 : vector<8x128xf32>
    %121 = math.absf %120 : vector<8x128xf32>
    %122 = arith.mulf %121, %87 : vector<8x128xf32>
    %123 = math.sqrt %122 : vector<8x128xf32>
    %c0_55 = arith.constant 0 : index
    %c0_56 = arith.constant 0 : index
    %c2_57 = arith.constant 2 : index
    %c0_58 = arith.constant 0 : index
    %c0_59 = arith.constant 0 : index
    %124 = vector.load %arg4[%c0_55, %c0_56, %c2_57, %c0_58, %c0_59] : memref<2x2x3x8x128xbf16, #tpu.memory_space<vmem>>, vector<1x1x1x8x128xbf16>
    %125 = vector.shape_cast %124 : vector<1x1x1x8x128xbf16> to vector<8x128xbf16>
    %126 = arith.extf %125 : vector<8x128xbf16> to vector<8x128xf32>
    %127 = arith.mulf %126, %123 : vector<8x128xf32>
    %128 = arith.addf %120, %127 : vector<8x128xf32>
    %129 = arith.addf %115, %128 : vector<8x128xf32>
    %c0_60 = arith.constant 0 : index
    %c1_61 = arith.constant 1 : index
    %c0_62 = arith.constant 0 : index
    %c0_63 = arith.constant 0 : index
    %c0_64 = arith.constant 0 : index
    %130 = vector.load %arg3[%c0_60, %c1_61, %c0_62, %c0_63, %c0_64] : memref<2x2x3x8x1xf32, #tpu.memory_space<vmem>>, vector<1x1x1x8x1xf32>
    %131 = vector.shape_cast %130 : vector<1x1x1x8x1xf32> to vector<8x1xf32>
    %132 = vector.broadcast %131 : vector<8x1xf32> to vector<8x128xf32>
    %133 = arith.mulf %38, %132 : vector<8x128xf32>
    %134 = arith.addf %22, %133 : vector<8x128xf32>
    %135 = math.absf %134 : vector<8x128xf32>
    %136 = arith.mulf %135, %37 : vector<8x128xf32>
    %137 = math.sqrt %136 : vector<8x128xf32>
    %c0_65 = arith.constant 0 : index
    %c1_66 = arith.constant 1 : index
    %c0_67 = arith.constant 0 : index
    %c0_68 = arith.constant 0 : index
    %c0_69 = arith.constant 0 : index
    %138 = vector.load %arg4[%c0_65, %c1_66, %c0_67, %c0_68, %c0_69] : memref<2x2x3x8x128xbf16, #tpu.memory_space<vmem>>, vector<1x1x1x8x128xbf16>
    %139 = vector.shape_cast %138 : vector<1x1x1x8x128xbf16> to vector<8x128xbf16>
    %140 = arith.extf %139 : vector<8x128xbf16> to vector<8x128xf32>
    %141 = arith.mulf %140, %137 : vector<8x128xf32>
    %142 = arith.addf %134, %141 : vector<8x128xf32>
    %c0_70 = arith.constant 0 : index
    %c1_71 = arith.constant 1 : index
    %c1_72 = arith.constant 1 : index
    %c0_73 = arith.constant 0 : index
    %c0_74 = arith.constant 0 : index
    %143 = vector.load %arg3[%c0_70, %c1_71, %c1_72, %c0_73, %c0_74] : memref<2x2x3x8x1xf32, #tpu.memory_space<vmem>>, vector<1x1x1x8x1xf32>
    %144 = vector.shape_cast %143 : vector<1x1x1x8x1xf32> to vector<8x1xf32>
    %145 = vector.broadcast %144 : vector<8x1xf32> to vector<8x128xf32>
    %146 = arith.mulf %63, %145 : vector<8x128xf32>
    %147 = arith.addf %47, %146 : vector<8x128xf32>
    %148 = math.absf %147 : vector<8x128xf32>
    %149 = arith.mulf %148, %62 : vector<8x128xf32>
    %150 = math.sqrt %149 : vector<8x128xf32>
    %c0_75 = arith.constant 0 : index
    %c1_76 = arith.constant 1 : index
    %c1_77 = arith.constant 1 : index
    %c0_78 = arith.constant 0 : index
    %c0_79 = arith.constant 0 : index
    %151 = vector.load %arg4[%c0_75, %c1_76, %c1_77, %c0_78, %c0_79] : memref<2x2x3x8x128xbf16, #tpu.memory_space<vmem>>, vector<1x1x1x8x128xbf16>
    %152 = vector.shape_cast %151 : vector<1x1x1x8x128xbf16> to vector<8x128xbf16>
    %153 = arith.extf %152 : vector<8x128xbf16> to vector<8x128xf32>
    %154 = arith.mulf %153, %150 : vector<8x128xf32>
    %155 = arith.addf %147, %154 : vector<8x128xf32>
    %156 = arith.addf %142, %155 : vector<8x128xf32>
    %c0_80 = arith.constant 0 : index
    %c1_81 = arith.constant 1 : index
    %c2_82 = arith.constant 2 : index
    %c0_83 = arith.constant 0 : index
    %c0_84 = arith.constant 0 : index
    %157 = vector.load %arg3[%c0_80, %c1_81, %c2_82, %c0_83, %c0_84] : memref<2x2x3x8x1xf32, #tpu.memory_space<vmem>>, vector<1x1x1x8x1xf32>
    %158 = vector.shape_cast %157 : vector<1x1x1x8x1xf32> to vector<8x1xf32>
    %159 = vector.broadcast %158 : vector<8x1xf32> to vector<8x128xf32>
    %160 = arith.mulf %88, %159 : vector<8x128xf32>
    %161 = arith.addf %72, %160 : vector<8x128xf32>
    %162 = math.absf %161 : vector<8x128xf32>
    %163 = arith.mulf %162, %87 : vector<8x128xf32>
    %164 = math.sqrt %163 : vector<8x128xf32>
    %c0_85 = arith.constant 0 : index
    %c1_86 = arith.constant 1 : index
    %c2_87 = arith.constant 2 : index
    %c0_88 = arith.constant 0 : index
    %c0_89 = arith.constant 0 : index
    %165 = vector.load %arg4[%c0_85, %c1_86, %c2_87, %c0_88, %c0_89] : memref<2x2x3x8x128xbf16, #tpu.memory_space<vmem>>, vector<1x1x1x8x128xbf16>
    %166 = vector.shape_cast %165 : vector<1x1x1x8x128xbf16> to vector<8x128xbf16>
    %167 = arith.extf %166 : vector<8x128xbf16> to vector<8x128xf32>
    %168 = arith.mulf %167, %164 : vector<8x128xf32>
    %169 = arith.addf %161, %168 : vector<8x128xf32>
    %170 = arith.addf %156, %169 : vector<8x128xf32>
    %171 = arith.subf %129, %170 : vector<8x128xf32>
    %cst_90 = arith.constant 2.560000e+06 : f32
    %172 = vector.broadcast %cst_90 : f32 to vector<8x128xf32>
    %173 = arith.mulf %171, %172 : vector<8x128xf32>
    %174 = math.roundeven %173 : vector<8x128xf32>
    %cst_91 = arith.constant -2.048000e+03 : f32
    %cst_92 = arith.constant 2.048000e+03 : f32
    %175 = vector.broadcast %cst_91 : f32 to vector<8x128xf32>
    %176 = arith.maximumf %175, %174 : vector<8x128xf32>
    %177 = vector.broadcast %cst_92 : f32 to vector<8x128xf32>
    %178 = arith.minimumf %177, %176 : vector<8x128xf32>
    %cst_93 = arith.constant 7.812500e-05 : f32
    %179 = vector.broadcast %cst_93 : f32 to vector<8x128xf32>
    %180 = arith.mulf %178, %179 : vector<8x128xf32>
    %c1_94 = arith.constant 1 : index
    %c0_95 = arith.constant 0 : index
    %c0_96 = arith.constant 0 : index
    %c0_97 = arith.constant 0 : index
    %c0_98 = arith.constant 0 : index
    %181 = vector.load %arg3[%c1_94, %c0_95, %c0_96, %c0_97, %c0_98] : memref<2x2x3x8x1xf32, #tpu.memory_space<vmem>>, vector<1x1x1x8x1xf32>
    %182 = vector.shape_cast %181 : vector<1x1x1x8x1xf32> to vector<8x1xf32>
    %183 = vector.broadcast %182 : vector<8x1xf32> to vector<8x128xf32>
    %184 = arith.mulf %38, %183 : vector<8x128xf32>
    %185 = arith.addf %22, %184 : vector<8x128xf32>
    %186 = math.absf %185 : vector<8x128xf32>
    %187 = arith.mulf %186, %37 : vector<8x128xf32>
    %188 = math.sqrt %187 : vector<8x128xf32>
    %c1_99 = arith.constant 1 : index
    %c0_100 = arith.constant 0 : index
    %c0_101 = arith.constant 0 : index
    %c0_102 = arith.constant 0 : index
    %c0_103 = arith.constant 0 : index
    %189 = vector.load %arg4[%c1_99, %c0_100, %c0_101, %c0_102, %c0_103] : memref<2x2x3x8x128xbf16, #tpu.memory_space<vmem>>, vector<1x1x1x8x128xbf16>
    %190 = vector.shape_cast %189 : vector<1x1x1x8x128xbf16> to vector<8x128xbf16>
    %191 = arith.extf %190 : vector<8x128xbf16> to vector<8x128xf32>
    %192 = arith.mulf %191, %188 : vector<8x128xf32>
    %193 = arith.addf %185, %192 : vector<8x128xf32>
    %c1_104 = arith.constant 1 : index
    %c0_105 = arith.constant 0 : index
    %c1_106 = arith.constant 1 : index
    %c0_107 = arith.constant 0 : index
    %c0_108 = arith.constant 0 : index
    %194 = vector.load %arg3[%c1_104, %c0_105, %c1_106, %c0_107, %c0_108] : memref<2x2x3x8x1xf32, #tpu.memory_space<vmem>>, vector<1x1x1x8x1xf32>
    %195 = vector.shape_cast %194 : vector<1x1x1x8x1xf32> to vector<8x1xf32>
    %196 = vector.broadcast %195 : vector<8x1xf32> to vector<8x128xf32>
    %197 = arith.mulf %63, %196 : vector<8x128xf32>
    %198 = arith.addf %47, %197 : vector<8x128xf32>
    %199 = math.absf %198 : vector<8x128xf32>
    %200 = arith.mulf %199, %62 : vector<8x128xf32>
    %201 = math.sqrt %200 : vector<8x128xf32>
    %c1_109 = arith.constant 1 : index
    %c0_110 = arith.constant 0 : index
    %c1_111 = arith.constant 1 : index
    %c0_112 = arith.constant 0 : index
    %c0_113 = arith.constant 0 : index
    %202 = vector.load %arg4[%c1_109, %c0_110, %c1_111, %c0_112, %c0_113] : memref<2x2x3x8x128xbf16, #tpu.memory_space<vmem>>, vector<1x1x1x8x128xbf16>
    %203 = vector.shape_cast %202 : vector<1x1x1x8x128xbf16> to vector<8x128xbf16>
    %204 = arith.extf %203 : vector<8x128xbf16> to vector<8x128xf32>
    %205 = arith.mulf %204, %201 : vector<8x128xf32>
    %206 = arith.addf %198, %205 : vector<8x128xf32>
    %207 = arith.addf %193, %206 : vector<8x128xf32>
    %c1_114 = arith.constant 1 : index
    %c0_115 = arith.constant 0 : index
    %c2_116 = arith.constant 2 : index
    %c0_117 = arith.constant 0 : index
    %c0_118 = arith.constant 0 : index
    %208 = vector.load %arg3[%c1_114, %c0_115, %c2_116, %c0_117, %c0_118] : memref<2x2x3x8x1xf32, #tpu.memory_space<vmem>>, vector<1x1x1x8x1xf32>
    %209 = vector.shape_cast %208 : vector<1x1x1x8x1xf32> to vector<8x1xf32>
    %210 = vector.broadcast %209 : vector<8x1xf32> to vector<8x128xf32>
    %211 = arith.mulf %88, %210 : vector<8x128xf32>
    %212 = arith.addf %72, %211 : vector<8x128xf32>
    %213 = math.absf %212 : vector<8x128xf32>
    %214 = arith.mulf %213, %87 : vector<8x128xf32>
    %215 = math.sqrt %214 : vector<8x128xf32>
    %c1_119 = arith.constant 1 : index
    %c0_120 = arith.constant 0 : index
    %c2_121 = arith.constant 2 : index
    %c0_122 = arith.constant 0 : index
    %c0_123 = arith.constant 0 : index
    %216 = vector.load %arg4[%c1_119, %c0_120, %c2_121, %c0_122, %c0_123] : memref<2x2x3x8x128xbf16, #tpu.memory_space<vmem>>, vector<1x1x1x8x128xbf16>
    %217 = vector.shape_cast %216 : vector<1x1x1x8x128xbf16> to vector<8x128xbf16>
    %218 = arith.extf %217 : vector<8x128xbf16> to vector<8x128xf32>
    %219 = arith.mulf %218, %215 : vector<8x128xf32>
    %220 = arith.addf %212, %219 : vector<8x128xf32>
    %221 = arith.addf %207, %220 : vector<8x128xf32>
    %c1_124 = arith.constant 1 : index
    %c1_125 = arith.constant 1 : index
    %c0_126 = arith.constant 0 : index
    %c0_127 = arith.constant 0 : index
    %c0_128 = arith.constant 0 : index
    %222 = vector.load %arg3[%c1_124, %c1_125, %c0_126, %c0_127, %c0_128] : memref<2x2x3x8x1xf32, #tpu.memory_space<vmem>>, vector<1x1x1x8x1xf32>
    %223 = vector.shape_cast %222 : vector<1x1x1x8x1xf32> to vector<8x1xf32>
    %224 = vector.broadcast %223 : vector<8x1xf32> to vector<8x128xf32>
    %225 = arith.mulf %38, %224 : vector<8x128xf32>
    %226 = arith.addf %22, %225 : vector<8x128xf32>
    %227 = math.absf %226 : vector<8x128xf32>
    %228 = arith.mulf %227, %37 : vector<8x128xf32>
    %229 = math.sqrt %228 : vector<8x128xf32>
    %c1_129 = arith.constant 1 : index
    %c1_130 = arith.constant 1 : index
    %c0_131 = arith.constant 0 : index
    %c0_132 = arith.constant 0 : index
    %c0_133 = arith.constant 0 : index
    %230 = vector.load %arg4[%c1_129, %c1_130, %c0_131, %c0_132, %c0_133] : memref<2x2x3x8x128xbf16, #tpu.memory_space<vmem>>, vector<1x1x1x8x128xbf16>
    %231 = vector.shape_cast %230 : vector<1x1x1x8x128xbf16> to vector<8x128xbf16>
    %232 = arith.extf %231 : vector<8x128xbf16> to vector<8x128xf32>
    %233 = arith.mulf %232, %229 : vector<8x128xf32>
    %234 = arith.addf %226, %233 : vector<8x128xf32>
    %c1_134 = arith.constant 1 : index
    %c1_135 = arith.constant 1 : index
    %c1_136 = arith.constant 1 : index
    %c0_137 = arith.constant 0 : index
    %c0_138 = arith.constant 0 : index
    %235 = vector.load %arg3[%c1_134, %c1_135, %c1_136, %c0_137, %c0_138] : memref<2x2x3x8x1xf32, #tpu.memory_space<vmem>>, vector<1x1x1x8x1xf32>
    %236 = vector.shape_cast %235 : vector<1x1x1x8x1xf32> to vector<8x1xf32>
    %237 = vector.broadcast %236 : vector<8x1xf32> to vector<8x128xf32>
    %238 = arith.mulf %63, %237 : vector<8x128xf32>
    %239 = arith.addf %47, %238 : vector<8x128xf32>
    %240 = math.absf %239 : vector<8x128xf32>
    %241 = arith.mulf %240, %62 : vector<8x128xf32>
    %242 = math.sqrt %241 : vector<8x128xf32>
    %c1_139 = arith.constant 1 : index
    %c1_140 = arith.constant 1 : index
    %c1_141 = arith.constant 1 : index
    %c0_142 = arith.constant 0 : index
    %c0_143 = arith.constant 0 : index
    %243 = vector.load %arg4[%c1_139, %c1_140, %c1_141, %c0_142, %c0_143] : memref<2x2x3x8x128xbf16, #tpu.memory_space<vmem>>, vector<1x1x1x8x128xbf16>
    %244 = vector.shape_cast %243 : vector<1x1x1x8x128xbf16> to vector<8x128xbf16>
    %245 = arith.extf %244 : vector<8x128xbf16> to vector<8x128xf32>
    %246 = arith.mulf %245, %242 : vector<8x128xf32>
    %247 = arith.addf %239, %246 : vector<8x128xf32>
    %248 = arith.addf %234, %247 : vector<8x128xf32>
    %c1_144 = arith.constant 1 : index
    %c1_145 = arith.constant 1 : index
    %c2_146 = arith.constant 2 : index
    %c0_147 = arith.constant 0 : index
    %c0_148 = arith.constant 0 : index
    %249 = vector.load %arg3[%c1_144, %c1_145, %c2_146, %c0_147, %c0_148] : memref<2x2x3x8x1xf32, #tpu.memory_space<vmem>>, vector<1x1x1x8x1xf32>
    %250 = vector.shape_cast %249 : vector<1x1x1x8x1xf32> to vector<8x1xf32>
    %251 = vector.broadcast %250 : vector<8x1xf32> to vector<8x128xf32>
    %252 = arith.mulf %88, %251 : vector<8x128xf32>
    %253 = arith.addf %72, %252 : vector<8x128xf32>
    %254 = math.absf %253 : vector<8x128xf32>
    %255 = arith.mulf %254, %87 : vector<8x128xf32>
    %256 = math.sqrt %255 : vector<8x128xf32>
    %c1_149 = arith.constant 1 : index
    %c1_150 = arith.constant 1 : index
    %c2_151 = arith.constant 2 : index
    %c0_152 = arith.constant 0 : index
    %c0_153 = arith.constant 0 : index
    %257 = vector.load %arg4[%c1_149, %c1_150, %c2_151, %c0_152, %c0_153] : memref<2x2x3x8x128xbf16, #tpu.memory_space<vmem>>, vector<1x1x1x8x128xbf16>
    %258 = vector.shape_cast %257 : vector<1x1x1x8x128xbf16> to vector<8x128xbf16>
    %259 = arith.extf %258 : vector<8x128xbf16> to vector<8x128xf32>
    %260 = arith.mulf %259, %256 : vector<8x128xf32>
    %261 = arith.addf %253, %260 : vector<8x128xf32>
    %262 = arith.addf %248, %261 : vector<8x128xf32>
    %263 = arith.subf %221, %262 : vector<8x128xf32>
    %cst_154 = arith.constant 2.560000e+06 : f32
    %264 = vector.broadcast %cst_154 : f32 to vector<8x128xf32>
    %265 = arith.mulf %263, %264 : vector<8x128xf32>
    %266 = math.roundeven %265 : vector<8x128xf32>
    %cst_155 = arith.constant -2.048000e+03 : f32
    %cst_156 = arith.constant 2.048000e+03 : f32
    %267 = vector.broadcast %cst_155 : f32 to vector<8x128xf32>
    %268 = arith.maximumf %267, %266 : vector<8x128xf32>
    %269 = vector.broadcast %cst_156 : f32 to vector<8x128xf32>
    %270 = arith.minimumf %269, %268 : vector<8x128xf32>
    %cst_157 = arith.constant 3.906250e-05 : f32
    %271 = vector.broadcast %cst_157 : f32 to vector<8x128xf32>
    %272 = arith.mulf %270, %271 : vector<8x128xf32>
    %273 = arith.addf %180, %272 : vector<8x128xf32>
    %c0_158 = arith.constant 0 : index
    %c0_159 = arith.constant 0 : index
    %274 = vector.load %arg5[%c0_158, %c0_159] : memref<8x1xf32, #tpu.memory_space<vmem>>, vector<8x1xf32>
    %275 = vector.broadcast %274 : vector<8x1xf32> to vector<8x128xf32>
    %276 = arith.addf %273, %275 : vector<8x128xf32>
    %c0_160 = arith.constant 0 : index
    %c0_161 = arith.constant 0 : index
    %c0_162 = arith.constant 0 : index
    %277 = vector.load %arg6[%c0_160, %c0_161, %c0_162] : memref<1x8x128xf32, #tpu.memory_space<vmem>>, vector<1x8x128xf32>
    %278 = vector.shape_cast %277 : vector<1x8x128xf32> to vector<8x128xf32>
    %279 = vector.shape_cast %276 : vector<8x128xf32> to vector<1x8x128xf32>
    tpu.vector_store %arg6[%c0_160, %c0_161, %c0_162], %279 {strides = array<i32>} : memref<1x8x128xf32, #tpu.memory_space<vmem>>, vector<1x8x128xf32>,
    return
  }
  func.func @transform_0(%arg0: i32, %arg1: i32) -> (i32, i32, i32) {
    %c0_i32 = arith.constant 0 : i32
    %c0_i32_0 = arith.constant 0 : i32
    return %arg1, %arg0, %c0_i32 : i32, i32, i32
  }
  func.func @transform_1(%arg0: i32, %arg1: i32) -> (i32, i32, i32, i32, i32) {
    %c0_i32 = arith.constant 0 : i32
    %c0_i32_0 = arith.constant 0 : i32
    %c0_i32_1 = arith.constant 0 : i32
    %c0_i32_2 = arith.constant 0 : i32
    %c0_i32_3 = arith.constant 0 : i32
    return %c0_i32, %c0_i32_0, %c0_i32_1, %arg0, %c0_i32_2 : i32, i32, i32, i32, i32
  }
  func.func @transform_2(%arg0: i32, %arg1: i32) -> (i32, i32, i32, i32, i32) {
    %c0_i32 = arith.constant 0 : i32
    %c0_i32_0 = arith.constant 0 : i32
    %c0_i32_1 = arith.constant 0 : i32
    %c0_i32_2 = arith.constant 0 : i32
    %c0_i32_3 = arith.constant 0 : i32
    return %c0_i32, %c0_i32_0, %c0_i32_1, %arg0, %c0_i32_2 : i32, i32, i32, i32, i32
  }
  func.func @transform_3(%arg0: i32, %arg1: i32) -> (i32, i32) {
    %c0_i32 = arith.constant 0 : i32
    %c0_i32_0 = arith.constant 0 : i32
    return %arg0, %c0_i32 : i32, i32
  }
  func.func @transform_4(%arg0: i32, %arg1: i32) -> (i32, i32, i32) {
    %c0_i32 = arith.constant 0 : i32
    %c0_i32_0 = arith.constant 0 : i32
    return %arg1, %arg0, %c0_i32 : i32, i32, i32
  }
}

module attributes {stable_mosaic.version = 11 : i64} {
  func.func @memristor_conv1d_kernel(%arg0: i32, %arg1: i32, %arg2: memref<1x8x130xf32, #tpu.memory_space<vmem>>, %arg3: memref<2x2x3x8x1xf32, #tpu.memory_space<vmem>>, %arg4: memref<2x2x3x8x128xbf16, #tpu.memory_space<vmem>>, %arg5: memref<8x1xf32, #tpu.memory_space<vmem>>, %arg6: memref<1x8x128xf32, #tpu.memory_space<vmem>>) attributes {dimension_semantics = [#tpu.dimension_semantics<parallel>, #tpu.dimension_semantics<parallel>], iteration_bounds = array<i64: 1, 2>, scalar_prefetch = 0 : i64, scratch_operands = 0 : i64, tpu.core_type = #tpu.core_type<tc>, window_params = [{transform_indices = @transform_0, window_bounds = array<i64: 1, 8, 130>}, {transform_indices = @transform_1, window_bounds = array<i64: 2, 2, 3, 8, 1>}, {transform_indices = @transform_2, window_bounds = array<i64: 2, 2, 3, 8, 128>}, {transform_indices = @transform_3, window_bounds = array<i64: 8, 1>}, {transform_indices = @transform_4, window_bounds = array<i64: 1, 8, 128>}]} {
    %c0 = arith.constant 0 : index
    %c0_0 = arith.constant 0 : index
    %c0_1 = arith.constant 0 : index
    %0 = vector.load %arg2[%c0, %c0_0, %c0_1] : memref<1x8x130xf32, #tpu.memory_space<vmem>>, vector<1x8x130xf32>
    %1 = vector.shape_cast %0 : vector<1x8x130xf32> to vector<8x130xf32>
    %cst = arith.constant 1.280000e+02 : f32
    %2 = vector.broadcast %cst : f32 to vector<8x130xf32>
    %3 = arith.mulf %1, %2 : vector<8x130xf32>
    %4 = math.roundeven %3 : vector<8x130xf32>
    %cst_2 = arith.constant -1.280000e+02 : f32
    %cst_3 = arith.constant 1.280000e+02 : f32
    %5 = vector.broadcast %cst_2 : f32 to vector<8x130xf32>
    %6 = arith.maximumf %5, %4 : vector<8x130xf32>
    %7 = vector.broadcast %cst_3 : f32 to vector<8x130xf32>
    %8 = arith.minimumf %7, %6 : vector<8x130xf32>
    %cst_4 = arith.constant 4.687500e-03 : f32
    %9 = vector.broadcast %cst_4 : f32 to vector<8x130xf32>
    %10 = arith.mulf %8, %9 : vector<8x130xf32>
    %11 = vector.extract_strided_slice %10 {offsets = [0, 0], sizes = [8, 128], strides = [1, 1]} : vector<8x130xf32> to vector<8x128xf32>
    %12 = vector.extract_strided_slice %10 {offsets = [0, 1], sizes = [8, 128], strides = [1, 1]} : vector<8x130xf32> to vector<8x128xf32>
    %13 = vector.extract_strided_slice %10 {offsets = [0, 2], sizes = [8, 128], strides = [1, 1]} : vector<8x130xf32> to vector<8x128xf32>
    %14 = arith.mulf %11, %11 : vector<8x128xf32>
    %cst_5 = arith.constant 9.99999997E-7 : f32
    %15 = vector.broadcast %cst_5 : f32 to vector<8x128xf32>
    %16 = arith.mulf %15, %14 : vector<8x128xf32>
    %cst_6 = arith.constant 9.99999974E-6 : f32
    %17 = vector.broadcast %cst_6 : f32 to vector<8x128xf32>
    %18 = arith.addf %16, %17 : vector<8x128xf32>
    %19 = arith.mulf %18, %14 : vector<8x128xf32>
    %cst_7 = arith.constant 2.000000e-04 : f32
    %20 = vector.broadcast %cst_7 : f32 to vector<8x128xf32>
    %21 = arith.addf %19, %20 : vector<8x128xf32>
    %22 = arith.mulf %11, %21 : vector<8x128xf32>
    %cst_8 = arith.constant 9.99999993E-9 : f32
    %23 = vector.broadcast %cst_8 : f32 to vector<8x128xf32>
    %24 = arith.mulf %23, %14 : vector<8x128xf32>
    %cst_9 = arith.constant 1.000000e-07 : f32
    %25 = vector.broadcast %cst_9 : f32 to vector<8x128xf32>
    %26 = arith.addf %24, %25 : vector<8x128xf32>
    %27 = arith.mulf %26, %14 : vector<8x128xf32>
    %cst_10 = arith.constant 2.000000e-06 : f32
    %28 = vector.broadcast %cst_10 : f32 to vector<8x128xf32>
    %29 = arith.addf %27, %28 : vector<8x128xf32>
    %30 = arith.mulf %11, %29 : vector<8x128xf32>
    %31 = math.absf %11 : vector<8x128xf32>
    %cst_11 = arith.constant 9.99999996E-13 : f32
    %32 = vector.broadcast %cst_11 : f32 to vector<8x128xf32>
    %33 = arith.addf %31, %32 : vector<8x128xf32>
    %cst_12 = arith.constant 1.65677883E-28 : f32
    %34 = vector.broadcast %cst_12 : f32 to vector<8x128xf32>
    %35 = arith.divf %34, %33 : vector<8x128xf32>
    %cst_13 = arith.constant 5.43656355E-8 : f32
    %36 = vector.broadcast %cst_13 : f32 to vector<8x128xf32>
    %37 = arith.addf %35, %36 : vector<8x128xf32>
    %38 = arith.subf %30, %22 : vector<8x128xf32>
    %39 = arith.mulf %12, %12 : vector<8x128xf32>
    %cst_14 = arith.constant 9.99999997E-7 : f32
    %40 = vector.broadcast %cst_14 : f32 to vector<8x128xf32>
    %41 = arith.mulf %40, %39 : vector<8x128xf32>
    %cst_15 = arith.constant 9.99999974E-6 : f32
    %42 = vector.broadcast %cst_15 : f32 to vector<8x128xf32>
    %43 = arith.addf %41, %42 : vector<8x128xf32>
    %44 = arith.mulf %43, %39 : vector<8x128xf32>
    %cst_16 = arith.constant 2.000000e-04 : f32
    %45 = vector.broadcast %cst_16 : f32 to vector<8x128xf32>
    %46 = arith.addf %44, %45 : vector<8x128xf32>
    %47 = arith.mulf %12, %46 : vector<8x128xf32>
    %cst_17 = arith.constant 9.99999993E-9 : f32
    %48 = vector.broadcast %cst_17 : f32 to vector<8x128xf32>
    %49 = arith.mulf %48, %39 : vector<8x128xf32>
    %cst_18 = arith.constant 1.000000e-07 : f32
    %50 = vector.broadcast %cst_18 : f32 to vector<8x128xf32>
    %51 = arith.addf %49, %50 : vector<8x128xf32>
    %52 = arith.mulf %51, %39 : vector<8x128xf32>
    %cst_19 = arith.constant 2.000000e-06 : f32
    %53 = vector.broadcast %cst_19 : f32 to vector<8x128xf32>
    %54 = arith.addf %52, %53 : vector<8x128xf32>
    %55 = arith.mulf %12, %54 : vector<8x128xf32>
    %56 = math.absf %12 : vector<8x128xf32>
    %cst_20 = arith.constant 9.99999996E-13 : f32
    %57 = vector.broadcast %cst_20 : f32 to vector<8x128xf32>
    %58 = arith.addf %56, %57 : vector<8x128xf32>
    %cst_21 = arith.constant 1.65677883E-28 : f32
    %59 = vector.broadcast %cst_21 : f32 to vector<8x128xf32>
    %60 = arith.divf %59, %58 : vector<8x128xf32>
    %cst_22 = arith.constant 5.43656355E-8 : f32
    %61 = vector.broadcast %cst_22 : f32 to vector<8x128xf32>
    %62 = arith.addf %60, %61 : vector<8x128xf32>
    %63 = arith.subf %55, %47 : vector<8x128xf32>
    %64 = arith.mulf %13, %13 : vector<8x128xf32>
    %cst_23 = arith.constant 9.99999997E-7 : f32
    %65 = vector.broadcast %cst_23 : f32 to vector<8x128xf32>
    %66 = arith.mulf %65, %64 : vector<8x128xf32>
    %cst_24 = arith.constant 9.99999974E-6 : f32
    %67 = vector.broadcast %cst_24 : f32 to vector<8x128xf32>
    %68 = arith.addf %66, %67 : vector<8x128xf32>
    %69 = arith.mulf %68, %64 : vector<8x128xf32>
    %cst_25 = arith.constant 2.000000e-04 : f32
    %70 = vector.broadcast %cst_25 : f32 to vector<8x128xf32>
    %71 = arith.addf %69, %70 : vector<8x128xf32>
    %72 = arith.mulf %13, %71 : vector<8x128xf32>
    %cst_26 = arith.constant 9.99999993E-9 : f32
    %73 = vector.broadcast %cst_26 : f32 to vector<8x128xf32>
    %74 = arith.mulf %73, %64 : vector<8x128xf32>
    %cst_27 = arith.constant 1.000000e-07 : f32
    %75 = vector.broadcast %cst_27 : f32 to vector<8x128xf32>
    %76 = arith.addf %74, %75 : vector<8x128xf32>
    %77 = arith.mulf %76, %64 : vector<8x128xf32>
    %cst_28 = arith.constant 2.000000e-06 : f32
    %78 = vector.broadcast %cst_28 : f32 to vector<8x128xf32>
    %79 = arith.addf %77, %78 : vector<8x128xf32>
    %80 = arith.mulf %13, %79 : vector<8x128xf32>
    %81 = math.absf %13 : vector<8x128xf32>
    %cst_29 = arith.constant 9.99999996E-13 : f32
    %82 = vector.broadcast %cst_29 : f32 to vector<8x128xf32>
    %83 = arith.addf %81, %82 : vector<8x128xf32>
    %cst_30 = arith.constant 1.65677883E-28 : f32
    %84 = vector.broadcast %cst_30 : f32 to vector<8x128xf32>
    %85 = arith.divf %84, %83 : vector<8x128xf32>
    %cst_31 = arith.constant 5.43656355E-8 : f32
    %86 = vector.broadcast %cst_31 : f32 to vector<8x128xf32>
    %87 = arith.addf %85, %86 : vector<8x128xf32>
    %88 = arith.subf %80, %72 : vector<8x128xf32>
    %c0_32 = arith.constant 0 : index
    %c0_33 = arith.constant 0 : index
    %c0_34 = arith.constant 0 : index
    %c0_35 = arith.constant 0 : index
    %c0_36 = arith.constant 0 : index
    %89 = vector.load %arg3[%c0_32, %c0_33, %c0_34, %c0_35, %c0_36] : memref<2x2x3x8x1xf32, #tpu.memory_space<vmem>>, vector<1x1x1x8x1xf32>
    %90 = vector.shape_cast %89 : vector<1x1x1x8x1xf32> to vector<8x1xf32>
    %91 = vector.broadcast %90 : vector<8x1xf32> to vector<8x128xf32>
    %92 = arith.mulf %38, %91 : vector<8x128xf32>
    %93 = arith.addf %22, %92 : vector<8x128xf32>
    %94 = math.absf %93 : vector<8x128xf32>
    %95 = arith.mulf %94, %37 : vector<8x128xf32>
    %96 = math.sqrt %95 : vector<8x128xf32>
    %c0_37 = arith.constant 0 : index
    %c0_38 = arith.constant 0 : index
    %c0_39 = arith.constant 0 : index
    %c0_40 = arith.constant 0 : index
    %c0_41 = arith.constant 0 : index
    %97 = vector.load %arg4[%c0_37, %c0_38, %c0_39, %c0_40, %c0_41] : memref<2x2x3x8x128xbf16, #tpu.memory_space<vmem>>, vector<1x1x1x8x128xbf16>
    %98 = vector.shape_cast %97 : vector<1x1x1x8x128xbf16> to vector<8x128xbf16>
    %99 = arith.extf %98 : vector<8x128xbf16> to vector<8x128xf32>
    %100 = arith.mulf %99, %96 : vector<8x128xf32>
    %101 = arith.addf %93, %100 : vector<8x128xf32>
    %c0_42 = arith.constant 0 : index
    %c0_43 = arith.constant 0 : index
    %c1 = arith.constant 1 : index
    %c0_44 = arith.constant 0 : index
    %c0_45 = arith.constant 0 : index
    %102 = vector.load %arg3[%c0_42, %c0_43, %c1, %c0_44, %c0_45] : memref<2x2x3x8x1xf32, #tpu.memory_space<vmem>>, vector<1x1x1x8x1xf32>
    %103 = vector.shape_cast %102 : vector<1x1x1x8x1xf32> to vector<8x1xf32>
    %104 = vector.broadcast %103 : vector<8x1xf32> to vector<8x128xf32>
    %105 = arith.mulf %63, %104 : vector<8x128xf32>
    %106 = arith.addf %47, %105 : vector<8x128xf32>
    %107 = math.absf %106 : vector<8x128xf32>
    %108 = arith.mulf %107, %62 : vector<8x128xf32>
    %109 = math.sqrt %108 : vector<8x128xf32>
    %c0_46 = arith.constant 0 : index
    %c0_47 = arith.constant 0 : index
    %c1_48 = arith.constant 1 : index
    %c0_49 = arith.constant 0 : index
    %c0_50 = arith.constant 0 : index
    %110 = vector.load %arg4[%c0_46, %c0_47, %c1_48, %c0_49, %c0_50] : memref<2x2x3x8x128xbf16, #tpu.memory_space<vmem>>, vector<1x1x1x8x128xbf16>
    %111 = vector.shape_cast %110 : vector<1x1x1x8x128xbf16> to vector<8x128xbf16>
    %112 = arith.extf %111 : vector<8x128xbf16> to vector<8x128xf32>
    %113 = arith.mulf %112, %109 : vector<8x128xf32>
    %114 = arith.addf %106, %113 : vector<8x128xf32>
    %115 = arith.addf %101, %114 : vector<8x128xf32>
    %c0_51 = arith.constant 0 : index
    %c0_52 = arith.constant 0 : index
    %c2 = arith.constant 2 : index
    %c0_53 = arith.constant 0 : index
    %c0_54 = arith.constant 0 : index
    %116 = vector.load %arg3[%c0_51, %c0_52, %c2, %c0_53, %c0_54] : memref<2x2x3x8x1xf32, #tpu.memory_space<vmem>>, vector<1x1x1x8x1xf32>
    %117 = vector.shape_cast %116 : vector<1x1x1x8x1xf32> to vector<8x1xf32>
    %118 = vector.broadcast %117 : vector<8x1xf32> to vector<8x128xf32>
    %119 = arith.mulf %88, %118 : vector<8x128xf32>
    %120 = arith.addf %72, %119 : vector<8x128xf32>
    %121 = math.absf %120 : vector<8x128xf32>
    %122 = arith.mulf %121, %87 : vector<8x128xf32>
    %123 = math.sqrt %122 : vector<8x128xf32>
    %c0_55 = arith.constant 0 : index
    %c0_56 = arith.constant 0 : index
    %c2_57 = arith.constant 2 : index
    %c0_58 = arith.constant 0 : index
    %c0_59 = arith.constant 0 : index
    %124 = vector.load %arg4[%c0_55, %c0_56, %c2_57, %c0_58, %c0_59] : memref<2x2x3x8x128xbf16, #tpu.memory_space<vmem>>, vector<1x1x1x8x128xbf16>
    %125 = vector.shape_cast %124 : vector<1x1x1x8x128xbf16> to vector<8x128xbf16>
    %126 = arith.extf %125 : vector<8x128xbf16> to vector<8x128xf32>
    %127 = arith.mulf %126, %123 : vector<8x128xf32>
    %128 = arith.addf %120, %127 : vector<8x128xf32>
    %129 = arith.addf %115, %128 : vector<8x128xf32>
    %c0_60 = arith.constant 0 : index
    %c1_61 = arith.constant 1 : index
    %c0_62 = arith.constant 0 : index
    %c0_63 = arith.constant 0 : index
    %c0_64 = arith.constant 0 : index
    %130 = vector.load %arg3[%c0_60, %c1_61, %c0_62, %c0_63, %c0_64] : memref<2x2x3x8x1xf32, #tpu.memory_space<vmem>>, vector<1x1x1x8x1xf32>
    %131 = vector.shape_cast %130 : vector<1x1x1x8x1xf32> to vector<8x1xf32>
    %132 = vector.broadcast %131 : vector<8x1xf32> to vector<8x128xf32>
    %133 = arith.mulf %38, %132 : vector<8x128xf32>
    %134 = arith.addf %22, %133 : vector<8x128xf32>
    %135 = math.absf %134 : vector<8x128xf32>
    %136 = arith.mulf %135, %37 : vector<8x128xf32>
    %137 = math.sqrt %136 : vector<8x128xf32>
    %c0_65 = arith.constant 0 : index
    %c1_66 = arith.constant 1 : index
    %c0_67 = arith.constant 0 : index
    %c0_68 = arith.constant 0 : index
    %c0_69 = arith.constant 0 : index
    %138 = vector.load %arg4[%c0_65, %c1_66, %c0_67, %c0_68, %c0_69] : memref<2x2x3x8x128xbf16, #tpu.memory_space<vmem>>, vector<1x1x1x8x128xbf16>
    %139 = vector.shape_cast %138 : vector<1x1x1x8x128xbf16> to vector<8x128xbf16>
    %140 = arith.extf %139 : vector<8x128xbf16> to vector<8x128xf32>
    %141 = arith.mulf %140, %137 : vector<8x128xf32>
    %142 = arith.addf %134, %141 : vector<8x128xf32>
    %c0_70 = arith.constant 0 : index
    %c1_71 = arith.constant 1 : index
    %c1_72 = arith.constant 1 : index
    %c0_73 = arith.constant 0 : index
    %c0_74 = arith.constant 0 : index
    %143 = vector.load %arg3[%c0_70, %c1_71, %c1_72, %c0_73, %c0_74] : memref<2x2x3x8x1xf32, #tpu.memory_space<vmem>>, vector<1x1x1x8x1xf32>
    %144 = vector.shape_cast %143 : vector<1x1x1x8x1xf32> to vector<8x1xf32>
    %145 = vector.broadcast %144 : vector<8x1xf32> to vector<8x128xf32>
    %146 = arith.mulf %63, %145 : vector<8x128xf32>
    %147 = arith.addf %47, %146 : vector<8x128xf32>
    %148 = math.absf %147 : vector<8x128xf32>
    %149 = arith.mulf %148, %62 : vector<8x128xf32>
    %150 = math.sqrt %149 : vector<8x128xf32>
    %c0_75 = arith.constant 0 : index
    %c1_76 = arith.constant 1 : index
    %c1_77 = arith.constant 1 : index
    %c0_78 = arith.constant 0 : index
    %c0_79 = arith.constant 0 : index
    %151 = vector.load %arg4[%c0_75, %c1_76, %c1_77, %c0_78, %c0_79] : memref<2x2x3x8x128xbf16, #tpu.memory_space<vmem>>, vector<1x1x1x8x128xbf16>
    %152 = vector.shape_cast %151 : vector<1x1x1x8x128xbf16> to vector<8x128xbf16>
    %153 = arith.extf %152 : vector<8x128xbf16> to vector<8x128xf32>
    %154 = arith.mulf %153, %150 : vector<8x128xf32>
    %155 = arith.addf %147, %154 : vector<8x128xf32>
    %156 = arith.addf %142, %155 : vector<8x128xf32>
    %c0_80 = arith.constant 0 : index
    %c1_81 = arith.constant 1 : index
    %c2_82 = arith.constant 2 : index
    %c0_83 = arith.constant 0 : index
    %c0_84 = arith.constant 0 : index
    %157 = vector.load %arg3[%c0_80, %c1_81, %c2_82, %c0_83, %c0_84] : memref<2x2x3x8x1xf32, #tpu.memory_space<vmem>>, vector<1x1x1x8x1xf32>
    %158 = vector.shape_cast %157 : vector<1x1x1x8x1xf32> to vector<8x1xf32>
    %159 = vector.broadcast %158 : vector<8x1xf32> to vector<8x128xf32>
    %160 = arith.mulf %88, %159 : vector<8x128xf32>
    %161 = arith.addf %72, %160 : vector<8x128xf32>
    %162 = math.absf %161 : vector<8x128xf32>
    %163 = arith.mulf %162, %87 : vector<8x128xf32>
    %164 = math.sqrt %163 : vector<8x128xf32>
    %c0_85 = arith.constant 0 : index
    %c1_86 = arith.constant 1 : index
    %c2_87 = arith.constant 2 : index
    %c0_88 = arith.constant 0 : index
    %c0_89 = arith.constant 0 : index
    %165 = vector.load %arg4[%c0_85, %c1_86, %c2_87, %c0_88, %c0_89] : memref<2x2x3x8x128xbf16, #tpu.memory_space<vmem>>, vector<1x1x1x8x128xbf16>
    %166 = vector.shape_cast %165 : vector<1x1x1x8x128xbf16> to vector<8x128xbf16>
    %167 = arith.extf %166 : vector<8x128xbf16> to vector<8x128xf32>
    %168 = arith.mulf %167, %164 : vector<8x128xf32>
    %169 = arith.addf %161, %168 : vector<8x128xf32>
    %170 = arith.addf %156, %169 : vector<8x128xf32>
    %171 = arith.subf %129, %170 : vector<8x128xf32>
    %cst_90 = arith.constant 2.560000e+06 : f32
    %172 = vector.broadcast %cst_90 : f32 to vector<8x128xf32>
    %173 = arith.mulf %171, %172 : vector<8x128xf32>
    %174 = math.roundeven %173 : vector<8x128xf32>
    %cst_91 = arith.constant -2.048000e+03 : f32
    %cst_92 = arith.constant 2.048000e+03 : f32
    %175 = vector.broadcast %cst_91 : f32 to vector<8x128xf32>
    %176 = arith.maximumf %175, %174 : vector<8x128xf32>
    %177 = vector.broadcast %cst_92 : f32 to vector<8x128xf32>
    %178 = arith.minimumf %177, %176 : vector<8x128xf32>
    %cst_93 = arith.constant 7.812500e-05 : f32
    %179 = vector.broadcast %cst_93 : f32 to vector<8x128xf32>
    %180 = arith.mulf %178, %179 : vector<8x128xf32>
    %c1_94 = arith.constant 1 : index
    %c0_95 = arith.constant 0 : index
    %c0_96 = arith.constant 0 : index
    %c0_97 = arith.constant 0 : index
    %c0_98 = arith.constant 0 : index
    %181 = vector.load %arg3[%c1_94, %c0_95, %c0_96, %c0_97, %c0_98] : memref<2x2x3x8x1xf32, #tpu.memory_space<vmem>>, vector<1x1x1x8x1xf32>
    %182 = vector.shape_cast %181 : vector<1x1x1x8x1xf32> to vector<8x1xf32>
    %183 = vector.broadcast %182 : vector<8x1xf32> to vector<8x128xf32>
    %184 = arith.mulf %38, %183 : vector<8x128xf32>
    %185 = arith.addf %22, %184 : vector<8x128xf32>
    %186 = math.absf %185 : vector<8x128xf32>
    %187 = arith.mulf %186, %37 : vector<8x128xf32>
    %188 = math.sqrt %187 : vector<8x128xf32>
    %c1_99 = arith.constant 1 : index
    %c0_100 = arith.constant 0 : index
    %c0_101 = arith.constant 0 : index
    %c0_102 = arith.constant 0 : index
    %c0_103 = arith.constant 0 : index
    %189 = vector.load %arg4[%c1_99, %c0_100, %c0_101, %c0_102, %c0_103] : memref<2x2x3x8x128xbf16, #tpu.memory_space<vmem>>, vector<1x1x1x8x128xbf16>
    %190 = vector.shape_cast %189 : vector<1x1x1x8x128xbf16> to vector<8x128xbf16>
    %191 = arith.extf %190 : vector<8x128xbf16> to vector<8x128xf32>
    %192 = arith.mulf %191, %188 : vector<8x128xf32>
    %193 = arith.addf %185, %192 : vector<8x128xf32>
    %c1_104 = arith.constant 1 : index
    %c0_105 = arith.constant 0 : index
    %c1_106 = arith.constant 1 : index
    %c0_107 = arith.constant 0 : index
    %c0_108 = arith.constant 0 : index
    %194 = vector.load %arg3[%c1_104, %c0_105, %c1_106, %c0_107, %c0_108] : memref<2x2x3x8x1xf32, #tpu.memory_space<vmem>>, vector<1x1x1x8x1xf32>
    %195 = vector.shape_cast %194 : vector<1x1x1x8x1xf32> to vector<8x1xf32>
    %196 = vector.broadcast %195 : vector<8x1xf32> to vector<8x128xf32>
    %197 = arith.mulf %63, %196 : vector<8x128xf32>
    %198 = arith.addf %47, %197 : vector<8x128xf32>
    %199 = math.absf %198 : vector<8x128xf32>
    %200 = arith.mulf %199, %62 : vector<8x128xf32>
    %201 = math.sqrt %200 : vector<8x128xf32>
    %c1_109 = arith.constant 1 : index
    %c0_110 = arith.constant 0 : index
    %c1_111 = arith.constant 1 : index
    %c0_112 = arith.constant 0 : index
    %c0_113 = arith.constant 0 : index
    %202 = vector.load %arg4[%c1_109, %c0_110, %c1_111, %c0_112, %c0_113] : memref<2x2x3x8x128xbf16, #tpu.memory_space<vmem>>, vector<1x1x1x8x128xbf16>
    %203 = vector.shape_cast %202 : vector<1x1x1x8x128xbf16> to vector<8x128xbf16>
    %204 = arith.extf %203 : vector<8x128xbf16> to vector<8x128xf32>
    %205 = arith.mulf %204, %201 : vector<8x128xf32>
    %206 = arith.addf %198, %205 : vector<8x128xf32>
    %207 = arith.addf %193, %206 : vector<8x128xf32>
    %c1_114 = arith.constant 1 : index
    %c0_115 = arith.constant 0 : index
    %c2_116 = arith.constant 2 : index
    %c0_117 = arith.constant 0 : index
    %c0_118 = arith.constant 0 : index
    %208 = vector.load %arg3[%c1_114, %c0_115, %c2_116, %c0_117, %c0_118] : memref<2x2x3x8x1xf32, #tpu.memory_space<vmem>>, vector<1x1x1x8x1xf32>
    %209 = vector.shape_cast %208 : vector<1x1x1x8x1xf32> to vector<8x1xf32>
    %210 = vector.broadcast %209 : vector<8x1xf32> to vector<8x128xf32>
    %211 = arith.mulf %88, %210 : vector<8x128xf32>
    %212 = arith.addf %72, %211 : vector<8x128xf32>
    %213 = math.absf %212 : vector<8x128xf32>
    %214 = arith.mulf %213, %87 : vector<8x128xf32>
    %215 = math.sqrt %214 : vector<8x128xf32>
    %c1_119 = arith.constant 1 : index
    %c0_120 = arith.constant 0 : index
    %c2_121 = arith.constant 2 : index
    %c0_122 = arith.constant 0 : index
    %c0_123 = arith.constant 0 : index
    %216 = vector.load %arg4[%c1_119, %c0_120, %c2_121, %c0_122, %c0_123] : memref<2x2x3x8x128xbf16, #tpu.memory_space<vmem>>, vector<1x1x1x8x128xbf16>
    %217 = vector.shape_cast %216 : vector<1x1x1x8x128xbf16> to vector<8x128xbf16>
    %218 = arith.extf %217 : vector<8x128xbf16> to vector<8x128xf32>
    %219 = arith.mulf %218, %215 : vector<8x128xf32>
    %220 = arith.addf %212, %219 : vector<8x128xf32>
    %221 = arith.addf %207, %220 : vector<8x128xf32>
    %c1_124 = arith.constant 1 : index
    %c1_125 = arith.constant 1 : index
    %c0_126 = arith.constant 0 : index
    %c0_127 = arith.constant 0 : index
    %c0_128 = arith.constant 0 : index
    %222 = vector.load %arg3[%c1_124, %c1_125, %c0_126, %c0_127, %c0_128] : memref<2x2x3x8x1xf32, #tpu.memory_space<vmem>>, vector<1x1x1x8x1xf32>
    %223 = vector.shape_cast %222 : vector<1x1x1x8x1xf32> to vector<8x1xf32>
    %224 = vector.broadcast %223 : vector<8x1xf32> to vector<8x128xf32>
    %225 = arith.mulf %38, %224 : vector<8x128xf32>
    %226 = arith.addf %22, %225 : vector<8x128xf32>
    %227 = math.absf %226 : vector<8x128xf32>
    %228 = arith.mulf %227, %37 : vector<8x128xf32>
    %229 = math.sqrt %228 : vector<8x128xf32>
    %c1_129 = arith.constant 1 : index
    %c1_130 = arith.constant 1 : index
    %c0_131 = arith.constant 0 : index
    %c0_132 = arith.constant 0 : index
    %c0_133 = arith.constant 0 : index
    %230 = vector.load %arg4[%c1_129, %c1_130, %c0_131, %c0_132, %c0_133] : memref<2x2x3x8x128xbf16, #tpu.memory_space<vmem>>, vector<1x1x1x8x128xbf16>
    %231 = vector.shape_cast %230 : vector<1x1x1x8x128xbf16> to vector<8x128xbf16>
    %232 = arith.extf %231 : vector<8x128xbf16> to vector<8x128xf32>
    %233 = arith.mulf %232, %229 : vector<8x128xf32>
    %234 = arith.addf %226, %233 : vector<8x128xf32>
    %c1_134 = arith.constant 1 : index
    %c1_135 = arith.constant 1 : index
    %c1_136 = arith.constant 1 : index
    %c0_137 = arith.constant 0 : index
    %c0_138 = arith.constant 0 : index
    %235 = vector.load %arg3[%c1_134, %c1_135, %c1_136, %c0_137, %c0_138] : memref<2x2x3x8x1xf32, #tpu.memory_space<vmem>>, vector<1x1x1x8x1xf32>
    %236 = vector.shape_cast %235 : vector<1x1x1x8x1xf32> to vector<8x1xf32>
    %237 = vector.broadcast %236 : vector<8x1xf32> to vector<8x128xf32>
    %238 = arith.mulf %63, %237 : vector<8x128xf32>
    %239 = arith.addf %47, %238 : vector<8x128xf32>
    %240 = math.absf %239 : vector<8x128xf32>
    %241 = arith.mulf %240, %62 : vector<8x128xf32>
    %242 = math.sqrt %241 : vector<8x128xf32>
    %c1_139 = arith.constant 1 : index
    %c1_140 = arith.constant 1 : index
    %c1_141 = arith.constant 1 : index
    %c0_142 = arith.constant 0 : index
    %c0_143 = arith.constant 0 : index
    %243 = vector.load %arg4[%c1_139, %c1_140, %c1_141, %c0_142, %c0_143] : memref<2x2x3x8x128xbf16, #tpu.memory_space<vmem>>, vector<1x1x1x8x128xbf16>
    %244 = vector.shape_cast %243 : vector<1x1x1x8x128xbf16> to vector<8x128xbf16>
    %245 = arith.extf %244 : vector<8x128xbf16> to vector<8x128xf32>
    %246 = arith.mulf %245, %242 : vector<8x128xf32>
    %247 = arith.addf %239, %246 : vector<8x128xf32>
    %248 = arith.addf %234, %247 : vector<8x128xf32>
    %c1_144 = arith.constant 1 : index
    %c1_145 = arith.constant 1 : index
    %c2_146 = arith.constant 2 : index
    %c0_147 = arith.constant 0 : index
    %c0_148 = arith.constant 0 : index
    %249 = vector.load %arg3[%c1_144, %c1_145, %c2_146, %c0_147, %c0_148] : memref<2x2x3x8x1xf32, #tpu.memory_space<vmem>>, vector<1x1x1x8x1xf32>
    %250 = vector.shape_cast %249 : vector<1x1x1x8x1xf32> to vector<8x1xf32>
    %251 = vector.broadcast %250 : vector<8x1xf32> to vector<8x128xf32>
    %252 = arith.mulf %88, %251 : vector<8x128xf32>
    %253 = arith.addf %72, %252 : vector<8x128xf32>
    %254 = math.absf %253 : vector<8x128xf32>
    %255 = arith.mulf %254, %87 : vector<8x128xf32>
    %256 = math.sqrt %255 : vector<8x128xf32>
    %c1_149 = arith.constant 1 : index
    %c1_150 = arith.constant 1 : index
    %c2_151 = arith.constant 2 : index
    %c0_152 = arith.constant 0 : index
    %c0_153 = arith.constant 0 : index
    %257 = vector.load %arg4[%c1_149, %c1_150, %c2_151, %c0_152, %c0_153] : memref<2x2x3x8x128xbf16, #tpu.memory_space<vmem>>, vector<1x1x1x8x128xbf16>
    %258 = vector.shape_cast %257 : vector<1x1x1x8x128xbf16> to vector<8x128xbf16>
    %259 = arith.extf %258 : vector<8x128xbf16> to vector<8x128xf32>
    %260 = arith.mulf %259, %256 : vector<8x128xf32>
    %261 = arith.addf %253, %260 : vector<8x128xf32>
    %262 = arith.addf %248, %261 : vector<8x128xf32>
    %263 = arith.subf %221, %262 : vector<8x128xf32>
    %cst_154 = arith.constant 2.560000e+06 : f32
    %264 = vector.broadcast %cst_154 : f32 to vector<8x128xf32>
    %265 = arith.mulf %263, %264 : vector<8x128xf32>
    %266 = math.roundeven %265 : vector<8x128xf32>
    %cst_155 = arith.constant -2.048000e+03 : f32
    %cst_156 = arith.constant 2.048000e+03 : f32
    %267 = vector.broadcast %cst_155 : f32 to vector<8x128xf32>
    %268 = arith.maximumf %267, %266 : vector<8x128xf32>
    %269 = vector.broadcast %cst_156 : f32 to vector<8x128xf32>
    %270 = arith.minimumf %269, %268 : vector<8x128xf32>
    %cst_157 = arith.constant 3.906250e-05 : f32
    %271 = vector.broadcast %cst_157 : f32 to vector<8x128xf32>
    %272 = arith.mulf %270, %271 : vector<8x128xf32>
    %273 = arith.addf %180, %272 : vector<8x128xf32>
    %c0_158 = arith.constant 0 : index
    %c0_159 = arith.constant 0 : index
    %274 = vector.load %arg5[%c0_158, %c0_159] : memref<8x1xf32, #tpu.memory_space<vmem>>, vector<8x1xf32>
    %275 = vector.broadcast %274 : vector<8x1xf32> to vector<8x128xf32>
    %276 = arith.addf %273, %275 : vector<8x128xf32>
    %c0_160 = arith.constant 0 : index
    %c0_161 = arith.constant 0 : index
    %c0_162 = arith.constant 0 : index
    %277 = vector.load %arg6[%c0_160, %c0_161, %c0_162] : memref<1x8x128xf32, #tpu.memory_space<vmem>>, vector<1x8x128xf32>
    %278 = vector.shape_cast %277 : vector<1x8x128xf32> to vector<8x128xf32>
    %279 = vector.shape_cast %276 : vector<8x128xf32> to vector<1x8x128xf32>
    tpu.vector_store %arg6[%c0_160, %c0_161, %c0_162], %279 {strides = array<i32>} : memref<1x8x128xf32, #tpu.memory_space<vmem>>, vector<1x8x128xf32>,
    return
  }
  func.func @transform_0(%arg0: i32, %arg1: i32) -> (i32, i32, i32) {
    %c0_i32 = arith.constant 0 : i32
    %c0_i32_0 = arith.constant 0 : i32
    return %arg1, %arg0, %c0_i32 : i32, i32, i32
  }
  func.func @transform_1(%arg0: i32, %arg1: i32) -> (i32, i32, i32, i32, i32) {
    %c0_i32 = arith.constant 0 : i32
    %c0_i32_0 = arith.constant 0 : i32
    %c0_i32_1 = arith.constant 0 : i32
    %c0_i32_2 = arith.constant 0 : i32
    %c0_i32_3 = arith.constant 0 : i32
    return %c0_i32, %c0_i32_0, %c0_i32_1, %arg0, %c0_i32_2 : i32, i32, i32, i32, i32
  }
  func.func @transform_2(%arg0: i32, %arg1: i32) -> (i32, i32, i32, i32, i32) {
    %c0_i32 = arith.constant 0 : i32
    %c0_i32_0 = arith.constant 0 : i32
    %c0_i32_1 = arith.constant 0 : i32
    %c0_i32_2 = arith.constant 0 : i32
    %c0_i32_3 = arith.constant 0 : i32
    return %c0_i32, %c0_i32_0, %c0_i32_1, %arg0, %c0_i32_2 : i32, i32, i32, i32, i32
  }
  func.func @transform_3(%arg0: i32, %arg1: i32) -> (i32, i32) {
    %c0_i32 = arith.constant 0 : i32
    %c0_i32_0 = arith.constant 0 : i32
    return %arg0, %c0_i32 : i32, i32
  }
  func.func @transform_4(%arg0: i32, %arg1: i32) -> (i32, i32, i32) {
    %c0_i32 = arith.constant 0 : i32
    %c0_i32_0 = arith.constant 0 : i32
    return %arg1, %arg0, %c0_i32 : i32, i32, i32
  }
}

</mosaic_0001>

<llo_original>
// kernel: tpu_custom_call.1
$region0: #{tpu_custom_call.1}
  #allocation0 [shape = 'u32[]', space=smem, size = 0x4, offset = 0x4, fixed_abs, tag = 'smem constant byte address 0x4 - core index']
  #allocation1 [shape = 'u32[72,128]{1,0:T(1,128)}', space=vmem, size = 0x9000, scoped, tag = 'internal scratch']
  %s0 = inlined_call_operand.vmem [shape: f32[2,8,130], index: 0, kind: input, shape index: {}]
  %s1 = inlined_call_operand.vmem [shape: f32[2,2,3,8,1], index: 1, kind: input, shape index: {}]
  %s2 = inlined_call_operand.vmem [shape: bf16[2,2,3,8,128], index: 2, kind: input, shape index: {}]
  %s3 = inlined_call_operand.vmem [shape: f32[8,1], index: 3, kind: input, shape index: {}]
  %s4 = inlined_call_operand.hbm [shape: f32[2,8,128], index: 4, kind: output, shape index: {}]
  %s5 = sld [smem:[#allocation0]]
  $region49: #{tpu_custom_call.1} parent=0
    _
  %s7 = ssub.s32 1, %s5
  %s8 = scalar_select 0, %s7, %s5
  $region1: #{tpu_custom_call.1} parent=0
    #allocation2 [shape = 'u8[8192]{0}', space=vmem, size = 0x2000, scoped, tag = 'output window, operand 0']
    #allocation3 [shape = 's32[2]{0}', space=sflag, size = 0x8, scoped, tag = 'scoped memory for tpu_custom_call.1']
    %9 = vsyncpa [#allocation3], 0
    %s10 = scalar_lea.sflag [#allocation3], 1
    %11 = vsyncpa %s10, 0
    loop: start=0, step=1, limit=4
    $region2: #{tpu_custom_call.1} parent=1 // loop_pre_header
      _
    $region3: #{tpu_custom_call.1} parent=1 // loop_header
      %s13 = sphi 0, %s17
      %p14 = scmp.ge.s32.totalorder %s13, 4
      %s20 = sphi 0, %s32
      %s21 = sphi 0, %s28
      %s22 = sphi 0, %s20
      %s23 = sphi 0, %s21
      %s24 = sphi 0, %s22
      %s25 = sphi 0, %s23
      %s37 = sphi 0, %s39
      %s40 = sphi 0, %s37
      %s41 = sphi 0, %s40
      %s57 = sphi 0, %s41
      %s63 = sphi 0, %s65
      %s66 = sphi 0, %s63
      %s67 = sphi 0, %s66
      %s83 = sphi 0, %s67
      %s89 = sphi 0, %s91
      %s92 = sphi 0, %s89
      %s93 = sphi 0, %s92
      %s109 = sphi 0, %s93
      %s115 = sphi 0, %s117
      %s118 = sphi 0, %s115
      %s119 = sphi 0, %s118
      %s135 = sphi 0, %s119
      %s143 = sphi 0, %s145
      %s146 = sphi 0, %s143
      %s147 = sphi 0, %s146
      %s163 = sphi 0, %s147
    $region4: #{tpu_custom_call.1} parent=1 // loop_header_branch
      %16 = sbr.rel (%p14) target = $region8
    $region5: #{tpu_custom_call.1} parent=1 // loop_body
      %s18 = ssub.s32 %s13, 1
      %s19 = ssub.s32 %s13, 2
      %s26 = sadd.s32 1, %s21
      %p27 = scmp.ge.s32.totalorder %s26, 2
      %s28 = scalar_select %p27, 0, %s26
      %s29 = sadd.s32 1, %s20
      %s30 = scalar_select %p27, %s29, %s20
      %p31 = scmp.ge.s32.totalorder %s30, 1
      %s32 = scalar_select %p31, 0, %s30
      %s33 = ssub.s32 %s21, %s28
      %s34 = ssub.s32 %s20, %s32
      %s35 = sor.u32 %s33, %s34
      %p36 = scmp.eq.s32.totalorder %s35, 0
      %s38 = sadd.s32 %s37, 1
      %s39 = scalar_select %p36, %s37, %s38
      %p42 = pneg %p36
      %p43 = scmp.eq.s32.totalorder %s13, 1
      %p44 = por %p42, %p43
      %p45 = scmp.ne.s32.totalorder %s37, %s40
      %p46 = scmp.eq.s32.totalorder %s13, 0
      %p47 = por %p45, %p46
      %p48 = scmp.ne.s32.totalorder %s37, %s40
      %p49 = scmp.eq.s32.totalorder %s18, 1
      %p50 = por %p48, %p49
      %p51 = scmp.ne.s32.totalorder %s40, %s41
      %p52 = scmp.eq.s32.totalorder %s18, 0
      %p53 = por %p51, %p52
      %p54 = scmp.ne.s32.totalorder %s40, %s41
      %p55 = scmp.eq.s32.totalorder %s19, 1
      %p56 = por %p54, %p55
      %p58 = scmp.ne.s32.totalorder %s41, %s57
      %p59 = scmp.eq.s32.totalorder %s19, 0
      %p60 = por %p58, %p59
      %s61 = ssub.s32 %s20, %s32
      %p62 = scmp.eq.s32.totalorder %s61, 0
      %s64 = sadd.s32 %s63, 1
      %s65 = scalar_select %p62, %s63, %s64
      %p68 = pneg %p62
      %p69 = scmp.eq.s32.totalorder %s13, 1
      %p70 = por %p68, %p69
      %p71 = scmp.ne.s32.totalorder %s63, %s66
      %p72 = scmp.eq.s32.totalorder %s13, 0
      %p73 = por %p71, %p72
      %p74 = scmp.ne.s32.totalorder %s63, %s66
      %p75 = scmp.eq.s32.totalorder %s18, 1
      %p76 = por %p74, %p75
      %p77 = scmp.ne.s32.totalorder %s66, %s67
      %p78 = scmp.eq.s32.totalorder %s18, 0
      %p79 = por %p77, %p78
      %p80 = scmp.ne.s32.totalorder %s66, %s67
      %p81 = scmp.eq.s32.totalorder %s19, 1
      %p82 = por %p80, %p81
      %p84 = scmp.ne.s32.totalorder %s67, %s83
      %p85 = scmp.eq.s32.totalorder %s19, 0
      %p86 = por %p84, %p85
      %s87 = ssub.s32 %s20, %s32
      %p88 = scmp.eq.s32.totalorder %s87, 0
      %s90 = sadd.s32 %s89, 1
      %s91 = scalar_select %p88, %s89, %s90
      %p94 = pneg %p88
      %p95 = scmp.eq.s32.totalorder %s13, 1
      %p96 = por %p94, %p95
      %p97 = scmp.ne.s32.totalorder %s89, %s92
      %p98 = scmp.eq.s32.totalorder %s13, 0
      %p99 = por %p97, %p98
      %p100 = scmp.ne.s32.totalorder %s89, %s92
      %p101 = scmp.eq.s32.totalorder %s18, 1
      %p102 = por %p100, %p101
      %p103 = scmp.ne.s32.totalorder %s92, %s93
      %p104 = scmp.eq.s32.totalorder %s18, 0
      %p105 = por %p103, %p104
      %p106 = scmp.ne.s32.totalorder %s92, %s93
      %p107 = scmp.eq.s32.totalorder %s19, 1
      %p108 = por %p106, %p107
      %p110 = scmp.ne.s32.totalorder %s93, %s109
      %p111 = scmp.eq.s32.totalorder %s19, 0
      %p112 = por %p110, %p111
      %s113 = ssub.s32 %s20, %s32
      %p114 = scmp.eq.s32.totalorder %s113, 0
      %s116 = sadd.s32 %s115, 1
      %s117 = scalar_select %p114, %s115, %s116
      %p120 = pneg %p114
      %p121 = scmp.eq.s32.totalorder %s13, 1
      %p122 = por %p120, %p121
      %p123 = scmp.ne.s32.totalorder %s115, %s118
      %p124 = scmp.eq.s32.totalorder %s13, 0
      %p125 = por %p123, %p124
      %p126 = scmp.ne.s32.totalorder %s115, %s118
      %p127 = scmp.eq.s32.totalorder %s18, 1
      %p128 = por %p126, %p127
      %p129 = scmp.ne.s32.totalorder %s118, %s119
      %p130 = scmp.eq.s32.totalorder %s18, 0
      %p131 = por %p129, %p130
      %p132 = scmp.ne.s32.totalorder %s118, %s119
      %p133 = scmp.eq.s32.totalorder %s19, 1
      %p134 = por %p132, %p133
      %p136 = scmp.ne.s32.totalorder %s119, %s135
      %p137 = scmp.eq.s32.totalorder %s19, 0
      %p138 = por %p136, %p137
      %s139 = ssub.s32 %s21, %s28
      %s140 = ssub.s32 %s20, %s32
      %s141 = sor.u32 %s139, %s140
      %p142 = scmp.eq.s32.totalorder %s141, 0
      %s144 = sadd.s32 %s143, 1
      %s145 = scalar_select %p142, %s143, %s144
      %p148 = pneg %p142
      %p149 = scmp.eq.s32.totalorder %s13, 1
      %p150 = por %p148, %p149
      %p151 = scmp.ne.s32.totalorder %s143, %s146
      %p152 = scmp.eq.s32.totalorder %s13, 0
      %p153 = por %p151, %p152
      %p154 = scmp.ne.s32.totalorder %s143, %s146
      %p155 = scmp.eq.s32.totalorder %s18, 1
      %p156 = por %p154, %p155
      %p157 = scmp.ne.s32.totalorder %s146, %s147
      %p158 = scmp.eq.s32.totalorder %s18, 0
      %p159 = por %p157, %p158
      %p160 = scmp.ne.s32.totalorder %s146, %s147
      %p161 = scmp.eq.s32.totalorder %s19, 1
      %p162 = por %p160, %p161
      %p164 = scmp.ne.s32.totalorder %s147, %s163
      %p165 = scmp.eq.s32.totalorder %s19, 0
      %p166 = por %p164, %p165
      %p167 = scmp.le.s32.totalorder 1, %s13
      %p168 = scmp.lt.s32.totalorder %s13, 3
      %p169 = pnand %p167, %p168
      %p170 = pneg %p169
      // Predicated region
      $region9: #{tpu_custom_call.1} parent=5 // pred_check
        _
      $region10: #{tpu_custom_call.1} parent=5 // pred_check_branch
        %172 = sbr.rel (%p169) target = $region12
      $region11: #{tpu_custom_call.1} parent=5 // pred_region
        %s173 = ssub.s32 %s13, 1
        // Predicated region
        $region13: #{tpu_custom_call.1} parent=11 // pred_check
          %p174 = pneg %p79
        $region14: #{tpu_custom_call.1} parent=11 // pred_check_branch
          %176 = sbr.rel (%p174) target = $region16
        $region15: #{tpu_custom_call.1} parent=11 // pred_region
          %p177 = scmp.lt.s32.totalorder %s22, 0
          %s178 = scalar_select %p177, %s22, 0
          %s179 = smul.addr %s178, 8
          %s180 = scalar_lea.vmem %s1, %s179
        $region16: #{tpu_custom_call.1} parent=11 // pred_fallthru
          _
        // Predicated region
        $region17: #{tpu_custom_call.1} parent=11 // pred_check
          %p181 = pneg %p105
        $region18: #{tpu_custom_call.1} parent=11 // pred_check_branch
          %183 = sbr.rel (%p181) target = $region20
        $region19: #{tpu_custom_call.1} parent=11 // pred_region
          %p184 = scmp.lt.s32.totalorder %s22, 0
          %s185 = scalar_select %p184, %s22, 0
          %s186 = smul.addr %s185, 4
          %s187 = scalar_lea.vmem %s2, %s186
        $region20: #{tpu_custom_call.1} parent=11 // pred_fallthru
          _
        // Predicated region
        $region21: #{tpu_custom_call.1} parent=11 // pred_check
          %p188 = pneg %p131
        $region22: #{tpu_custom_call.1} parent=11 // pred_check_branch
          %190 = sbr.rel (%p188) target = $region24
        $region23: #{tpu_custom_call.1} parent=11 // pred_region
          %p191 = scmp.lt.s32.totalorder %s22, 0
          %s192 = scalar_select %p191, %s22, 0
          %s193 = smul.addr %s192, 8
          %s194 = scalar_lea.vmem %s3, %s193
        $region24: #{tpu_custom_call.1} parent=11 // pred_fallthru
          _
      $region12: #{tpu_custom_call.1} parent=5 // pred_fallthru
        _
      %p195 = scmp.lt.s32.totalorder %s13, 2
      // Predicated region
      $region25: #{tpu_custom_call.1} parent=5 // pred_check
        %p196 = pneg %p195
      $region26: #{tpu_custom_call.1} parent=5 // pred_check_branch
        %198 = sbr.rel (%p196) target = $region28
      $region27: #{tpu_custom_call.1} parent=5 // pred_region
        // Predicated region
        $region29: #{tpu_custom_call.1} parent=27 // pred_check
          %p199 = pneg %p47
        $region30: #{tpu_custom_call.1} parent=27 // pred_check_branch
          %201 = sbr.rel (%p199) target = $region32
        $region31: #{tpu_custom_call.1} parent=27 // pred_region
          %p202 = scmp.lt.s32.totalorder %s21, 1
          %s203 = scalar_select %p202, %s21, 1
          %p204 = scmp.lt.s32.totalorder %s20, 0
          %s205 = scalar_select %p204, %s20, 0
          %s206 = smul.addr %s205, 2
          %s207 = smul.addr %s203, 2
          %s208 = sadd.s32 %s206, %s207
          %s209 = smul.addr %s208, 8
          %s210 = scalar_lea.vmem %s0, %s209
        $region32: #{tpu_custom_call.1} parent=27 // pred_fallthru
          _
      $region28: #{tpu_custom_call.1} parent=5 // pred_fallthru
        _
      %p211 = scmp.le.s32.totalorder 1, %s13
      %p212 = scmp.lt.s32.totalorder %s13, 3
      %p213 = pnand %p211, %p212
      %p214 = pneg %p213
      // Predicated region
      $region33: #{tpu_custom_call.1} parent=5 // pred_check
        _
      $region34: #{tpu_custom_call.1} parent=5 // pred_check_branch
        %216 = sbr.rel (%p213) target = $region36
      $region35: #{tpu_custom_call.1} parent=5 // pred_region
        %s217 = ssub.s32 %s13, 1
        %p218 = scmp.lt.s32.totalorder %s23, 1
        %s219 = scalar_select %p218, %s23, 1
        %p220 = scmp.lt.s32.totalorder %s22, 0
        %s221 = scalar_select %p220, %s22, 0
        %s222 = smul.addr %s221, 2
        %s223 = smul.addr %s219, 2
        %s224 = sadd.s32 %s222, %s223
        %s225 = smul.addr %s224, 8
        %s226 = scalar_lea.vmem %s0, %s225
        %p227 = pneg %p53
        %p228 = pneg %p50
        %p229 = scmp.lt.s32.totalorder %s22, 0
        %s230 = scalar_select %p229, %s22, 0
        %s231 = smul.addr %s230, 8
        %s232 = scalar_lea.vmem %s1, %s231
        %p233 = pneg %p79
        %p234 = pneg %p76
        %p235 = scmp.lt.s32.totalorder %s22, 0
        %s236 = scalar_select %p235, %s22, 0
        %s237 = smul.addr %s236, 4
        %s238 = scalar_lea.vmem %s2, %s237
        %p239 = pneg %p105
        %p240 = pneg %p102
        %p241 = scmp.lt.s32.totalorder %s22, 0
        %s242 = scalar_select %p241, %s22, 0
        %s243 = smul.addr %s242, 8
        %s244 = scalar_lea.vmem %s3, %s243
        %p245 = pneg %p131
        %p246 = pneg %p128
        %p247 = pneg %p159
        %p248 = pneg %p156
        %s249 = sand.u32 %s146, 1
        %s250 = scalar_lea.sflag [#allocation3], %s249
        %s251 = sand.u32 %s146, 1
        %s252 = smul.addr %s251, 8
        %s253 = scalar_lea.vmem [#allocation2], %s252
        %p254 = scmp.lt.s32.totalorder %s23, 1
        %s255 = scalar_select %p254, %s23, 1
        %p256 = scmp.lt.s32.totalorder %s22, 0
        %s257 = scalar_select %p256, %s22, 0
        %s258 = smul.addr %s257, 2
        %s259 = smul.addr %s255, 2
        %s260 = sadd.s32 %s258, %s259
        %s261 = smul.addr %s260, 8
        %s262 = scalar_lea.vmem %s0, %s261
        %p263 = scmp.lt.s32.totalorder %s22, 0
        %s264 = scalar_select %p263, %s22, 0
        %s265 = smul.addr %s264, 8
        %s266 = scalar_lea.vmem %s1, %s265
        %p267 = scmp.lt.s32.totalorder %s22, 0
        %s268 = scalar_select %p267, %s22, 0
        %s269 = smul.addr %s268, 4
        %s270 = scalar_lea.vmem %s2, %s269
        %p271 = scmp.lt.s32.totalorder %s22, 0
        %s272 = scalar_select %p271, %s22, 0
        %s273 = smul.addr %s272, 8
        %s274 = scalar_lea.vmem %s3, %s273
        %v275 = vld [vmem:[%s262] sm:$0xff]
        %v276 = vld [vmem:[%s262 + $0x8] sm:$0xff]
        %v277 = vmul.f32 %v275, 128.0
        %v278 = vmul.f32 %v276, 128.0
        %v279 = vround.ne.pseudo %v277
        %v280 = vround.ne.pseudo %v278
        %v281 = vmax.f32 %v279, -128.0
        %v282 = vmax.f32 %v280, -128.0
        %v283 = vmin.f32 %v281, 128.0
        %v284 = vmin.f32 %v282, 128.0
        %v285 = vmul.f32 %v283, 0.0046875
        %v286 = vmul.f32 %v284, 0.0046875
        %v287 = vmul.f32 %v285, %v285
        %v288 = vmul.f32 %v287, 1e-06
        %v289 = vadd.f32 %v288, 1e-05
        %v290 = vmul.f32 %v289, %v287
        %v291 = vadd.f32 %v290, 0.0002
        %v292 = vmul.f32 %v285, %v291
        %v293 = vmul.f32 %v287, 1e-08
        %v294 = vadd.f32 %v293, 1e-07
        %v295 = vmul.f32 %v294, %v287
        %v296 = vadd.f32 %v295, 2e-06
        %v297 = vmul.f32 %v285, %v296
        %v298 = vand.u32 2147483647, %v285
        %v299 = vadd.f32 %v298, 1e-12
        %v300 = vrcp.pop %v299
        %v301 = vmul.f32 %v299, %v300
        %v302 = vsub.f32 1.0, %v301
        %v303 = vmul.f32 %v300, %v302
        %v304 = vadd.f32 %v300, %v303
        %vm305 = vweird.f32 %v299
        %vm306 = vweird.f32 %v300
        %vm307 = vmor %vm305, %vm306
        %v308 = vsel %vm307, %v300, %v304
        %v309 = vand.u32 2147483647, %v299
        %vm310 = vcmp.eq.f32.partialorder %v309, 8.507059e+37
        %v311 = vand.u32 %v299, 2147483648
        %v312 = vor.u32 1.1754944e-38, %v311
        %v313 = vsel %vm310, %v312, %v308
        %v314 = vmul.f32 1.6567788e-28, %v313
        %v315 = vadd.f32 %v314, 5.4365636e-08
        %v316 = vsub.f32 %v297, %v292
        %v317 = vmul.f32 %v286, %v286
        %v318 = vmul.f32 %v317, 1e-06
        %v319 = vadd.f32 %v318, 1e-05
        %v320 = vmul.f32 %v319, %v317
        %v321 = vadd.f32 %v320, 0.0002
        %v322 = vmul.f32 %v286, %v321
        %v323 = vmul.f32 %v317, 1e-08
        %v324 = vadd.f32 %v323, 1e-07
        %v325 = vmul.f32 %v324, %v317
        %v326 = vadd.f32 %v325, 2e-06
        %v327 = vmul.f32 %v286, %v326
        %v328 = vand.u32 2147483647, %v286
        %v329 = vadd.f32 %v328, 1e-12
        %v330 = vrcp.pop %v329
        %v331 = vmul.f32 %v329, %v330
        %v332 = vsub.f32 1.0, %v331
        %v333 = vmul.f32 %v330, %v332
        %v334 = vadd.f32 %v330, %v333
        %vm335 = vweird.f32 %v329
        %vm336 = vweird.f32 %v330
        %vm337 = vmor %vm335, %vm336
        %v338 = vsel %vm337, %v330, %v334
        %v339 = vand.u32 2147483647, %v329
        %vm340 = vcmp.eq.f32.partialorder %v339, 8.507059e+37
        %v341 = vand.u32 %v329, 2147483648
        %v342 = vor.u32 1.1754944e-38, %v341
        %v343 = vsel %vm340, %v342, %v338
        %v344 = vmul.f32 1.6567788e-28, %v343
        %v345 = vadd.f32 %v344, 5.4365636e-08
        %v346 = vsub.f32 %v327, %v322
        %v347 = vld [vmem:[%s266] sm:$0xff]
        %349 = vset.pattern.permute.xlu0 0
        %350 = vperm.xlu0 %349, %v347
        %v351 = vpop.permute.xlu0 %350
        %v353 = vmul.f32 %v316, %v351
        %v354 = vadd.f32 %v292, %v353
        %v355 = vand.u32 2147483647, %v354
        %v356 = vmul.f32 %v355, %v315
        %v357 = vrsqrt.pop %v356
        %v358 = vmul.f32 %v357, %v356
        %v359 = vmul.f32 %v358, %v357
        %v360 = vmul.f32 0.5, %v359
        %v361 = vsub.f32 1.5, %v360
        %v362 = vmul.f32 %v357, %v361
        %v363 = vmul.f32 %v356, %v362
        %vm364 = vcmp.eq.f32.partialorder %v356, inf
        %v365 = vsel %vm364, %v356, %v363
        %vm366 = vcmp.eq.f32.partialorder %v356, 0.0
        %v367 = vand.u32 %v356, 2147483648
        %v368 = vsel %vm366, %v367, %v365
        %v369 = vld [vmem:[%s270] sm:$0xf]
        %v370 = vunpack.c.l.bf16 %v369
        %v371 = vmul.f32 %v370, %v368
        %v372 = vadd.f32 %v354, %v371
        %s373 = scalar_lea.vmem %s266, 8
        %v374 = vld [vmem:[%s373] sm:$0xff]
        %376 = vset.pattern.permute.xlu0 0
        %377 = vperm.xlu0 %376, %v374
        %v378 = vpop.permute.xlu0 %377
        %v380 = vmul.f32 %v316, %v378
        %v381 = vmul.f32 %v346, %v378
        %v382 = vadd.f32 %v292, %v380
        %v383 = vadd.f32 %v322, %v381
        %v384 = vand.u32 2147483647, %v382
        %v385 = vand.u32 2147483647, %v383
        %v386 = vmul.f32 %v384, %v315
        %v387 = vmul.f32 %v385, %v345
        %v388 = vrsqrt.pop %v386
        %v389 = vmul.f32 %v388, %v386
        %v390 = vmul.f32 %v389, %v388
        %v391 = vmul.f32 0.5, %v390
        %v392 = vsub.f32 1.5, %v391
        %v393 = vmul.f32 %v388, %v392
        %v394 = vmul.f32 %v386, %v393
        %vm395 = vcmp.eq.f32.partialorder %v386, inf
        %v396 = vsel %vm395, %v386, %v394
        %vm397 = vcmp.eq.f32.partialorder %v386, 0.0
        %v398 = vand.u32 %v386, 2147483648
        %v399 = vsel %vm397, %v398, %v396
        %v400 = vrsqrt.pop %v387
        %v401 = vmul.f32 %v400, %v387
        %v402 = vmul.f32 %v401, %v400
        %v403 = vmul.f32 0.5, %v402
        %v404 = vsub.f32 1.5, %v403
        %v405 = vmul.f32 %v400, %v404
        %v406 = vmul.f32 %v387, %v405
        %vm407 = vcmp.eq.f32.partialorder %v387, inf
        %v408 = vsel %vm407, %v387, %v406
        %vm409 = vcmp.eq.f32.partialorder %v387, 0.0
        %v410 = vand.u32 %v387, 2147483648
        %v411 = vsel %vm409, %v410, %v408
        %s412 = scalar_lea.vmem %s270, 4
        %v413 = vld [vmem:[%s412] sm:$0xf]
        %v414 = vunpack.c.l.bf16 %v413
        %417 = vrot.lane.b32.xlu0 %v399, 127
        %v418 = vpop.permute.xlu0 %417
        %419 = vrot.lane.b32.xlu0 %v411, 127
        %v420 = vpop.permute.xlu0 %419
        %vm421 = vcmask 1039360
        %v422 = vsel %vm421, %v418, %v420
        %v424 = vmul.f32 %v414, %v422
        %426 = vrot.lane.b32.xlu0 %v424, 1
        %v427 = vpop.permute.xlu0 %426
        %v429 = vadd.f32 %v382, %v427
        %v430 = vadd.f32 %v383, %v427
        %433 = vrot.lane.b32.xlu0 %v429, 127
        %v434 = vpop.permute.xlu0 %433
        %435 = vrot.lane.b32.xlu0 %v430, 127
        %v436 = vpop.permute.xlu0 %435
        %v437 = vsel %vm421, %v434, %v436
        %v439 = vadd.f32 %v372, %v437
        %s440 = scalar_lea.vmem %s266, 16
        %v441 = vld [vmem:[%s440] sm:$0xff]
        %443 = vset.pattern.permute.xlu0 0
        %444 = vperm.xlu0 %443, %v441
        %v445 = vpop.permute.xlu0 %444
        %v447 = vmul.f32 %v316, %v445
        %v448 = vmul.f32 %v346, %v445
        %v449 = vadd.f32 %v292, %v447
        %v450 = vadd.f32 %v322, %v448
        %v451 = vand.u32 2147483647, %v449
        %v452 = vand.u32 2147483647, %v450
        %v453 = vmul.f32 %v451, %v315
        %v454 = vmul.f32 %v452, %v345
        %v455 = vrsqrt.pop %v453
        %v456 = vmul.f32 %v455, %v453
        %v457 = vmul.f32 %v456, %v455
        %v458 = vmul.f32 0.5, %v457
        %v459 = vsub.f32 1.5, %v458
        %v460 = vmul.f32 %v455, %v459
        %v461 = vmul.f32 %v453, %v460
        %vm462 = vcmp.eq.f32.partialorder %v453, inf
        %v463 = vsel %vm462, %v453, %v461
        %vm464 = vcmp.eq.f32.partialorder %v453, 0.0
        %v465 = vand.u32 %v453, 2147483648
        %v466 = vsel %vm464, %v465, %v463
        %v467 = vrsqrt.pop %v454
        %v468 = vmul.f32 %v467, %v454
        %v469 = vmul.f32 %v468, %v467
        %v470 = vmul.f32 0.5, %v469
        %v471 = vsub.f32 1.5, %v470
        %v472 = vmul.f32 %v467, %v471
        %v473 = vmul.f32 %v454, %v472
        %vm474 = vcmp.eq.f32.partialorder %v454, inf
        %v475 = vsel %vm474, %v454, %v473
        %vm476 = vcmp.eq.f32.partialorder %v454, 0.0
        %v477 = vand.u32 %v454, 2147483648
        %v478 = vsel %vm476, %v477, %v475
        %s479 = scalar_lea.vmem %s270, 8
        %v480 = vld [vmem:[%s479] sm:$0xf]
        %v481 = vunpack.c.l.bf16 %v480
        %484 = vrot.lane.b32.xlu0 %v466, 126
        %v485 = vpop.permute.xlu0 %484
        %486 = vrot.lane.b32.xlu0 %v478, 126
        %v487 = vpop.permute.xlu0 %486
        %vm488 = vcmask 1031168
        %v489 = vsel %vm488, %v485, %v487
        %v491 = vmul.f32 %v481, %v489
        %493 = vrot.lane.b32.xlu0 %v491, 2
        %v494 = vpop.permute.xlu0 %493
        %v496 = vadd.f32 %v449, %v494
        %v497 = vadd.f32 %v450, %v494
        %500 = vrot.lane.b32.xlu0 %v496, 126
        %v501 = vpop.permute.xlu0 %500
        %502 = vrot.lane.b32.xlu0 %v497, 126
        %v503 = vpop.permute.xlu0 %502
        %v504 = vsel %vm488, %v501, %v503
        %v506 = vadd.f32 %v439, %v504
        %s507 = scalar_lea.vmem %s266, 24
        %v508 = vld [vmem:[%s507] sm:$0xff]
        %510 = vset.pattern.permute.xlu0 0
        %511 = vperm.xlu0 %510, %v508
        %v512 = vpop.permute.xlu0 %511
        %v514 = vmul.f32 %v316, %v512
        %v515 = vadd.f32 %v292, %v514
        %v516 = vand.u32 2147483647, %v515
        %v517 = vmul.f32 %v516, %v315
        %v518 = vrsqrt.pop %v517
        %v519 = vmul.f32 %v518, %v517
        %v520 = vmul.f32 %v519, %v518
        %v521 = vmul.f32 0.5, %v520
        %v522 = vsub.f32 1.5, %v521
        %v523 = vmul.f32 %v518, %v522
        %v524 = vmul.f32 %v517, %v523
        %vm525 = vcmp.eq.f32.partialorder %v517, inf
        %v526 = vsel %vm525, %v517, %v524
        %vm527 = vcmp.eq.f32.partialorder %v517, 0.0
        %v528 = vand.u32 %v517, 2147483648
        %v529 = vsel %vm527, %v528, %v526
        %s530 = scalar_lea.vmem %s270, 12
        %v531 = vld [vmem:[%s530] sm:$0xf]
        %v532 = vunpack.c.l.bf16 %v531
        %v533 = vmul.f32 %v532, %v529
        %v534 = vadd.f32 %v515, %v533
        %s535 = scalar_lea.vmem %s266, 32
        %v536 = vld [vmem:[%s535] sm:$0xff]
        %538 = vset.pattern.permute.xlu0 0
        %539 = vperm.xlu0 %538, %v536
        %v540 = vpop.permute.xlu0 %539
        %v542 = vmul.f32 %v316, %v540
        %v543 = vmul.f32 %v346, %v540
        %v544 = vadd.f32 %v292, %v542
        %v545 = vadd.f32 %v322, %v543
        %v546 = vand.u32 2147483647, %v544
        %v547 = vand.u32 2147483647, %v545
        %v548 = vmul.f32 %v546, %v315
        %v549 = vmul.f32 %v547, %v345
        %v550 = vrsqrt.pop %v548
        %v551 = vmul.f32 %v550, %v548
        %v552 = vmul.f32 %v551, %v550
        %v553 = vmul.f32 0.5, %v552
        %v554 = vsub.f32 1.5, %v553
        %v555 = vmul.f32 %v550, %v554
        %v556 = vmul.f32 %v548, %v555
        %vm557 = vcmp.eq.f32.partialorder %v548, inf
        %v558 = vsel %vm557, %v548, %v556
        %vm559 = vcmp.eq.f32.partialorder %v548, 0.0
        %v560 = vand.u32 %v548, 2147483648
        %v561 = vsel %vm559, %v560, %v558
        %v562 = vrsqrt.pop %v549
        %v563 = vmul.f32 %v562, %v549
        %v564 = vmul.f32 %v563, %v562
        %v565 = vmul.f32 0.5, %v564
        %v566 = vsub.f32 1.5, %v565
        %v567 = vmul.f32 %v562, %v566
        %v568 = vmul.f32 %v549, %v567
        %vm569 = vcmp.eq.f32.partialorder %v549, inf
        %v570 = vsel %vm569, %v549, %v568
        %vm571 = vcmp.eq.f32.partialorder %v549, 0.0
        %v572 = vand.u32 %v549, 2147483648
        %v573 = vsel %vm571, %v572, %v570
        %s574 = scalar_lea.vmem %s270, 16
        %v575 = vld [vmem:[%s574] sm:$0xf]
        %v576 = vunpack.c.l.bf16 %v575
        %579 = vrot.lane.b32.xlu0 %v561, 127
        %v580 = vpop.permute.xlu0 %579
        %581 = vrot.lane.b32.xlu0 %v573, 127
        %v582 = vpop.permute.xlu0 %581
        %v583 = vsel %vm421, %v580, %v582
        %v585 = vmul.f32 %v576, %v583
        %587 = vrot.lane.b32.xlu0 %v585, 1
        %v588 = vpop.permute.xlu0 %587
        %v590 = vadd.f32 %v544, %v588
        %v591 = vadd.f32 %v545, %v588
        %594 = vrot.lane.b32.xlu0 %v590, 127
        %v595 = vpop.permute.xlu0 %594
        %596 = vrot.lane.b32.xlu0 %v591, 127
        %v597 = vpop.permute.xlu0 %596
        %v598 = vsel %vm421, %v595, %v597
        %v600 = vadd.f32 %v534, %v598
        %s601 = scalar_lea.vmem %s266, 40
        %v602 = vld [vmem:[%s601] sm:$0xff]
        %604 = vset.pattern.permute.xlu0 0
        %605 = vperm.xlu0 %604, %v602
        %v606 = vpop.permute.xlu0 %605
        %v608 = vmul.f32 %v316, %v606
        %v609 = vmul.f32 %v346, %v606
        %v610 = vadd.f32 %v292, %v608
        %v611 = vadd.f32 %v322, %v609
        %v612 = vand.u32 2147483647, %v610
        %v613 = vand.u32 2147483647, %v611
        %v614 = vmul.f32 %v612, %v315
        %v615 = vmul.f32 %v613, %v345
        %v616 = vrsqrt.pop %v614
        %v617 = vmul.f32 %v616, %v614
        %v618 = vmul.f32 %v617, %v616
        %v619 = vmul.f32 0.5, %v618
        %v620 = vsub.f32 1.5, %v619
        %v621 = vmul.f32 %v616, %v620
        %v622 = vmul.f32 %v614, %v621
        %vm623 = vcmp.eq.f32.partialorder %v614, inf
        %v624 = vsel %vm623, %v614, %v622
        %vm625 = vcmp.eq.f32.partialorder %v614, 0.0
        %v626 = vand.u32 %v614, 2147483648
        %v627 = vsel %vm625, %v626, %v624
        %v628 = vrsqrt.pop %v615
        %v629 = vmul.f32 %v628, %v615
        %v630 = vmul.f32 %v629, %v628
        %v631 = vmul.f32 0.5, %v630
        %v632 = vsub.f32 1.5, %v631
        %v633 = vmul.f32 %v628, %v632
        %v634 = vmul.f32 %v615, %v633
        %vm635 = vcmp.eq.f32.partialorder %v615, inf
        %v636 = vsel %vm635, %v615, %v634
        %vm637 = vcmp.eq.f32.partialorder %v615, 0.0
        %v638 = vand.u32 %v615, 2147483648
        %v639 = vsel %vm637, %v638, %v636
        %s640 = scalar_lea.vmem %s270, 20
        %v641 = vld [vmem:[%s640] sm:$0xf]
        %v642 = vunpack.c.l.bf16 %v641
        %645 = vrot.lane.b32.xlu0 %v627, 126
        %v646 = vpop.permute.xlu0 %645
        %647 = vrot.lane.b32.xlu0 %v639, 126
        %v648 = vpop.permute.xlu0 %647
        %v649 = vsel %vm488, %v646, %v648
        %v651 = vmul.f32 %v642, %v649
        %653 = vrot.lane.b32.xlu0 %v651, 2
        %v654 = vpop.permute.xlu0 %653
        %v656 = vadd.f32 %v610, %v654
        %v657 = vadd.f32 %v611, %v654
        %660 = vrot.lane.b32.xlu0 %v656, 126
        %v661 = vpop.permute.xlu0 %660
        %662 = vrot.lane.b32.xlu0 %v657, 126
        %v663 = vpop.permute.xlu0 %662
        %v664 = vsel %vm488, %v661, %v663
        %v666 = vadd.f32 %v600, %v664
        %v667 = vsub.f32 %v506, %v666
        %v668 = vmul.f32 %v667, 2560000.0
        %v669 = vround.ne.pseudo %v668
        %v670 = vmax.f32 %v669, -2048.0
        %v671 = vmin.f32 %v670, 2048.0
        %v672 = vmul.f32 %v671, 7.8125e-05
        %s673 = scalar_lea.vmem %s266, 48
        %v674 = vld [vmem:[%s673] sm:$0xff]
        %676 = vset.pattern.permute.xlu0 0
        %677 = vperm.xlu0 %676, %v674
        %v678 = vpop.permute.xlu0 %677
        %v680 = vmul.f32 %v316, %v678
        %v681 = vadd.f32 %v292, %v680
        %v682 = vand.u32 2147483647, %v681
        %v683 = vmul.f32 %v682, %v315
        %v684 = vrsqrt.pop %v683
        %v685 = vmul.f32 %v684, %v683
        %v686 = vmul.f32 %v685, %v684
        %v687 = vmul.f32 0.5, %v686
        %v688 = vsub.f32 1.5, %v687
        %v689 = vmul.f32 %v684, %v688
        %v690 = vmul.f32 %v683, %v689
        %vm691 = vcmp.eq.f32.partialorder %v683, inf
        %v692 = vsel %vm691, %v683, %v690
        %vm693 = vcmp.eq.f32.partialorder %v683, 0.0
        %v694 = vand.u32 %v683, 2147483648
        %v695 = vsel %vm693, %v694, %v692
        %s696 = scalar_lea.vmem %s270, 24
        %v697 = vld [vmem:[%s696] sm:$0xf]
        %v698 = vunpack.c.l.bf16 %v697
        %v699 = vmul.f32 %v698, %v695
        %v700 = vadd.f32 %v681, %v699
        %s701 = scalar_lea.vmem %s266, 56
        %v702 = vld [vmem:[%s701] sm:$0xff]
        %704 = vset.pattern.permute.xlu0 0
        %705 = vperm.xlu0 %704, %v702
        %v706 = vpop.permute.xlu0 %705
        %v708 = vmul.f32 %v316, %v706
        %v709 = vmul.f32 %v346, %v706
        %v710 = vadd.f32 %v292, %v708
        %v711 = vadd.f32 %v322, %v709
        %v712 = vand.u32 2147483647, %v710
        %v713 = vand.u32 2147483647, %v711
        %v714 = vmul.f32 %v712, %v315
        %v715 = vmul.f32 %v713, %v345
        %v716 = vrsqrt.pop %v714
        %v717 = vmul.f32 %v716, %v714
        %v718 = vmul.f32 %v717, %v716
        %v719 = vmul.f32 0.5, %v718
        %v720 = vsub.f32 1.5, %v719
        %v721 = vmul.f32 %v716, %v720
        %v722 = vmul.f32 %v714, %v721
        %vm723 = vcmp.eq.f32.partialorder %v714, inf
        %v724 = vsel %vm723, %v714, %v722
        %vm725 = vcmp.eq.f32.partialorder %v714, 0.0
        %v726 = vand.u32 %v714, 2147483648
        %v727 = vsel %vm725, %v726, %v724
        %v728 = vrsqrt.pop %v715
        %v729 = vmul.f32 %v728, %v715
        %v730 = vmul.f32 %v729, %v728
        %v731 = vmul.f32 0.5, %v730
        %v732 = vsub.f32 1.5, %v731
        %v733 = vmul.f32 %v728, %v732
        %v734 = vmul.f32 %v715, %v733
        %vm735 = vcmp.eq.f32.partialorder %v715, inf
        %v736 = vsel %vm735, %v715, %v734
        %vm737 = vcmp.eq.f32.partialorder %v715, 0.0
        %v738 = vand.u32 %v715, 2147483648
        %v739 = vsel %vm737, %v738, %v736
        %s740 = scalar_lea.vmem %s270, 28
        %v741 = vld [vmem:[%s740] sm:$0xf]
        %v742 = vunpack.c.l.bf16 %v741
        %745 = vrot.lane.b32.xlu0 %v727, 127
        %v746 = vpop.permute.xlu0 %745
        %747 = vrot.lane.b32.xlu0 %v739, 127
        %v748 = vpop.permute.xlu0 %747
        %v749 = vsel %vm421, %v746, %v748
        %v751 = vmul.f32 %v742, %v749
        %753 = vrot.lane.b32.xlu0 %v751, 1
        %v754 = vpop.permute.xlu0 %753
        %v756 = vadd.f32 %v710, %v754
        %v757 = vadd.f32 %v711, %v754
        %760 = vrot.lane.b32.xlu0 %v756, 127
        %v761 = vpop.permute.xlu0 %760
        %762 = vrot.lane.b32.xlu0 %v757, 127
        %v763 = vpop.permute.xlu0 %762
        %v764 = vsel %vm421, %v761, %v763
        %v766 = vadd.f32 %v700, %v764
        %s767 = scalar_lea.vmem %s266, 64
        %v768 = vld [vmem:[%s767] sm:$0xff]
        %770 = vset.pattern.permute.xlu0 0
        %771 = vperm.xlu0 %770, %v768
        %v772 = vpop.permute.xlu0 %771
        %v774 = vmul.f32 %v316, %v772
        %v775 = vmul.f32 %v346, %v772
        %v776 = vadd.f32 %v292, %v774
        %v777 = vadd.f32 %v322, %v775
        %v778 = vand.u32 2147483647, %v776
        %v779 = vand.u32 2147483647, %v777
        %v780 = vmul.f32 %v778, %v315
        %v781 = vmul.f32 %v779, %v345
        %v782 = vrsqrt.pop %v780
        %v783 = vmul.f32 %v782, %v780
        %v784 = vmul.f32 %v783, %v782
        %v785 = vmul.f32 0.5, %v784
        %v786 = vsub.f32 1.5, %v785
        %v787 = vmul.f32 %v782, %v786
        %v788 = vmul.f32 %v780, %v787
        %vm789 = vcmp.eq.f32.partialorder %v780, inf
        %v790 = vsel %vm789, %v780, %v788
        %vm791 = vcmp.eq.f32.partialorder %v780, 0.0
        %v792 = vand.u32 %v780, 2147483648
        %v793 = vsel %vm791, %v792, %v790
        %v794 = vrsqrt.pop %v781
        %v795 = vmul.f32 %v794, %v781
        %v796 = vmul.f32 %v795, %v794
        %v797 = vmul.f32 0.5, %v796
        %v798 = vsub.f32 1.5, %v797
        %v799 = vmul.f32 %v794, %v798
        %v800 = vmul.f32 %v781, %v799
        %vm801 = vcmp.eq.f32.partialorder %v781, inf
        %v802 = vsel %vm801, %v781, %v800
        %vm803 = vcmp.eq.f32.partialorder %v781, 0.0
        %v804 = vand.u32 %v781, 2147483648
        %v805 = vsel %vm803, %v804, %v802
        %s806 = scalar_lea.vmem %s270, 32
        %v807 = vld [vmem:[%s806] sm:$0xf]
        %v808 = vunpack.c.l.bf16 %v807
        %811 = vrot.lane.b32.xlu0 %v793, 126
        %v812 = vpop.permute.xlu0 %811
        %813 = vrot.lane.b32.xlu0 %v805, 126
        %v814 = vpop.permute.xlu0 %813
        %v815 = vsel %vm488, %v812, %v814
        %v817 = vmul.f32 %v808, %v815
        %819 = vrot.lane.b32.xlu0 %v817, 2
        %v820 = vpop.permute.xlu0 %819
        %v822 = vadd.f32 %v776, %v820
        %v823 = vadd.f32 %v777, %v820
        %826 = vrot.lane.b32.xlu0 %v822, 126
        %v827 = vpop.permute.xlu0 %826
        %828 = vrot.lane.b32.xlu0 %v823, 126
        %v829 = vpop.permute.xlu0 %828
        %v830 = vsel %vm488, %v827, %v829
        %v832 = vadd.f32 %v766, %v830
        %s833 = scalar_lea.vmem %s266, 72
        %v834 = vld [vmem:[%s833] sm:$0xff]
        %836 = vset.pattern.permute.xlu0 0
        %837 = vperm.xlu0 %836, %v834
        %v838 = vpop.permute.xlu0 %837
        %v840 = vmul.f32 %v316, %v838
        %v841 = vadd.f32 %v292, %v840
        %v842 = vand.u32 2147483647, %v841
        %v843 = vmul.f32 %v842, %v315
        %v844 = vrsqrt.pop %v843
        %v845 = vmul.f32 %v844, %v843
        %v846 = vmul.f32 %v845, %v844
        %v847 = vmul.f32 0.5, %v846
        %v848 = vsub.f32 1.5, %v847
        %v849 = vmul.f32 %v844, %v848
        %v850 = vmul.f32 %v843, %v849
        %vm851 = vcmp.eq.f32.partialorder %v843, inf
        %v852 = vsel %vm851, %v843, %v850
        %vm853 = vcmp.eq.f32.partialorder %v843, 0.0
        %v854 = vand.u32 %v843, 2147483648
        %v855 = vsel %vm853, %v854, %v852
        %s856 = scalar_lea.vmem %s270, 36
        %v857 = vld [vmem:[%s856] sm:$0xf]
        %v858 = vunpack.c.l.bf16 %v857
        %v859 = vmul.f32 %v858, %v855
        %v860 = vadd.f32 %v841, %v859
        %s861 = scalar_lea.vmem %s266, 80
        %v862 = vld [vmem:[%s861] sm:$0xff]
        %864 = vset.pattern.permute.xlu0 0
        %865 = vperm.xlu0 %864, %v862
        %v866 = vpop.permute.xlu0 %865
        %v868 = vmul.f32 %v316, %v866
        %v869 = vmul.f32 %v346, %v866
        %v870 = vadd.f32 %v292, %v868
        %v871 = vadd.f32 %v322, %v869
        %v872 = vand.u32 2147483647, %v870
        %v873 = vand.u32 2147483647, %v871
        %v874 = vmul.f32 %v872, %v315
        %v875 = vmul.f32 %v873, %v345
        %v876 = vrsqrt.pop %v874
        %v877 = vmul.f32 %v876, %v874
        %v878 = vmul.f32 %v877, %v876
        %v879 = vmul.f32 0.5, %v878
        %v880 = vsub.f32 1.5, %v879
        %v881 = vmul.f32 %v876, %v880
        %v882 = vmul.f32 %v874, %v881
        %vm883 = vcmp.eq.f32.partialorder %v874, inf
        %v884 = vsel %vm883, %v874, %v882
        %vm885 = vcmp.eq.f32.partialorder %v874, 0.0
        %v886 = vand.u32 %v874, 2147483648
        %v887 = vsel %vm885, %v886, %v884
        %v888 = vrsqrt.pop %v875
        %v889 = vmul.f32 %v888, %v875
        %v890 = vmul.f32 %v889, %v888
        %v891 = vmul.f32 0.5, %v890
        %v892 = vsub.f32 1.5, %v891
        %v893 = vmul.f32 %v888, %v892
        %v894 = vmul.f32 %v875, %v893
        %vm895 = vcmp.eq.f32.partialorder %v875, inf
        %v896 = vsel %vm895, %v875, %v894
        %vm897 = vcmp.eq.f32.partialorder %v875, 0.0
        %v898 = vand.u32 %v875, 2147483648
        %v899 = vsel %vm897, %v898, %v896
        %s900 = scalar_lea.vmem %s270, 40
        %v901 = vld [vmem:[%s900] sm:$0xf]
        %v902 = vunpack.c.l.bf16 %v901
        %905 = vrot.lane.b32.xlu0 %v887, 127
        %v906 = vpop.permute.xlu0 %905
        %907 = vrot.lane.b32.xlu0 %v899, 127
        %v908 = vpop.permute.xlu0 %907
        %v909 = vsel %vm421, %v906, %v908
        %v911 = vmul.f32 %v902, %v909
        %913 = vrot.lane.b32.xlu0 %v911, 1
        %v914 = vpop.permute.xlu0 %913
        %v916 = vadd.f32 %v870, %v914
        %v917 = vadd.f32 %v871, %v914
        %920 = vrot.lane.b32.xlu0 %v916, 127
        %v921 = vpop.permute.xlu0 %920
        %922 = vrot.lane.b32.xlu0 %v917, 127
        %v923 = vpop.permute.xlu0 %922
        %v924 = vsel %vm421, %v921, %v923
        %v926 = vadd.f32 %v860, %v924
        %s927 = scalar_lea.vmem %s266, 88
        %v928 = vld [vmem:[%s927] sm:$0xff]
        %930 = vset.pattern.permute.xlu0 0
        %931 = vperm.xlu0 %930, %v928
        %v932 = vpop.permute.xlu0 %931
        %v934 = vmul.f32 %v316, %v932
        %v935 = vmul.f32 %v346, %v932
        %v936 = vadd.f32 %v292, %v934
        %v937 = vadd.f32 %v322, %v935
        %v938 = vand.u32 2147483647, %v936
        %v939 = vand.u32 2147483647, %v937
        %v940 = vmul.f32 %v938, %v315
        %v941 = vmul.f32 %v939, %v345
        %v942 = vrsqrt.pop %v940
        %v943 = vmul.f32 %v942, %v940
        %v944 = vmul.f32 %v943, %v942
        %v945 = vmul.f32 0.5, %v944
        %v946 = vsub.f32 1.5, %v945
        %v947 = vmul.f32 %v942, %v946
        %v948 = vmul.f32 %v940, %v947
        %vm949 = vcmp.eq.f32.partialorder %v940, inf
        %v950 = vsel %vm949, %v940, %v948
        %vm951 = vcmp.eq.f32.partialorder %v940, 0.0
        %v952 = vand.u32 %v940, 2147483648
        %v953 = vsel %vm951, %v952, %v950
        %v954 = vrsqrt.pop %v941
        %v955 = vmul.f32 %v954, %v941
        %v956 = vmul.f32 %v955, %v954
        %v957 = vmul.f32 0.5, %v956
        %v958 = vsub.f32 1.5, %v957
        %v959 = vmul.f32 %v954, %v958
        %v960 = vmul.f32 %v941, %v959
        %vm961 = vcmp.eq.f32.partialorder %v941, inf
        %v962 = vsel %vm961, %v941, %v960
        %vm963 = vcmp.eq.f32.partialorder %v941, 0.0
        %v964 = vand.u32 %v941, 2147483648
        %v965 = vsel %vm963, %v964, %v962
        %s966 = scalar_lea.vmem %s270, 44
        %v967 = vld [vmem:[%s966] sm:$0xf]
        %v968 = vunpack.c.l.bf16 %v967
        %971 = vrot.lane.b32.xlu0 %v953, 126
        %v972 = vpop.permute.xlu0 %971
        %973 = vrot.lane.b32.xlu0 %v965, 126
        %v974 = vpop.permute.xlu0 %973
        %v975 = vsel %vm488, %v972, %v974
        %v977 = vmul.f32 %v968, %v975
        %979 = vrot.lane.b32.xlu0 %v977, 2
        %v980 = vpop.permute.xlu0 %979
        %v982 = vadd.f32 %v936, %v980
        %v983 = vadd.f32 %v937, %v980
        %986 = vrot.lane.b32.xlu0 %v982, 126
        %v987 = vpop.permute.xlu0 %986
        %988 = vrot.lane.b32.xlu0 %v983, 126
        %v989 = vpop.permute.xlu0 %988
        %v990 = vsel %vm488, %v987, %v989
        %v992 = vadd.f32 %v926, %v990
        %v993 = vsub.f32 %v832, %v992
        %v994 = vmul.f32 %v993, 2560000.0
        %v995 = vround.ne.pseudo %v994
        %v996 = vmax.f32 %v995, -2048.0
        %v997 = vmin.f32 %v996, 2048.0
        %v998 = vmul.f32 %v997, 3.90625e-05
        %v999 = vadd.f32 %v672, %v998
        %v1000 = vld [vmem:[%s274] sm:$0xff]
        %1002 = vset.pattern.permute.xlu0 0
        %1003 = vperm.xlu0 %1002, %v1000
        %v1004 = vpop.permute.xlu0 %1003
        %v1006 = vadd.f32 %v999, %v1004
        %1007 = vst [vmem:[%s253] sm:$0xff] %v1006
        %s1008 = sand.u32 %s146, 1
        %s1009 = scalar_lea.sflag [#allocation3], %s1008
        %s1010 = sand.u32 %s146, 1
        %s1011 = smul.addr %s1010, 8
        %s1012 = scalar_lea.vmem [#allocation2], %s1011
        // Predicated region
        $region37: #{tpu_custom_call.1} parent=35 // pred_check
          %p1013 = pneg %p156
        $region38: #{tpu_custom_call.1} parent=35 // pred_check_branch
          %1015 = sbr.rel (%p1013) target = $region40
        $region39: #{tpu_custom_call.1} parent=35 // pred_region
          %1017 = vsyncadd %s1009, 0
          %s1018 = sadd.s32 %s22, %s23
          %s1019 = smul.addr %s1018, 8
          %s1020 = scalar_lea.hbm %s4, %s1019
          %s1022 = sshll.u32 %s1012, 4
          %s1023 = int_to_ptr.vmem [resolvable:$true] %s1022
          %s1024 = sshll.u32 %s1020, 4
          %s1025 = int_to_ptr.hbm [resolvable:$true] %s1024
          %1027 = dma.vmem_to_hbm [thread:$0]  %s1023, 128, %s1025, %s1009
        $region40: #{tpu_custom_call.1} parent=35 // pred_fallthru
          _
      $region36: #{tpu_custom_call.1} parent=5 // pred_fallthru
        _
      %p1028 = scmp.le.s32.totalorder 2, %s13
      // Predicated region
      $region41: #{tpu_custom_call.1} parent=5 // pred_check
        %p1029 = pneg %p1028
      $region42: #{tpu_custom_call.1} parent=5 // pred_check_branch
        %1031 = sbr.rel (%p1029) target = $region44
      $region43: #{tpu_custom_call.1} parent=5 // pred_region
        %s1032 = ssub.s32 %s13, 2
        // Predicated region
        $region45: #{tpu_custom_call.1} parent=43 // pred_check
          %p1033 = pneg %p162
        $region46: #{tpu_custom_call.1} parent=43 // pred_check_branch
          %1035 = sbr.rel (%p1033) target = $region48
        $region47: #{tpu_custom_call.1} parent=43 // pred_region
          %s1036 = sand.u32 %s147, 1
          %s1037 = scalar_lea.sflag [#allocation3], %s1036
          %s1038 = sand.u32 %s147, 1
          %s1039 = smul.addr %s1038, 8
          %s1040 = scalar_lea.vmem [#allocation2], %s1039
          %1042 = dma.done %s1037, 128
        $region48: #{tpu_custom_call.1} parent=43 // pred_fallthru
          _
      $region44: #{tpu_custom_call.1} parent=5 // pred_fallthru
        _
    $region6: #{tpu_custom_call.1} parent=1 // loop_footer
      %s17 = sadd.s32 1, %s13
    $region7: #{tpu_custom_call.1} parent=1 // loop_footer_branch
      %12 = sbr.rel target = $region3
    $region8: #{tpu_custom_call.1} parent=1 // loop_exit
      _
    %1043 = vsyncpa [#allocation3], 1
    %s1044 = scalar_lea.sflag [#allocation3], 1
    %1045 = vsyncpa %s1044, 1

// kernel: tpu_custom_call.1
$region0: #{tpu_custom_call.1}
  #allocation0 [shape = 'u32[]', space=smem, size = 0x4, offset = 0x4, fixed_abs, tag = 'smem constant byte address 0x4 - core index']
  #allocation1 [shape = 'u32[72,128]{1,0:T(1,128)}', space=vmem, size = 0x9000, scoped, tag = 'internal scratch']
  %s0 = inlined_call_operand.vmem [shape: f32[2,8,130], index: 0, kind: input, shape index: {}]
  %s1 = inlined_call_operand.vmem [shape: f32[2,2,3,8,1], index: 1, kind: input, shape index: {}]
  %s2 = inlined_call_operand.vmem [shape: bf16[2,2,3,8,128], index: 2, kind: input, shape index: {}]
  %s3 = inlined_call_operand.vmem [shape: f32[8,1], index: 3, kind: input, shape index: {}]
  %s4 = inlined_call_operand.hbm [shape: f32[2,8,128], index: 4, kind: output, shape index: {}]
  %s5 = sld [smem:[#allocation0]]
  $region49: #{tpu_custom_call.1} parent=0
    _
  %s7 = ssub.s32 1, %s5
  %s8 = scalar_select 0, %s7, %s5
  $region1: #{tpu_custom_call.1} parent=0
    #allocation2 [shape = 'u8[8192]{0}', space=vmem, size = 0x2000, scoped, tag = 'output window, operand 0']
    #allocation3 [shape = 's32[2]{0}', space=sflag, size = 0x8, scoped, tag = 'scoped memory for tpu_custom_call.1']
    %9 = vsyncpa [#allocation3], 0
    %s10 = scalar_lea.sflag [#allocation3], 1
    %11 = vsyncpa %s10, 0
    loop: start=0, step=1, limit=4
    $region2: #{tpu_custom_call.1} parent=1 // loop_pre_header
      _
    $region3: #{tpu_custom_call.1} parent=1 // loop_header
      %s13 = sphi 0, %s17
      %p14 = scmp.ge.s32.totalorder %s13, 4
      %s20 = sphi 0, %s32
      %s21 = sphi 0, %s28
      %s22 = sphi 0, %s20
      %s23 = sphi 0, %s21
      %s24 = sphi 0, %s22
      %s25 = sphi 0, %s23
      %s37 = sphi 0, %s39
      %s40 = sphi 0, %s37
      %s41 = sphi 0, %s40
      %s57 = sphi 0, %s41
      %s63 = sphi 0, %s65
      %s66 = sphi 0, %s63
      %s67 = sphi 0, %s66
      %s83 = sphi 0, %s67
      %s89 = sphi 0, %s91
      %s92 = sphi 0, %s89
      %s93 = sphi 0, %s92
      %s109 = sphi 0, %s93
      %s115 = sphi 0, %s117
      %s118 = sphi 0, %s115
      %s119 = sphi 0, %s118
      %s135 = sphi 0, %s119
      %s143 = sphi 0, %s145
      %s146 = sphi 0, %s143
      %s147 = sphi 0, %s146
      %s163 = sphi 0, %s147
    $region4: #{tpu_custom_call.1} parent=1 // loop_header_branch
      %16 = sbr.rel (%p14) target = $region8
    $region5: #{tpu_custom_call.1} parent=1 // loop_body
      %s18 = ssub.s32 %s13, 1
      %s19 = ssub.s32 %s13, 2
      %s26 = sadd.s32 1, %s21
      %p27 = scmp.ge.s32.totalorder %s26, 2
      %s28 = scalar_select %p27, 0, %s26
      %s29 = sadd.s32 1, %s20
      %s30 = scalar_select %p27, %s29, %s20
      %p31 = scmp.ge.s32.totalorder %s30, 1
      %s32 = scalar_select %p31, 0, %s30
      %s33 = ssub.s32 %s21, %s28
      %s34 = ssub.s32 %s20, %s32
      %s35 = sor.u32 %s33, %s34
      %p36 = scmp.eq.s32.totalorder %s35, 0
      %s38 = sadd.s32 %s37, 1
      %s39 = scalar_select %p36, %s37, %s38
      %p42 = pneg %p36
      %p43 = scmp.eq.s32.totalorder %s13, 1
      %p44 = por %p42, %p43
      %p45 = scmp.ne.s32.totalorder %s37, %s40
      %p46 = scmp.eq.s32.totalorder %s13, 0
      %p47 = por %p45, %p46
      %p48 = scmp.ne.s32.totalorder %s37, %s40
      %p49 = scmp.eq.s32.totalorder %s18, 1
      %p50 = por %p48, %p49
      %p51 = scmp.ne.s32.totalorder %s40, %s41
      %p52 = scmp.eq.s32.totalorder %s18, 0
      %p53 = por %p51, %p52
      %p54 = scmp.ne.s32.totalorder %s40, %s41
      %p55 = scmp.eq.s32.totalorder %s19, 1
      %p56 = por %p54, %p55
      %p58 = scmp.ne.s32.totalorder %s41, %s57
      %p59 = scmp.eq.s32.totalorder %s19, 0
      %p60 = por %p58, %p59
      %s61 = ssub.s32 %s20, %s32
      %p62 = scmp.eq.s32.totalorder %s61, 0
      %s64 = sadd.s32 %s63, 1
      %s65 = scalar_select %p62, %s63, %s64
      %p68 = pneg %p62
      %p69 = scmp.eq.s32.totalorder %s13, 1
      %p70 = por %p68, %p69
      %p71 = scmp.ne.s32.totalorder %s63, %s66
      %p72 = scmp.eq.s32.totalorder %s13, 0
      %p73 = por %p71, %p72
      %p74 = scmp.ne.s32.totalorder %s63, %s66
      %p75 = scmp.eq.s32.totalorder %s18, 1
      %p76 = por %p74, %p75
      %p77 = scmp.ne.s32.totalorder %s66, %s67
      %p78 = scmp.eq.s32.totalorder %s18, 0
      %p79 = por %p77, %p78
      %p80 = scmp.ne.s32.totalorder %s66, %s67
      %p81 = scmp.eq.s32.totalorder %s19, 1
      %p82 = por %p80, %p81
      %p84 = scmp.ne.s32.totalorder %s67, %s83
      %p85 = scmp.eq.s32.totalorder %s19, 0
      %p86 = por %p84, %p85
      %s87 = ssub.s32 %s20, %s32
      %p88 = scmp.eq.s32.totalorder %s87, 0
      %s90 = sadd.s32 %s89, 1
      %s91 = scalar_select %p88, %s89, %s90
      %p94 = pneg %p88
      %p95 = scmp.eq.s32.totalorder %s13, 1
      %p96 = por %p94, %p95
      %p97 = scmp.ne.s32.totalorder %s89, %s92
      %p98 = scmp.eq.s32.totalorder %s13, 0
      %p99 = por %p97, %p98
      %p100 = scmp.ne.s32.totalorder %s89, %s92
      %p101 = scmp.eq.s32.totalorder %s18, 1
      %p102 = por %p100, %p101
      %p103 = scmp.ne.s32.totalorder %s92, %s93
      %p104 = scmp.eq.s32.totalorder %s18, 0
      %p105 = por %p103, %p104
      %p106 = scmp.ne.s32.totalorder %s92, %s93
      %p107 = scmp.eq.s32.totalorder %s19, 1
      %p108 = por %p106, %p107
      %p110 = scmp.ne.s32.totalorder %s93, %s109
      %p111 = scmp.eq.s32.totalorder %s19, 0
      %p112 = por %p110, %p111
      %s113 = ssub.s32 %s20, %s32
      %p114 = scmp.eq.s32.totalorder %s113, 0
      %s116 = sadd.s32 %s115, 1
      %s117 = scalar_select %p114, %s115, %s116
      %p120 = pneg %p114
      %p121 = scmp.eq.s32.totalorder %s13, 1
      %p122 = por %p120, %p121
      %p123 = scmp.ne.s32.totalorder %s115, %s118
      %p124 = scmp.eq.s32.totalorder %s13, 0
      %p125 = por %p123, %p124
      %p126 = scmp.ne.s32.totalorder %s115, %s118
      %p127 = scmp.eq.s32.totalorder %s18, 1
      %p128 = por %p126, %p127
      %p129 = scmp.ne.s32.totalorder %s118, %s119
      %p130 = scmp.eq.s32.totalorder %s18, 0
      %p131 = por %p129, %p130
      %p132 = scmp.ne.s32.totalorder %s118, %s119
      %p133 = scmp.eq.s32.totalorder %s19, 1
      %p134 = por %p132, %p133
      %p136 = scmp.ne.s32.totalorder %s119, %s135
      %p137 = scmp.eq.s32.totalorder %s19, 0
      %p138 = por %p136, %p137
      %s139 = ssub.s32 %s21, %s28
      %s140 = ssub.s32 %s20, %s32
      %s141 = sor.u32 %s139, %s140
      %p142 = scmp.eq.s32.totalorder %s141, 0
      %s144 = sadd.s32 %s143, 1
      %s145 = scalar_select %p142, %s143, %s144
      %p148 = pneg %p142
      %p149 = scmp.eq.s32.totalorder %s13, 1
      %p150 = por %p148, %p149
      %p151 = scmp.ne.s32.totalorder %s143, %s146
      %p152 = scmp.eq.s32.totalorder %s13, 0
      %p153 = por %p151, %p152
      %p154 = scmp.ne.s32.totalorder %s143, %s146
      %p155 = scmp.eq.s32.totalorder %s18, 1
      %p156 = por %p154, %p155
      %p157 = scmp.ne.s32.totalorder %s146, %s147
      %p158 = scmp.eq.s32.totalorder %s18, 0
      %p159 = por %p157, %p158
      %p160 = scmp.ne.s32.totalorder %s146, %s147
      %p161 = scmp.eq.s32.totalorder %s19, 1
      %p162 = por %p160, %p161
      %p164 = scmp.ne.s32.totalorder %s147, %s163
      %p165 = scmp.eq.s32.totalorder %s19, 0
      %p166 = por %p164, %p165
      %p167 = scmp.le.s32.totalorder 1, %s13
      %p168 = scmp.lt.s32.totalorder %s13, 3
      %p169 = pnand %p167, %p168
      %p170 = pneg %p169
      // Predicated region
      $region9: #{tpu_custom_call.1} parent=5 // pred_check
        _
      $region10: #{tpu_custom_call.1} parent=5 // pred_check_branch
        %172 = sbr.rel (%p169) target = $region12
      $region11: #{tpu_custom_call.1} parent=5 // pred_region
        %s173 = ssub.s32 %s13, 1
        // Predicated region
        $region13: #{tpu_custom_call.1} parent=11 // pred_check
          %p174 = pneg %p79
        $region14: #{tpu_custom_call.1} parent=11 // pred_check_branch
          %176 = sbr.rel (%p174) target = $region16
        $region15: #{tpu_custom_call.1} parent=11 // pred_region
          %p177 = scmp.lt.s32.totalorder %s22, 0
          %s178 = scalar_select %p177, %s22, 0
          %s179 = smul.addr %s178, 8
          %s180 = scalar_lea.vmem %s1, %s179
        $region16: #{tpu_custom_call.1} parent=11 // pred_fallthru
          _
        // Predicated region
        $region17: #{tpu_custom_call.1} parent=11 // pred_check
          %p181 = pneg %p105
        $region18: #{tpu_custom_call.1} parent=11 // pred_check_branch
          %183 = sbr.rel (%p181) target = $region20
        $region19: #{tpu_custom_call.1} parent=11 // pred_region
          %p184 = scmp.lt.s32.totalorder %s22, 0
          %s185 = scalar_select %p184, %s22, 0
          %s186 = smul.addr %s185, 4
          %s187 = scalar_lea.vmem %s2, %s186
        $region20: #{tpu_custom_call.1} parent=11 // pred_fallthru
          _
        // Predicated region
        $region21: #{tpu_custom_call.1} parent=11 // pred_check
          %p188 = pneg %p131
        $region22: #{tpu_custom_call.1} parent=11 // pred_check_branch
          %190 = sbr.rel (%p188) target = $region24
        $region23: #{tpu_custom_call.1} parent=11 // pred_region
          %p191 = scmp.lt.s32.totalorder %s22, 0
          %s192 = scalar_select %p191, %s22, 0
          %s193 = smul.addr %s192, 8
          %s194 = scalar_lea.vmem %s3, %s193
        $region24: #{tpu_custom_call.1} parent=11 // pred_fallthru
          _
      $region12: #{tpu_custom_call.1} parent=5 // pred_fallthru
        _
      %p195 = scmp.lt.s32.totalorder %s13, 2
      // Predicated region
      $region25: #{tpu_custom_call.1} parent=5 // pred_check
        %p196 = pneg %p195
      $region26: #{tpu_custom_call.1} parent=5 // pred_check_branch
        %198 = sbr.rel (%p196) target = $region28
      $region27: #{tpu_custom_call.1} parent=5 // pred_region
        // Predicated region
        $region29: #{tpu_custom_call.1} parent=27 // pred_check
          %p199 = pneg %p47
        $region30: #{tpu_custom_call.1} parent=27 // pred_check_branch
          %201 = sbr.rel (%p199) target = $region32
        $region31: #{tpu_custom_call.1} parent=27 // pred_region
          %p202 = scmp.lt.s32.totalorder %s21, 1
          %s203 = scalar_select %p202, %s21, 1
          %p204 = scmp.lt.s32.totalorder %s20, 0
          %s205 = scalar_select %p204, %s20, 0
          %s206 = smul.addr %s205, 2
          %s207 = smul.addr %s203, 2
          %s208 = sadd.s32 %s206, %s207
          %s209 = smul.addr %s208, 8
          %s210 = scalar_lea.vmem %s0, %s209
        $region32: #{tpu_custom_call.1} parent=27 // pred_fallthru
          _
      $region28: #{tpu_custom_call.1} parent=5 // pred_fallthru
        _
      %p211 = scmp.le.s32.totalorder 1, %s13
      %p212 = scmp.lt.s32.totalorder %s13, 3
      %p213 = pnand %p211, %p212
      %p214 = pneg %p213
      // Predicated region
      $region33: #{tpu_custom_call.1} parent=5 // pred_check
        _
      $region34: #{tpu_custom_call.1} parent=5 // pred_check_branch
        %216 = sbr.rel (%p213) target = $region36
      $region35: #{tpu_custom_call.1} parent=5 // pred_region
        %s217 = ssub.s32 %s13, 1
        %p218 = scmp.lt.s32.totalorder %s23, 1
        %s219 = scalar_select %p218, %s23, 1
        %p220 = scmp.lt.s32.totalorder %s22, 0
        %s221 = scalar_select %p220, %s22, 0
        %s222 = smul.addr %s221, 2
        %s223 = smul.addr %s219, 2
        %s224 = sadd.s32 %s222, %s223
        %s225 = smul.addr %s224, 8
        %s226 = scalar_lea.vmem %s0, %s225
        %p227 = pneg %p53
        %p228 = pneg %p50
        %p229 = scmp.lt.s32.totalorder %s22, 0
        %s230 = scalar_select %p229, %s22, 0
        %s231 = smul.addr %s230, 8
        %s232 = scalar_lea.vmem %s1, %s231
        %p233 = pneg %p79
        %p234 = pneg %p76
        %p235 = scmp.lt.s32.totalorder %s22, 0
        %s236 = scalar_select %p235, %s22, 0
        %s237 = smul.addr %s236, 4
        %s238 = scalar_lea.vmem %s2, %s237
        %p239 = pneg %p105
        %p240 = pneg %p102
        %p241 = scmp.lt.s32.totalorder %s22, 0
        %s242 = scalar_select %p241, %s22, 0
        %s243 = smul.addr %s242, 8
        %s244 = scalar_lea.vmem %s3, %s243
        %p245 = pneg %p131
        %p246 = pneg %p128
        %p247 = pneg %p159
        %p248 = pneg %p156
        %s249 = sand.u32 %s146, 1
        %s250 = scalar_lea.sflag [#allocation3], %s249
        %s251 = sand.u32 %s146, 1
        %s252 = smul.addr %s251, 8
        %s253 = scalar_lea.vmem [#allocation2], %s252
        %p254 = scmp.lt.s32.totalorder %s23, 1
        %s255 = scalar_select %p254, %s23, 1
        %p256 = scmp.lt.s32.totalorder %s22, 0
        %s257 = scalar_select %p256, %s22, 0
        %s258 = smul.addr %s257, 2
        %s259 = smul.addr %s255, 2
        %s260 = sadd.s32 %s258, %s259
        %s261 = smul.addr %s260, 8
        %s262 = scalar_lea.vmem %s0, %s261
        %p263 = scmp.lt.s32.totalorder %s22, 0
        %s264 = scalar_select %p263, %s22, 0
        %s265 = smul.addr %s264, 8
        %s266 = scalar_lea.vmem %s1, %s265
        %p267 = scmp.lt.s32.totalorder %s22, 0
        %s268 = scalar_select %p267, %s22, 0
        %s269 = smul.addr %s268, 4
        %s270 = scalar_lea.vmem %s2, %s269
        %p271 = scmp.lt.s32.totalorder %s22, 0
        %s272 = scalar_select %p271, %s22, 0
        %s273 = smul.addr %s272, 8
        %s274 = scalar_lea.vmem %s3, %s273
        %v275 = vld [vmem:[%s262] sm:$0xff]
        %v276 = vld [vmem:[%s262 + $0x8] sm:$0xff]
        %v277 = vmul.f32 %v275, 128.0
        %v278 = vmul.f32 %v276, 128.0
        %v279 = vround.ne.pseudo %v277
        %v280 = vround.ne.pseudo %v278
        %v281 = vmax.f32 %v279, -128.0
        %v282 = vmax.f32 %v280, -128.0
        %v283 = vmin.f32 %v281, 128.0
        %v284 = vmin.f32 %v282, 128.0
        %v285 = vmul.f32 %v283, 0.0046875
        %v286 = vmul.f32 %v284, 0.0046875
        %v287 = vmul.f32 %v285, %v285
        %v288 = vmul.f32 %v287, 1e-06
        %v289 = vadd.f32 %v288, 1e-05
        %v290 = vmul.f32 %v289, %v287
        %v291 = vadd.f32 %v290, 0.0002
        %v292 = vmul.f32 %v285, %v291
        %v293 = vmul.f32 %v287, 1e-08
        %v294 = vadd.f32 %v293, 1e-07
        %v295 = vmul.f32 %v294, %v287
        %v296 = vadd.f32 %v295, 2e-06
        %v297 = vmul.f32 %v285, %v296
        %v298 = vand.u32 2147483647, %v285
        %v299 = vadd.f32 %v298, 1e-12
        %v300 = vrcp.pop %v299
        %v301 = vmul.f32 %v299, %v300
        %v302 = vsub.f32 1.0, %v301
        %v303 = vmul.f32 %v300, %v302
        %v304 = vadd.f32 %v300, %v303
        %vm305 = vweird.f32 %v299
        %vm306 = vweird.f32 %v300
        %vm307 = vmor %vm305, %vm306
        %v308 = vsel %vm307, %v300, %v304
        %v309 = vand.u32 2147483647, %v299
        %vm310 = vcmp.eq.f32.partialorder %v309, 8.507059e+37
        %v311 = vand.u32 %v299, 2147483648
        %v312 = vor.u32 1.1754944e-38, %v311
        %v313 = vsel %vm310, %v312, %v308
        %v314 = vmul.f32 1.6567788e-28, %v313
        %v315 = vadd.f32 %v314, 5.4365636e-08
        %v316 = vsub.f32 %v297, %v292
        %v317 = vmul.f32 %v286, %v286
        %v318 = vmul.f32 %v317, 1e-06
        %v319 = vadd.f32 %v318, 1e-05
        %v320 = vmul.f32 %v319, %v317
        %v321 = vadd.f32 %v320, 0.0002
        %v322 = vmul.f32 %v286, %v321
        %v323 = vmul.f32 %v317, 1e-08
        %v324 = vadd.f32 %v323, 1e-07
        %v325 = vmul.f32 %v324, %v317
        %v326 = vadd.f32 %v325, 2e-06
        %v327 = vmul.f32 %v286, %v326
        %v328 = vand.u32 2147483647, %v286
        %v329 = vadd.f32 %v328, 1e-12
        %v330 = vrcp.pop %v329
        %v331 = vmul.f32 %v329, %v330
        %v332 = vsub.f32 1.0, %v331
        %v333 = vmul.f32 %v330, %v332
        %v334 = vadd.f32 %v330, %v333
        %vm335 = vweird.f32 %v329
        %vm336 = vweird.f32 %v330
        %vm337 = vmor %vm335, %vm336
        %v338 = vsel %vm337, %v330, %v334
        %v339 = vand.u32 2147483647, %v329
        %vm340 = vcmp.eq.f32.partialorder %v339, 8.507059e+37
        %v341 = vand.u32 %v329, 2147483648
        %v342 = vor.u32 1.1754944e-38, %v341
        %v343 = vsel %vm340, %v342, %v338
        %v344 = vmul.f32 1.6567788e-28, %v343
        %v345 = vadd.f32 %v344, 5.4365636e-08
        %v346 = vsub.f32 %v327, %v322
        %v347 = vld [vmem:[%s266] sm:$0xff]
        %349 = vset.pattern.permute.xlu0 0
        %350 = vperm.xlu0 %349, %v347
        %v351 = vpop.permute.xlu0 %350
        %v353 = vmul.f32 %v316, %v351
        %v354 = vadd.f32 %v292, %v353
        %v355 = vand.u32 2147483647, %v354
        %v356 = vmul.f32 %v355, %v315
        %v357 = vrsqrt.pop %v356
        %v358 = vmul.f32 %v357, %v356
        %v359 = vmul.f32 %v358, %v357
        %v360 = vmul.f32 0.5, %v359
        %v361 = vsub.f32 1.5, %v360
        %v362 = vmul.f32 %v357, %v361
        %v363 = vmul.f32 %v356, %v362
        %vm364 = vcmp.eq.f32.partialorder %v356, inf
        %v365 = vsel %vm364, %v356, %v363
        %vm366 = vcmp.eq.f32.partialorder %v356, 0.0
        %v367 = vand.u32 %v356, 2147483648
        %v368 = vsel %vm366, %v367, %v365
        %v369 = vld [vmem:[%s270] sm:$0xf]
        %v370 = vunpack.c.l.bf16 %v369
        %v371 = vmul.f32 %v370, %v368
        %v372 = vadd.f32 %v354, %v371
        %s373 = scalar_lea.vmem %s266, 8
        %v374 = vld [vmem:[%s373] sm:$0xff]
        %376 = vset.pattern.permute.xlu0 0
        %377 = vperm.xlu0 %376, %v374
        %v378 = vpop.permute.xlu0 %377
        %v380 = vmul.f32 %v316, %v378
        %v381 = vmul.f32 %v346, %v378
        %v382 = vadd.f32 %v292, %v380
        %v383 = vadd.f32 %v322, %v381
        %v384 = vand.u32 2147483647, %v382
        %v385 = vand.u32 2147483647, %v383
        %v386 = vmul.f32 %v384, %v315
        %v387 = vmul.f32 %v385, %v345
        %v388 = vrsqrt.pop %v386
        %v389 = vmul.f32 %v388, %v386
        %v390 = vmul.f32 %v389, %v388
        %v391 = vmul.f32 0.5, %v390
        %v392 = vsub.f32 1.5, %v391
        %v393 = vmul.f32 %v388, %v392
        %v394 = vmul.f32 %v386, %v393
        %vm395 = vcmp.eq.f32.partialorder %v386, inf
        %v396 = vsel %vm395, %v386, %v394
        %vm397 = vcmp.eq.f32.partialorder %v386, 0.0
        %v398 = vand.u32 %v386, 2147483648
        %v399 = vsel %vm397, %v398, %v396
        %v400 = vrsqrt.pop %v387
        %v401 = vmul.f32 %v400, %v387
        %v402 = vmul.f32 %v401, %v400
        %v403 = vmul.f32 0.5, %v402
        %v404 = vsub.f32 1.5, %v403
        %v405 = vmul.f32 %v400, %v404
        %v406 = vmul.f32 %v387, %v405
        %vm407 = vcmp.eq.f32.partialorder %v387, inf
        %v408 = vsel %vm407, %v387, %v406
        %vm409 = vcmp.eq.f32.partialorder %v387, 0.0
        %v410 = vand.u32 %v387, 2147483648
        %v411 = vsel %vm409, %v410, %v408
        %s412 = scalar_lea.vmem %s270, 4
        %v413 = vld [vmem:[%s412] sm:$0xf]
        %v414 = vunpack.c.l.bf16 %v413
        %417 = vrot.lane.b32.xlu0 %v399, 127
        %v418 = vpop.permute.xlu0 %417
        %419 = vrot.lane.b32.xlu0 %v411, 127
        %v420 = vpop.permute.xlu0 %419
        %vm421 = vcmask 1039360
        %v422 = vsel %vm421, %v418, %v420
        %v424 = vmul.f32 %v414, %v422
        %426 = vrot.lane.b32.xlu0 %v424, 1
        %v427 = vpop.permute.xlu0 %426
        %v429 = vadd.f32 %v382, %v427
        %v430 = vadd.f32 %v383, %v427
        %433 = vrot.lane.b32.xlu0 %v429, 127
        %v434 = vpop.permute.xlu0 %433
        %435 = vrot.lane.b32.xlu0 %v430, 127
        %v436 = vpop.permute.xlu0 %435
        %v437 = vsel %vm421, %v434, %v436
        %v439 = vadd.f32 %v372, %v437
        %s440 = scalar_lea.vmem %s266, 16
        %v441 = vld [vmem:[%s440] sm:$0xff]
        %443 = vset.pattern.permute.xlu0 0
        %444 = vperm.xlu0 %443, %v441
        %v445 = vpop.permute.xlu0 %444
        %v447 = vmul.f32 %v316, %v445
        %v448 = vmul.f32 %v346, %v445
        %v449 = vadd.f32 %v292, %v447
        %v450 = vadd.f32 %v322, %v448
        %v451 = vand.u32 2147483647, %v449
        %v452 = vand.u32 2147483647, %v450
        %v453 = vmul.f32 %v451, %v315
        %v454 = vmul.f32 %v452, %v345
        %v455 = vrsqrt.pop %v453
        %v456 = vmul.f32 %v455, %v453
        %v457 = vmul.f32 %v456, %v455
        %v458 = vmul.f32 0.5, %v457
        %v459 = vsub.f32 1.5, %v458
        %v460 = vmul.f32 %v455, %v459
        %v461 = vmul.f32 %v453, %v460
        %vm462 = vcmp.eq.f32.partialorder %v453, inf
        %v463 = vsel %vm462, %v453, %v461
        %vm464 = vcmp.eq.f32.partialorder %v453, 0.0
        %v465 = vand.u32 %v453, 2147483648
        %v466 = vsel %vm464, %v465, %v463
        %v467 = vrsqrt.pop %v454
        %v468 = vmul.f32 %v467, %v454
        %v469 = vmul.f32 %v468, %v467
        %v470 = vmul.f32 0.5, %v469
        %v471 = vsub.f32 1.5, %v470
        %v472 = vmul.f32 %v467, %v471
        %v473 = vmul.f32 %v454, %v472
        %vm474 = vcmp.eq.f32.partialorder %v454, inf
        %v475 = vsel %vm474, %v454, %v473
        %vm476 = vcmp.eq.f32.partialorder %v454, 0.0
        %v477 = vand.u32 %v454, 2147483648
        %v478 = vsel %vm476, %v477, %v475
        %s479 = scalar_lea.vmem %s270, 8
        %v480 = vld [vmem:[%s479] sm:$0xf]
        %v481 = vunpack.c.l.bf16 %v480
        %484 = vrot.lane.b32.xlu0 %v466, 126
        %v485 = vpop.permute.xlu0 %484
        %486 = vrot.lane.b32.xlu0 %v478, 126
        %v487 = vpop.permute.xlu0 %486
        %vm488 = vcmask 1031168
        %v489 = vsel %vm488, %v485, %v487
        %v491 = vmul.f32 %v481, %v489
        %493 = vrot.lane.b32.xlu0 %v491, 2
        %v494 = vpop.permute.xlu0 %493
        %v496 = vadd.f32 %v449, %v494
        %v497 = vadd.f32 %v450, %v494
        %500 = vrot.lane.b32.xlu0 %v496, 126
        %v501 = vpop.permute.xlu0 %500
        %502 = vrot.lane.b32.xlu0 %v497, 126
        %v503 = vpop.permute.xlu0 %502
        %v504 = vsel %vm488, %v501, %v503
        %v506 = vadd.f32 %v439, %v504
        %s507 = scalar_lea.vmem %s266, 24
        %v508 = vld [vmem:[%s507] sm:$0xff]
        %510 = vset.pattern.permute.xlu0 0
        %511 = vperm.xlu0 %510, %v508
        %v512 = vpop.permute.xlu0 %511
        %v514 = vmul.f32 %v316, %v512
        %v515 = vadd.f32 %v292, %v514
        %v516 = vand.u32 2147483647, %v515
        %v517 = vmul.f32 %v516, %v315
        %v518 = vrsqrt.pop %v517
        %v519 = vmul.f32 %v518, %v517
        %v520 = vmul.f32 %v519, %v518
        %v521 = vmul.f32 0.5, %v520
        %v522 = vsub.f32 1.5, %v521
        %v523 = vmul.f32 %v518, %v522
        %v524 = vmul.f32 %v517, %v523
        %vm525 = vcmp.eq.f32.partialorder %v517, inf
        %v526 = vsel %vm525, %v517, %v524
        %vm527 = vcmp.eq.f32.partialorder %v517, 0.0
        %v528 = vand.u32 %v517, 2147483648
        %v529 = vsel %vm527, %v528, %v526
        %s530 = scalar_lea.vmem %s270, 12
        %v531 = vld [vmem:[%s530] sm:$0xf]
        %v532 = vunpack.c.l.bf16 %v531
        %v533 = vmul.f32 %v532, %v529
        %v534 = vadd.f32 %v515, %v533
        %s535 = scalar_lea.vmem %s266, 32
        %v536 = vld [vmem:[%s535] sm:$0xff]
        %538 = vset.pattern.permute.xlu0 0
        %539 = vperm.xlu0 %538, %v536
        %v540 = vpop.permute.xlu0 %539
        %v542 = vmul.f32 %v316, %v540
        %v543 = vmul.f32 %v346, %v540
        %v544 = vadd.f32 %v292, %v542
        %v545 = vadd.f32 %v322, %v543
        %v546 = vand.u32 2147483647, %v544
        %v547 = vand.u32 2147483647, %v545
        %v548 = vmul.f32 %v546, %v315
        %v549 = vmul.f32 %v547, %v345
        %v550 = vrsqrt.pop %v548
        %v551 = vmul.f32 %v550, %v548
        %v552 = vmul.f32 %v551, %v550
        %v553 = vmul.f32 0.5, %v552
        %v554 = vsub.f32 1.5, %v553
        %v555 = vmul.f32 %v550, %v554
        %v556 = vmul.f32 %v548, %v555
        %vm557 = vcmp.eq.f32.partialorder %v548, inf
        %v558 = vsel %vm557, %v548, %v556
        %vm559 = vcmp.eq.f32.partialorder %v548, 0.0
        %v560 = vand.u32 %v548, 2147483648
        %v561 = vsel %vm559, %v560, %v558
        %v562 = vrsqrt.pop %v549
        %v563 = vmul.f32 %v562, %v549
        %v564 = vmul.f32 %v563, %v562
        %v565 = vmul.f32 0.5, %v564
        %v566 = vsub.f32 1.5, %v565
        %v567 = vmul.f32 %v562, %v566
        %v568 = vmul.f32 %v549, %v567
        %vm569 = vcmp.eq.f32.partialorder %v549, inf
        %v570 = vsel %vm569, %v549, %v568
        %vm571 = vcmp.eq.f32.partialorder %v549, 0.0
        %v572 = vand.u32 %v549, 2147483648
        %v573 = vsel %vm571, %v572, %v570
        %s574 = scalar_lea.vmem %s270, 16
        %v575 = vld [vmem:[%s574] sm:$0xf]
        %v576 = vunpack.c.l.bf16 %v575
        %579 = vrot.lane.b32.xlu0 %v561, 127
        %v580 = vpop.permute.xlu0 %579
        %581 = vrot.lane.b32.xlu0 %v573, 127
        %v582 = vpop.permute.xlu0 %581
        %v583 = vsel %vm421, %v580, %v582
        %v585 = vmul.f32 %v576, %v583
        %587 = vrot.lane.b32.xlu0 %v585, 1
        %v588 = vpop.permute.xlu0 %587
        %v590 = vadd.f32 %v544, %v588
        %v591 = vadd.f32 %v545, %v588
        %594 = vrot.lane.b32.xlu0 %v590, 127
        %v595 = vpop.permute.xlu0 %594
        %596 = vrot.lane.b32.xlu0 %v591, 127
        %v597 = vpop.permute.xlu0 %596
        %v598 = vsel %vm421, %v595, %v597
        %v600 = vadd.f32 %v534, %v598
        %s601 = scalar_lea.vmem %s266, 40
        %v602 = vld [vmem:[%s601] sm:$0xff]
        %604 = vset.pattern.permute.xlu0 0
        %605 = vperm.xlu0 %604, %v602
        %v606 = vpop.permute.xlu0 %605
        %v608 = vmul.f32 %v316, %v606
        %v609 = vmul.f32 %v346, %v606
        %v610 = vadd.f32 %v292, %v608
        %v611 = vadd.f32 %v322, %v609
        %v612 = vand.u32 2147483647, %v610
        %v613 = vand.u32 2147483647, %v611
        %v614 = vmul.f32 %v612, %v315
        %v615 = vmul.f32 %v613, %v345
        %v616 = vrsqrt.pop %v614
        %v617 = vmul.f32 %v616, %v614
        %v618 = vmul.f32 %v617, %v616
        %v619 = vmul.f32 0.5, %v618
        %v620 = vsub.f32 1.5, %v619
        %v621 = vmul.f32 %v616, %v620
        %v622 = vmul.f32 %v614, %v621
        %vm623 = vcmp.eq.f32.partialorder %v614, inf
        %v624 = vsel %vm623, %v614, %v622
        %vm625 = vcmp.eq.f32.partialorder %v614, 0.0
        %v626 = vand.u32 %v614, 2147483648
        %v627 = vsel %vm625, %v626, %v624
        %v628 = vrsqrt.pop %v615
        %v629 = vmul.f32 %v628, %v615
        %v630 = vmul.f32 %v629, %v628
        %v631 = vmul.f32 0.5, %v630
        %v632 = vsub.f32 1.5, %v631
        %v633 = vmul.f32 %v628, %v632
        %v634 = vmul.f32 %v615, %v633
        %vm635 = vcmp.eq.f32.partialorder %v615, inf
        %v636 = vsel %vm635, %v615, %v634
        %vm637 = vcmp.eq.f32.partialorder %v615, 0.0
        %v638 = vand.u32 %v615, 2147483648
        %v639 = vsel %vm637, %v638, %v636
        %s640 = scalar_lea.vmem %s270, 20
        %v641 = vld [vmem:[%s640] sm:$0xf]
        %v642 = vunpack.c.l.bf16 %v641
        %645 = vrot.lane.b32.xlu0 %v627, 126
        %v646 = vpop.permute.xlu0 %645
        %647 = vrot.lane.b32.xlu0 %v639, 126
        %v648 = vpop.permute.xlu0 %647
        %v649 = vsel %vm488, %v646, %v648
        %v651 = vmul.f32 %v642, %v649
        %653 = vrot.lane.b32.xlu0 %v651, 2
        %v654 = vpop.permute.xlu0 %653
        %v656 = vadd.f32 %v610, %v654
        %v657 = vadd.f32 %v611, %v654
        %660 = vrot.lane.b32.xlu0 %v656, 126
        %v661 = vpop.permute.xlu0 %660
        %662 = vrot.lane.b32.xlu0 %v657, 126
        %v663 = vpop.permute.xlu0 %662
        %v664 = vsel %vm488, %v661, %v663
        %v666 = vadd.f32 %v600, %v664
        %v667 = vsub.f32 %v506, %v666
        %v668 = vmul.f32 %v667, 2560000.0
        %v669 = vround.ne.pseudo %v668
        %v670 = vmax.f32 %v669, -2048.0
        %v671 = vmin.f32 %v670, 2048.0
        %v672 = vmul.f32 %v671, 7.8125e-05
        %s673 = scalar_lea.vmem %s266, 48
        %v674 = vld [vmem:[%s673] sm:$0xff]
        %676 = vset.pattern.permute.xlu0 0
        %677 = vperm.xlu0 %676, %v674
        %v678 = vpop.permute.xlu0 %677
        %v680 = vmul.f32 %v316, %v678
        %v681 = vadd.f32 %v292, %v680
        %v682 = vand.u32 2147483647, %v681
        %v683 = vmul.f32 %v682, %v315
        %v684 = vrsqrt.pop %v683
        %v685 = vmul.f32 %v684, %v683
        %v686 = vmul.f32 %v685, %v684
        %v687 = vmul.f32 0.5, %v686
        %v688 = vsub.f32 1.5, %v687
        %v689 = vmul.f32 %v684, %v688
        %v690 = vmul.f32 %v683, %v689
        %vm691 = vcmp.eq.f32.partialorder %v683, inf
        %v692 = vsel %vm691, %v683, %v690
        %vm693 = vcmp.eq.f32.partialorder %v683, 0.0
        %v694 = vand.u32 %v683, 2147483648
        %v695 = vsel %vm693, %v694, %v692
        %s696 = scalar_lea.vmem %s270, 24
        %v697 = vld [vmem:[%s696] sm:$0xf]
        %v698 = vunpack.c.l.bf16 %v697
        %v699 = vmul.f32 %v698, %v695
        %v700 = vadd.f32 %v681, %v699
        %s701 = scalar_lea.vmem %s266, 56
        %v702 = vld [vmem:[%s701] sm:$0xff]
        %704 = vset.pattern.permute.xlu0 0
        %705 = vperm.xlu0 %704, %v702
        %v706 = vpop.permute.xlu0 %705
        %v708 = vmul.f32 %v316, %v706
        %v709 = vmul.f32 %v346, %v706
        %v710 = vadd.f32 %v292, %v708
        %v711 = vadd.f32 %v322, %v709
        %v712 = vand.u32 2147483647, %v710
        %v713 = vand.u32 2147483647, %v711
        %v714 = vmul.f32 %v712, %v315
        %v715 = vmul.f32 %v713, %v345
        %v716 = vrsqrt.pop %v714
        %v717 = vmul.f32 %v716, %v714
        %v718 = vmul.f32 %v717, %v716
        %v719 = vmul.f32 0.5, %v718
        %v720 = vsub.f32 1.5, %v719
        %v721 = vmul.f32 %v716, %v720
        %v722 = vmul.f32 %v714, %v721
        %vm723 = vcmp.eq.f32.partialorder %v714, inf
        %v724 = vsel %vm723, %v714, %v722
        %vm725 = vcmp.eq.f32.partialorder %v714, 0.0
        %v726 = vand.u32 %v714, 2147483648
        %v727 = vsel %vm725, %v726, %v724
        %v728 = vrsqrt.pop %v715
        %v729 = vmul.f32 %v728, %v715
        %v730 = vmul.f32 %v729, %v728
        %v731 = vmul.f32 0.5, %v730
        %v732 = vsub.f32 1.5, %v731
        %v733 = vmul.f32 %v728, %v732
        %v734 = vmul.f32 %v715, %v733
        %vm735 = vcmp.eq.f32.partialorder %v715, inf
        %v736 = vsel %vm735, %v715, %v734
        %vm737 = vcmp.eq.f32.partialorder %v715, 0.0
        %v738 = vand.u32 %v715, 2147483648
        %v739 = vsel %vm737, %v738, %v736
        %s740 = scalar_lea.vmem %s270, 28
        %v741 = vld [vmem:[%s740] sm:$0xf]
        %v742 = vunpack.c.l.bf16 %v741
        %745 = vrot.lane.b32.xlu0 %v727, 127
        %v746 = vpop.permute.xlu0 %745
        %747 = vrot.lane.b32.xlu0 %v739, 127
        %v748 = vpop.permute.xlu0 %747
        %v749 = vsel %vm421, %v746, %v748
        %v751 = vmul.f32 %v742, %v749
        %753 = vrot.lane.b32.xlu0 %v751, 1
        %v754 = vpop.permute.xlu0 %753
        %v756 = vadd.f32 %v710, %v754
        %v757 = vadd.f32 %v711, %v754
        %760 = vrot.lane.b32.xlu0 %v756, 127
        %v761 = vpop.permute.xlu0 %760
        %762 = vrot.lane.b32.xlu0 %v757, 127
        %v763 = vpop.permute.xlu0 %762
        %v764 = vsel %vm421, %v761, %v763
        %v766 = vadd.f32 %v700, %v764
        %s767 = scalar_lea.vmem %s266, 64
        %v768 = vld [vmem:[%s767] sm:$0xff]
        %770 = vset.pattern.permute.xlu0 0
        %771 = vperm.xlu0 %770, %v768
        %v772 = vpop.permute.xlu0 %771
        %v774 = vmul.f32 %v316, %v772
        %v775 = vmul.f32 %v346, %v772
        %v776 = vadd.f32 %v292, %v774
        %v777 = vadd.f32 %v322, %v775
        %v778 = vand.u32 2147483647, %v776
        %v779 = vand.u32 2147483647, %v777
        %v780 = vmul.f32 %v778, %v315
        %v781 = vmul.f32 %v779, %v345
        %v782 = vrsqrt.pop %v780
        %v783 = vmul.f32 %v782, %v780
        %v784 = vmul.f32 %v783, %v782
        %v785 = vmul.f32 0.5, %v784
        %v786 = vsub.f32 1.5, %v785
        %v787 = vmul.f32 %v782, %v786
        %v788 = vmul.f32 %v780, %v787
        %vm789 = vcmp.eq.f32.partialorder %v780, inf
        %v790 = vsel %vm789, %v780, %v788
        %vm791 = vcmp.eq.f32.partialorder %v780, 0.0
        %v792 = vand.u32 %v780, 2147483648
        %v793 = vsel %vm791, %v792, %v790
        %v794 = vrsqrt.pop %v781
        %v795 = vmul.f32 %v794, %v781
        %v796 = vmul.f32 %v795, %v794
        %v797 = vmul.f32 0.5, %v796
        %v798 = vsub.f32 1.5, %v797
        %v799 = vmul.f32 %v794, %v798
        %v800 = vmul.f32 %v781, %v799
        %vm801 = vcmp.eq.f32.partialorder %v781, inf
        %v802 = vsel %vm801, %v781, %v800
        %vm803 = vcmp.eq.f32.partialorder %v781, 0.0
        %v804 = vand.u32 %v781, 2147483648
        %v805 = vsel %vm803, %v804, %v802
        %s806 = scalar_lea.vmem %s270, 32
        %v807 = vld [vmem:[%s806] sm:$0xf]
        %v808 = vunpack.c.l.bf16 %v807
        %811 = vrot.lane.b32.xlu0 %v793, 126
        %v812 = vpop.permute.xlu0 %811
        %813 = vrot.lane.b32.xlu0 %v805, 126
        %v814 = vpop.permute.xlu0 %813
        %v815 = vsel %vm488, %v812, %v814
        %v817 = vmul.f32 %v808, %v815
        %819 = vrot.lane.b32.xlu0 %v817, 2
        %v820 = vpop.permute.xlu0 %819
        %v822 = vadd.f32 %v776, %v820
        %v823 = vadd.f32 %v777, %v820
        %826 = vrot.lane.b32.xlu0 %v822, 126
        %v827 = vpop.permute.xlu0 %826
        %828 = vrot.lane.b32.xlu0 %v823, 126
        %v829 = vpop.permute.xlu0 %828
        %v830 = vsel %vm488, %v827, %v829
        %v832 = vadd.f32 %v766, %v830
        %s833 = scalar_lea.vmem %s266, 72
        %v834 = vld [vmem:[%s833] sm:$0xff]
        %836 = vset.pattern.permute.xlu0 0
        %837 = vperm.xlu0 %836, %v834
        %v838 = vpop.permute.xlu0 %837
        %v840 = vmul.f32 %v316, %v838
        %v841 = vadd.f32 %v292, %v840
        %v842 = vand.u32 2147483647, %v841
        %v843 = vmul.f32 %v842, %v315
        %v844 = vrsqrt.pop %v843
        %v845 = vmul.f32 %v844, %v843
        %v846 = vmul.f32 %v845, %v844
        %v847 = vmul.f32 0.5, %v846
        %v848 = vsub.f32 1.5, %v847
        %v849 = vmul.f32 %v844, %v848
        %v850 = vmul.f32 %v843, %v849
        %vm851 = vcmp.eq.f32.partialorder %v843, inf
        %v852 = vsel %vm851, %v843, %v850
        %vm853 = vcmp.eq.f32.partialorder %v843, 0.0
        %v854 = vand.u32 %v843, 2147483648
        %v855 = vsel %vm853, %v854, %v852
        %s856 = scalar_lea.vmem %s270, 36
        %v857 = vld [vmem:[%s856] sm:$0xf]
        %v858 = vunpack.c.l.bf16 %v857
        %v859 = vmul.f32 %v858, %v855
        %v860 = vadd.f32 %v841, %v859
        %s861 = scalar_lea.vmem %s266, 80
        %v862 = vld [vmem:[%s861] sm:$0xff]
        %864 = vset.pattern.permute.xlu0 0
        %865 = vperm.xlu0 %864, %v862
        %v866 = vpop.permute.xlu0 %865
        %v868 = vmul.f32 %v316, %v866
        %v869 = vmul.f32 %v346, %v866
        %v870 = vadd.f32 %v292, %v868
        %v871 = vadd.f32 %v322, %v869
        %v872 = vand.u32 2147483647, %v870
        %v873 = vand.u32 2147483647, %v871
        %v874 = vmul.f32 %v872, %v315
        %v875 = vmul.f32 %v873, %v345
        %v876 = vrsqrt.pop %v874
        %v877 = vmul.f32 %v876, %v874
        %v878 = vmul.f32 %v877, %v876
        %v879 = vmul.f32 0.5, %v878
        %v880 = vsub.f32 1.5, %v879
        %v881 = vmul.f32 %v876, %v880
        %v882 = vmul.f32 %v874, %v881
        %vm883 = vcmp.eq.f32.partialorder %v874, inf
        %v884 = vsel %vm883, %v874, %v882
        %vm885 = vcmp.eq.f32.partialorder %v874, 0.0
        %v886 = vand.u32 %v874, 2147483648
        %v887 = vsel %vm885, %v886, %v884
        %v888 = vrsqrt.pop %v875
        %v889 = vmul.f32 %v888, %v875
        %v890 = vmul.f32 %v889, %v888
        %v891 = vmul.f32 0.5, %v890
        %v892 = vsub.f32 1.5, %v891
        %v893 = vmul.f32 %v888, %v892
        %v894 = vmul.f32 %v875, %v893
        %vm895 = vcmp.eq.f32.partialorder %v875, inf
        %v896 = vsel %vm895, %v875, %v894
        %vm897 = vcmp.eq.f32.partialorder %v875, 0.0
        %v898 = vand.u32 %v875, 2147483648
        %v899 = vsel %vm897, %v898, %v896
        %s900 = scalar_lea.vmem %s270, 40
        %v901 = vld [vmem:[%s900] sm:$0xf]
        %v902 = vunpack.c.l.bf16 %v901
        %905 = vrot.lane.b32.xlu0 %v887, 127
        %v906 = vpop.permute.xlu0 %905
        %907 = vrot.lane.b32.xlu0 %v899, 127
        %v908 = vpop.permute.xlu0 %907
        %v909 = vsel %vm421, %v906, %v908
        %v911 = vmul.f32 %v902, %v909
        %913 = vrot.lane.b32.xlu0 %v911, 1
        %v914 = vpop.permute.xlu0 %913
        %v916 = vadd.f32 %v870, %v914
        %v917 = vadd.f32 %v871, %v914
        %920 = vrot.lane.b32.xlu0 %v916, 127
        %v921 = vpop.permute.xlu0 %920
        %922 = vrot.lane.b32.xlu0 %v917, 127
        %v923 = vpop.permute.xlu0 %922
        %v924 = vsel %vm421, %v921, %v923
        %v926 = vadd.f32 %v860, %v924
        %s927 = scalar_lea.vmem %s266, 88
        %v928 = vld [vmem:[%s927] sm:$0xff]
        %930 = vset.pattern.permute.xlu0 0
        %931 = vperm.xlu0 %930, %v928
        %v932 = vpop.permute.xlu0 %931
        %v934 = vmul.f32 %v316, %v932
        %v935 = vmul.f32 %v346, %v932
        %v936 = vadd.f32 %v292, %v934
        %v937 = vadd.f32 %v322, %v935
        %v938 = vand.u32 2147483647, %v936
        %v939 = vand.u32 2147483647, %v937
        %v940 = vmul.f32 %v938, %v315
        %v941 = vmul.f32 %v939, %v345
        %v942 = vrsqrt.pop %v940
        %v943 = vmul.f32 %v942, %v940
        %v944 = vmul.f32 %v943, %v942
        %v945 = vmul.f32 0.5, %v944
        %v946 = vsub.f32 1.5, %v945
        %v947 = vmul.f32 %v942, %v946
        %v948 = vmul.f32 %v940, %v947
        %vm949 = vcmp.eq.f32.partialorder %v940, inf
        %v950 = vsel %vm949, %v940, %v948
        %vm951 = vcmp.eq.f32.partialorder %v940, 0.0
        %v952 = vand.u32 %v940, 2147483648
        %v953 = vsel %vm951, %v952, %v950
        %v954 = vrsqrt.pop %v941
        %v955 = vmul.f32 %v954, %v941
        %v956 = vmul.f32 %v955, %v954
        %v957 = vmul.f32 0.5, %v956
        %v958 = vsub.f32 1.5, %v957
        %v959 = vmul.f32 %v954, %v958
        %v960 = vmul.f32 %v941, %v959
        %vm961 = vcmp.eq.f32.partialorder %v941, inf
        %v962 = vsel %vm961, %v941, %v960
        %vm963 = vcmp.eq.f32.partialorder %v941, 0.0
        %v964 = vand.u32 %v941, 2147483648
        %v965 = vsel %vm963, %v964, %v962
        %s966 = scalar_lea.vmem %s270, 44
        %v967 = vld [vmem:[%s966] sm:$0xf]
        %v968 = vunpack.c.l.bf16 %v967
        %971 = vrot.lane.b32.xlu0 %v953, 126
        %v972 = vpop.permute.xlu0 %971
        %973 = vrot.lane.b32.xlu0 %v965, 126
        %v974 = vpop.permute.xlu0 %973
        %v975 = vsel %vm488, %v972, %v974
        %v977 = vmul.f32 %v968, %v975
        %979 = vrot.lane.b32.xlu0 %v977, 2
        %v980 = vpop.permute.xlu0 %979
        %v982 = vadd.f32 %v936, %v980
        %v983 = vadd.f32 %v937, %v980
        %986 = vrot.lane.b32.xlu0 %v982, 126
        %v987 = vpop.permute.xlu0 %986
        %988 = vrot.lane.b32.xlu0 %v983, 126
        %v989 = vpop.permute.xlu0 %988
        %v990 = vsel %vm488, %v987, %v989
        %v992 = vadd.f32 %v926, %v990
        %v993 = vsub.f32 %v832, %v992
        %v994 = vmul.f32 %v993, 2560000.0
        %v995 = vround.ne.pseudo %v994
        %v996 = vmax.f32 %v995, -2048.0
        %v997 = vmin.f32 %v996, 2048.0
        %v998 = vmul.f32 %v997, 3.90625e-05
        %v999 = vadd.f32 %v672, %v998
        %v1000 = vld [vmem:[%s274] sm:$0xff]
        %1002 = vset.pattern.permute.xlu0 0
        %1003 = vperm.xlu0 %1002, %v1000
        %v1004 = vpop.permute.xlu0 %1003
        %v1006 = vadd.f32 %v999, %v1004
        %1007 = vst [vmem:[%s253] sm:$0xff] %v1006
        %s1008 = sand.u32 %s146, 1
        %s1009 = scalar_lea.sflag [#allocation3], %s1008
        %s1010 = sand.u32 %s146, 1
        %s1011 = smul.addr %s1010, 8
        %s1012 = scalar_lea.vmem [#allocation2], %s1011
        // Predicated region
        $region37: #{tpu_custom_call.1} parent=35 // pred_check
          %p1013 = pneg %p156
        $region38: #{tpu_custom_call.1} parent=35 // pred_check_branch
          %1015 = sbr.rel (%p1013) target = $region40
        $region39: #{tpu_custom_call.1} parent=35 // pred_region
          %1017 = vsyncadd %s1009, 0
          %s1018 = sadd.s32 %s22, %s23
          %s1019 = smul.addr %s1018, 8
          %s1020 = scalar_lea.hbm %s4, %s1019
          %s1022 = sshll.u32 %s1012, 4
          %s1023 = int_to_ptr.vmem [resolvable:$true] %s1022
          %s1024 = sshll.u32 %s1020, 4
          %s1025 = int_to_ptr.hbm [resolvable:$true] %s1024
          %1027 = dma.vmem_to_hbm [thread:$0]  %s1023, 128, %s1025, %s1009
        $region40: #{tpu_custom_call.1} parent=35 // pred_fallthru
          _
      $region36: #{tpu_custom_call.1} parent=5 // pred_fallthru
        _
      %p1028 = scmp.le.s32.totalorder 2, %s13
      // Predicated region
      $region41: #{tpu_custom_call.1} parent=5 // pred_check
        %p1029 = pneg %p1028
      $region42: #{tpu_custom_call.1} parent=5 // pred_check_branch
        %1031 = sbr.rel (%p1029) target = $region44
      $region43: #{tpu_custom_call.1} parent=5 // pred_region
        %s1032 = ssub.s32 %s13, 2
        // Predicated region
        $region45: #{tpu_custom_call.1} parent=43 // pred_check
          %p1033 = pneg %p162
        $region46: #{tpu_custom_call.1} parent=43 // pred_check_branch
          %1035 = sbr.rel (%p1033) target = $region48
        $region47: #{tpu_custom_call.1} parent=43 // pred_region
          %s1036 = sand.u32 %s147, 1
          %s1037 = scalar_lea.sflag [#allocation3], %s1036
          %s1038 = sand.u32 %s147, 1
          %s1039 = smul.addr %s1038, 8
          %s1040 = scalar_lea.vmem [#allocation2], %s1039
          %1042 = dma.done %s1037, 128
        $region48: #{tpu_custom_call.1} parent=43 // pred_fallthru
          _
      $region44: #{tpu_custom_call.1} parent=5 // pred_fallthru
        _
    $region6: #{tpu_custom_call.1} parent=1 // loop_footer
      %s17 = sadd.s32 1, %s13
    $region7: #{tpu_custom_call.1} parent=1 // loop_footer_branch
      %12 = sbr.rel target = $region3
    $region8: #{tpu_custom_call.1} parent=1 // loop_exit
      _
    %1043 = vsyncpa [#allocation3], 1
    %s1044 = scalar_lea.sflag [#allocation3], 1
    %1045 = vsyncpa %s1044, 1

</llo_original>
